<compile_context>
chip_gen: v7x
topology: tpu7x:2x2x1
jax: 0.10.0
libtpu: 0.0.40
codegen_flags: <defaults>
</compile_context>

<pallas_src>
import functools

import jax
import jax.numpy as jnp
from jax.experimental import pallas as pl
from jax.experimental.pallas import tpu as pltpu


# ------------------------------------------------------------------ glue (wrapper side)
def bilinear_matrix(in_size, out_size):
    """(out_size, in_size) matrix reproducing F.interpolate(mode='bilinear',
    align_corners=False) along one axis (PyTorch clamps negative source coords)."""
    scale = in_size / out_size
    dst = jnp.arange(out_size, dtype=jnp.float32)
    src = jnp.maximum(scale * (dst + 0.5) - 0.5, 0.0)
    i0 = jnp.floor(src)
    t = src - i0
    lo = jnp.clip(i0.astype(jnp.int32), 0, in_size - 1)
    hi = jnp.clip(i0.astype(jnp.int32) + 1, 0, in_size - 1)
    return (jax.nn.one_hot(lo, in_size, dtype=jnp.float32) * (1.0 - t)[:, None]
            + jax.nn.one_hot(hi, in_size, dtype=jnp.float32) * t[:, None])


def _pick_block(n, cap=8):
    """Largest divisor of n that is <= cap (samples per grid step)."""
    b = min(n, cap)
    while n % b:
        b -= 1
    return b


# --------------------------------------------------------------------------- kernel
def _tse_kernel(ft_ref, sc_ref, kt_ref, ml_ref, mr_ref, mi_ref,
                wr1_ref, br1_ref, wr2_ref, br2_ref,
                w91_ref, bt1_ref, w92_ref, bt2_ref, w93_ref, bt3_ref,
                h_out_ref, pool_out_ref, buf_ref, patch_ref,
                *, B, W, HW, SEG, M):
    # ft_ref:   (fc, B*HW)      channel-major, B samples stacked on the lane axis
    # sc_ref:   (B, ic, Hs*Ws)  score, spatial flattened
    # kt_ref:   (Hs*Ws, HW)     Kronecker bilinear-resize matrix
    # ml/mr:    (1, Lw)         edge masks for dx = -1 / +1 taps (slab coordinates)
    # mi:       (1, Lw)         interior mask (1 on sample interiors, 0 on gaps)
    # wr*:      1x1-conv weights (Cout, Cin);  w9*: fused-tap 3x3 weights (Cout, 9*nc)
    # b*:       biases (Cout, 1)
    # h_out:    (B, oc, HW)     pool_out: (B, oc, 1)
    # buf_ref:  (nc, B*SEG)     flat margin-padded concat/activation slab (VMEM)
    # patch_ref:(9*nc, Lw)      im2col patch for the fused-tap matmuls (VMEM)
    f32 = jnp.float32
    nc = buf_ref.shape[0]
    oc = wr1_ref.shape[0]
    Lw = patch_ref.shape[1]

    # ---- reduce: 1x1 conv -> ReLU -> 1x1 conv, all B samples wide on the lane axis.
    x2d = ft_ref[...].astype(f32)                                     # (fc, B*HW)
    t0 = jnp.maximum(
        jnp.dot(wr1_ref[...], x2d, preferred_element_type=f32) + br1_ref[...], 0.0)
    h2d = jnp.dot(wr2_ref[...], t0, preferred_element_type=f32) + br2_ref[...]

    # ---- zero ONLY the margin columns (interiors are fully overwritten below,
    #      inter-sample gaps are re-zeroed by the interior-masked writebacks).
    buf_ref[:, 0:M] = jnp.zeros((nc, M), f32)
    for b in range(B):
        gs = b * SEG + M + HW
        gw = 2 * M if b < B - 1 else M
        buf_ref[:, gs:gs + gw] = jnp.zeros((nc, gw), f32)

    # ---- per sample: adaptive avg pool; place h and the Kron-resized score into buf.
    kt = kt_ref[...]                                                  # (Hs*Ws, HW)
    for b in range(B):
        hb = h2d[:, b * HW:(b + 1) * HW]                              # (oc, HW)
        pool_out_ref[b] = jnp.mean(hb, axis=1, keepdims=True)         # (oc, 1)
        base = b * SEG + M
        buf_ref[0:oc, base:base + HW] = hb
        sb = jnp.dot(sc_ref[b].astype(f32), kt, preferred_element_type=f32)
        buf_ref[oc:nc, base:base + HW] = sb                           # (ic, HW), one store

    # ---- transform: three (3x3 conv + ReLU), each as ONE fused-tap MXU matmul.
    # Hoist the mask broadcasts once (JAX does not CSE broadcast_in_dim).
    ml = jnp.broadcast_to(ml_ref[...], (nc, Lw))
    mr = jnp.broadcast_to(mr_ref[...], (nc, Lw))
    mi = jnp.broadcast_to(mi_ref[...], (nc, Lw))

    def build_patch():
        # im2col: 9 shifted (+edge-masked) lane-slices stacked on the sublane axis.
        for k in range(9):
            dy, dx = k // 3 - 1, k % 3 - 1
            start = M + dy * W + dx
            sl = buf_ref[:, start:start + Lw]                         # (nc, Lw)
            if dx == -1:
                sl = sl * ml
            elif dx == 1:
                sl = sl * mr
            patch_ref[k * nc:(k + 1) * nc, :] = sl

    def conv_layer(w_ref, b_ref):
        build_patch()
        acc = jnp.dot(w_ref[...], patch_ref[...], preferred_element_type=f32)
        return jnp.maximum(acc + b_ref[...], 0.0)                     # (cout, Lw)

    buf_ref[:, M:M + Lw] = conv_layer(w91_ref, bt1_ref) * mi          # keep gaps at 0
    buf_ref[:, M:M + Lw] = conv_layer(w92_ref, bt2_ref) * mi
    c3 = conv_layer(w93_ref, bt3_ref)                                 # (oc, Lw)

    # ---- lane-dense per-sample interior extraction.
    for b in range(B):
        h_out_ref[b] = c3[:, b * SEG:b * SEG + HW]                    # (oc, HW)


# -------------------------------------------------------------------------- wrapper
def tse_forward(ft, score, params, x=None, *, batch_block=None):
    """TSE.forward.  ft: (N, fc, H, W);  score: (N, ic, Hs, Ws).
    Returns (h, hpool) with shapes (N, oc, H, W) and (N, oc, 1, 1)."""
    wr1, br1, wr2, br2, wt1, bt1, wt2, bt2, wt3, bt3 = params
    N, fc, H, W = ft.shape
    _, ic, Hs, Ws = score.shape
    oc = wr1.shape[0]
    nc = wt1.shape[1]
    assert nc == ic + oc
    HW = H * W

    B = batch_block if batch_block is not None else _pick_block(N)
    assert N % B == 0
    M = W + 1                        # per-sample margin; >= W+1 so taps never cross samples
    SEG = HW + 2 * M                 # per-sample flat segment in the VMEM slab
    Lw = B * SEG - 2 * M             # conv slab width (interiors + inter-sample gaps)

    # layout plumbing: one XLA transpose of ft; everything else is a free reshape.
    ft_in = ft.transpose(1, 0, 2, 3).reshape(fc, N * HW)     # channel-major, lane-dense
    sc_in = score.reshape(N, ic, Hs * Ws)

    # Kronecker bilinear-resize matrix (adaptive_cat resizes score to ft's H, W).
    mh = bilinear_matrix(Hs, H)                              # (H, Hs)
    mw = bilinear_matrix(Ws, W)                              # (W, Ws)
    kt = jnp.einsum('ys,xt->styx', mh, mw).reshape(Hs * Ws, HW)   # (Hs*Ws, HW)

    # slab-coordinate masks: interior columns and left/right image-edge columns.
    j = jnp.arange(Lw, dtype=jnp.int32)
    p = j % SEG                                              # position inside a segment
    interior = p < HW
    col = p % W
    mask_i = interior.astype(jnp.float32)[None, :]                       # (1, Lw)
    mask_l = (interior & (col != 0)).astype(jnp.float32)[None, :]        # dx = -1
    mask_r = (interior & (col != W - 1)).astype(jnp.float32)[None, :]    # dx = +1

    # fused-tap 3x3 weights: (9, Cout, Cin) -> (Cout, 9*Cin), matching the patch layout.
    w91 = wt1.transpose(1, 0, 2).reshape(nc, 9 * nc)
    w92 = wt2.transpose(1, 0, 2).reshape(nc, 9 * nc)
    w93 = wt3.transpose(1, 0, 2).reshape(oc, 9 * nc)

    def fixed(shape):
        nd = len(shape)
        return pl.BlockSpec(shape, lambda n, _nd=nd: (0,) * _nd)

    h_flat, pool = pl.pallas_call(
        functools.partial(_tse_kernel, B=B, W=W, HW=HW, SEG=SEG, M=M),
        grid=(N // B,),
        out_shape=(jax.ShapeDtypeStruct((N, oc, HW), jnp.float32),
                   jax.ShapeDtypeStruct((N, oc, 1), jnp.float32)),
        in_specs=[
            pl.BlockSpec((fc, B * HW), lambda n: (0, n)),           # ft (channel-major)
            pl.BlockSpec((B, ic, Hs * Ws), lambda n: (n, 0, 0)),    # score (flat spatial)
            fixed((Hs * Ws, HW)),                                   # Kron resize matrix
            fixed((1, Lw)), fixed((1, Lw)), fixed((1, Lw)),         # edge / interior masks
            fixed((oc, fc)), fixed((oc, 1)),                        # reduce conv1
            fixed((oc, oc)), fixed((oc, 1)),                        # reduce conv2
            fixed((nc, 9 * nc)), fixed((nc, 1)),                    # transform conv1 (fused taps)
            fixed((nc, 9 * nc)), fixed((nc, 1)),                    # transform conv2
            fixed((oc, 9 * nc)), fixed((oc, 1)),                    # transform conv3
        ],
        out_specs=(
            pl.BlockSpec((B, oc, HW), lambda n: (n, 0, 0)),
            pl.BlockSpec((B, oc, 1), lambda n: (n, 0, 0)),
        ),
        scratch_shapes=[
            pltpu.VMEM((nc, B * SEG), jnp.float32),     # margin-padded concat/act slab
            pltpu.VMEM((9 * nc, Lw), jnp.float32),      # fused-tap (im2col) patch
        ],
        # TODO(synk): on v7x verify the parallel axis is actually core-sharded; if not,
        # switch to pltpu.CORE_PARALLEL (kept "parallel" here as the known-good setting).
        compiler_params=pltpu.CompilerParams(dimension_semantics=("parallel",)),
    )(ft_in, sc_in, kt, mask_l, mask_r, mask_i,
      wr1, br1, wr2, br2, w91, bt1, w92, bt2, w93, bt3)

    h = h_flat.reshape(N, oc, H, W)
    # TODO(synk): when x is not None the in-kernel pool is computed then discarded; a
    # static flag could skip that tiny reduce/store, omitted to keep one kernel variant.
    hpool = pool.reshape(N, oc, 1, 1) if x is None else x
    return h, hpool


# ---------------------------------------------------------------- pure-JAX reference
def reference_forward(ft, score, params):
    wr1, br1, wr2, br2, wt1, bt1, wt2, bt2, wt3, bt3 = params
    N, fc, H, W = ft.shape
    _, ic, Hs, Ws = score.shape
    hi = jax.lax.Precision.HIGHEST

    def conv1x1(a, w, b):            # a: (N,C,H,W), w: (O,C), b: (O,1)
        return jnp.einsum('oc,nchw->nohw', w, a, precision=hi) + b.reshape(1, -1, 1, 1)

    def conv3x3(a, w, b):            # w: (9,O,C), b: (O,1)
        n, c, h, ww = a.shape
        p = jnp.pad(a, ((0, 0), (0, 0), (1, 1), (1, 1)))
        acc = jnp.zeros((n, w.shape[1], h, ww), jnp.float32)
        for k in range(9):
            dy, dx = k // 3, k % 3
            acc = acc + jnp.einsum('oc,nchw->nohw', w[k],
                                   p[:, :, dy:dy + h, dx:dx + ww], precision=hi)
        return acc + b.reshape(1, -1, 1, 1)

    t = jax.nn.relu(conv1x1(ft, wr1, br1))
    h = conv1x1(t, wr2, br2)
    hpool = jnp.mean(h, axis=(2, 3), keepdims=True)

    mh = bilinear_matrix(Hs, H)      # (H, Hs)
    mw = bilinear_matrix(Ws, W)      # (W, Ws)
    s = jnp.einsum('yh,nchw->ncyw', mh, score, precision=hi)
    s = jnp.einsum('xw,ncyw->ncyx', mw, s, precision=hi)
    cat = jnp.concatenate([h, s], axis=1)

    z = jax.nn.relu(conv3x3(cat, wt1, bt1))
    z = jax.nn.relu(conv3x3(z, wt2, bt2))
    z = jax.nn.relu(conv3x3(z, wt3, bt3))
    return z, hpool


if __name__ == "__main__":
    # Small TSE: fc=8 feature channels, ic=4 score channels, oc=4 outputs (nc=8),
    # features 16x16, score at 8x8 (exercises the adaptive_cat bilinear resize).
    N, fc, ic, oc = 2, 8, 4, 4
    nc = ic + oc
    H, W = 16, 16
    Hs, Ws = 8, 8

    key = jax.random.PRNGKey(0)
    ks = jax.random.split(key, 12)
    ft = jax.random.normal(ks[0], (N, fc, H, W), jnp.float32)
    score = jax.random.normal(ks[1], (N, ic, Hs, Ws), jnp.float32)
    params = (
        jax.random.normal(ks[2], (oc, fc), jnp.float32) * 0.2,     # reduce conv1 w
        jax.random.normal(ks[3], (oc, 1), jnp.float32) * 0.1,      # reduce conv1 b
        jax.random.normal(ks[4], (oc, oc), jnp.float32) * 0.2,     # reduce conv2 w
        jax.random.normal(ks[5], (oc, 1), jnp.float32) * 0.1,      # reduce conv2 b
        jax.random.normal(ks[6], (9, nc, nc), jnp.float32) * 0.1,  # transform conv1 w
        jax.random.normal(ks[7], (nc, 1), jnp.float32) * 0.1,      # transform conv1 b
        jax.random.normal(ks[8], (9, nc, nc), jnp.float32) * 0.1,  # transform conv2 w
        jax.random.normal(ks[9], (nc, 1), jnp.float32) * 0.1,      # transform conv2 b
        jax.random.normal(ks[10], (9, oc, nc), jnp.float32) * 0.1, # transform conv3 w
        jax.random.normal(ks[11], (oc, 1), jnp.float32) * 0.1,     # transform conv3 b
    )

    # bf16 activations in HBM (halves the dominant input DMA); weights stay f32.
    ft_bf = ft.astype(jnp.bfloat16)
    sc_bf = score.astype(jnp.bfloat16)

    h, hpool = tse_forward(ft_bf, sc_bf, params)
    h, hpool = jax.block_until_ready((h, hpool))

    # reference consumes the identical (bf16-rounded) inputs, upcast to f32.
    h_ref, p_ref = reference_forward(ft_bf.astype(jnp.float32),
                                     sc_bf.astype(jnp.float32), params)
    h_ref, p_ref = jax.block_until_ready((h_ref, p_ref))

    assert h.shape == (N, oc, H, W), h.shape
    assert hpool.shape == (N, oc, 1, 1), hpool.shape
    assert bool(jnp.all(jnp.isfinite(h))) and bool(jnp.all(jnp.isfinite(hpool)))
    assert bool(jnp.allclose(h, h_ref, atol=2e-2, rtol=2e-2)), \
        float(jnp.max(jnp.abs(h - h_ref)))
    assert bool(jnp.allclose(hpool, p_ref, atol=2e-2, rtol=2e-2)), \
        float(jnp.max(jnp.abs(hpool - p_ref)))

    print("KERNEL_OK")
</pallas_src>

<mosaic_0001>
module attributes {stable_mosaic.version = 11 : i64} {
  func.func @_tse_kernel(%arg0: i32, %arg1: memref<8x512xbf16, #tpu.memory_space<vmem>>, %arg2: memref<2x4x64xbf16, #tpu.memory_space<vmem>>, %arg3: memref<64x256xf32, #tpu.memory_space<vmem>>, %arg4: memref<1x546xf32, #tpu.memory_space<vmem>>, %arg5: memref<1x546xf32, #tpu.memory_space<vmem>>, %arg6: memref<1x546xf32, #tpu.memory_space<vmem>>, %arg7: memref<4x8xf32, #tpu.memory_space<vmem>>, %arg8: memref<4x1xf32, #tpu.memory_space<vmem>>, %arg9: memref<4x4xf32, #tpu.memory_space<vmem>>, %arg10: memref<4x1xf32, #tpu.memory_space<vmem>>, %arg11: memref<8x72xf32, #tpu.memory_space<vmem>>, %arg12: memref<8x1xf32, #tpu.memory_space<vmem>>, %arg13: memref<8x72xf32, #tpu.memory_space<vmem>>, %arg14: memref<8x1xf32, #tpu.memory_space<vmem>>, %arg15: memref<4x72xf32, #tpu.memory_space<vmem>>, %arg16: memref<4x1xf32, #tpu.memory_space<vmem>>, %arg17: memref<2x4x256xf32, #tpu.memory_space<vmem>>, %arg18: memref<2x4x1xf32, #tpu.memory_space<vmem>>, %arg19: memref<8x580xf32, #tpu.memory_space<vmem>>, %arg20: memref<72x546xf32, #tpu.memory_space<vmem>>) attributes {dimension_semantics = [#tpu.dimension_semantics<parallel>], iteration_bounds = array<i64: 1>, scalar_prefetch = 0 : i64, scratch_operands = 2 : i64, tpu.core_type = #tpu.core_type<tc>, window_params = [{transform_indices = @transform_0, window_bounds = array<i64: 8, 512>}, {transform_indices = @transform_1, window_bounds = array<i64: 2, 4, 64>}, {pipeline_mode = #tpu.pipeline_mode<synchronous>, transform_indices = @transform_2, window_bounds = array<i64: 64, 256>}, {pipeline_mode = #tpu.pipeline_mode<synchronous>, transform_indices = @transform_3, window_bounds = array<i64: 1, 546>}, {pipeline_mode = #tpu.pipeline_mode<synchronous>, transform_indices = @transform_4, window_bounds = array<i64: 1, 546>}, {pipeline_mode = #tpu.pipeline_mode<synchronous>, transform_indices = @transform_5, window_bounds = array<i64: 1, 546>}, {pipeline_mode = #tpu.pipeline_mode<synchronous>, transform_indices = @transform_6, window_bounds = array<i64: 4, 8>}, {pipeline_mode = #tpu.pipeline_mode<synchronous>, transform_indices = @transform_7, window_bounds = array<i64: 4, 1>}, {pipeline_mode = #tpu.pipeline_mode<synchronous>, transform_indices = @transform_8, window_bounds = array<i64: 4, 4>}, {pipeline_mode = #tpu.pipeline_mode<synchronous>, transform_indices = @transform_9, window_bounds = array<i64: 4, 1>}, {pipeline_mode = #tpu.pipeline_mode<synchronous>, transform_indices = @transform_10, window_bounds = array<i64: 8, 72>}, {pipeline_mode = #tpu.pipeline_mode<synchronous>, transform_indices = @transform_11, window_bounds = array<i64: 8, 1>}, {pipeline_mode = #tpu.pipeline_mode<synchronous>, transform_indices = @transform_12, window_bounds = array<i64: 8, 72>}, {pipeline_mode = #tpu.pipeline_mode<synchronous>, transform_indices = @transform_13, window_bounds = array<i64: 8, 1>}, {pipeline_mode = #tpu.pipeline_mode<synchronous>, transform_indices = @transform_14, window_bounds = array<i64: 4, 72>}, {pipeline_mode = #tpu.pipeline_mode<synchronous>, transform_indices = @transform_15, window_bounds = array<i64: 4, 1>}, {transform_indices = @transform_16, window_bounds = array<i64: 2, 4, 256>}, {transform_indices = @transform_17, window_bounds = array<i64: 2, 4, 1>}]} {
    %c0 = arith.constant 0 : index
    %c0_0 = arith.constant 0 : index
    %0 = vector.load %arg1[%c0, %c0_0] : memref<8x512xbf16, #tpu.memory_space<vmem>>, vector<8x512xbf16>
    %1 = arith.extf %0 : vector<8x512xbf16> to vector<8x512xf32>
    %c0_1 = arith.constant 0 : index
    %c0_2 = arith.constant 0 : index
    %2 = vector.load %arg7[%c0_1, %c0_2] : memref<4x8xf32, #tpu.memory_space<vmem>>, vector<4x8xf32>
    %cst = arith.constant dense<0.000000e+00> : vector<4x512xf32>
    %3 = tpu.matmul %2, %1, %cst {dimension_numbers = #tpu.dot_dimension_numbers<[1], [0], [0], [1], [0, 0, 1, 1], [], []>} : vector<4x8xf32>, vector<8x512xf32>, vector<4x512xf32> -> vector<4x512xf32>
    %c0_3 = arith.constant 0 : index
    %c0_4 = arith.constant 0 : index
    %4 = vector.load %arg8[%c0_3, %c0_4] : memref<4x1xf32, #tpu.memory_space<vmem>>, vector<4x1xf32>
    %5 = vector.broadcast %4 : vector<4x1xf32> to vector<4x512xf32>
    %6 = arith.addf %3, %5 : vector<4x512xf32>
    %cst_5 = arith.constant 0.000000e+00 : f32
    %7 = vector.broadcast %cst_5 : f32 to vector<4x512xf32>
    %8 = arith.maximumf %6, %7 : vector<4x512xf32>
    %c0_6 = arith.constant 0 : index
    %c0_7 = arith.constant 0 : index
    %9 = vector.load %arg9[%c0_6, %c0_7] : memref<4x4xf32, #tpu.memory_space<vmem>>, vector<4x4xf32>
    %cst_8 = arith.constant dense<0.000000e+00> : vector<4x512xf32>
    %10 = tpu.matmul %9, %8, %cst_8 {dimension_numbers = #tpu.dot_dimension_numbers<[1], [0], [0], [1], [0, 0, 1, 1], [], []>} : vector<4x4xf32>, vector<4x512xf32>, vector<4x512xf32> -> vector<4x512xf32>
    %c0_9 = arith.constant 0 : index
    %c0_10 = arith.constant 0 : index
    %11 = vector.load %arg10[%c0_9, %c0_10] : memref<4x1xf32, #tpu.memory_space<vmem>>, vector<4x1xf32>
    %12 = vector.broadcast %11 : vector<4x1xf32> to vector<4x512xf32>
    %13 = arith.addf %10, %12 : vector<4x512xf32>
    %cst_11 = arith.constant 0.000000e+00 : f32
    %14 = vector.broadcast %cst_11 : f32 to vector<8x17xf32>
    %c0_12 = arith.constant 0 : index
    %c0_13 = arith.constant 0 : index
    %15 = vector.load %arg19[%c0_12, %c0_13] : memref<8x580xf32, #tpu.memory_space<vmem>>, vector<8x17xf32>
    tpu.vector_store %arg19[%c0_12, %c0_13], %14 {strides = array<i32>} : memref<8x580xf32, #tpu.memory_space<vmem>>, vector<8x17xf32>,
    %cst_14 = arith.constant 0.000000e+00 : f32
    %16 = vector.broadcast %cst_14 : f32 to vector<8x34xf32>
    %c0_15 = arith.constant 0 : index
    %c273 = arith.constant 273 : index
    %17 = vector.load %arg19[%c0_15, %c273] : memref<8x580xf32, #tpu.memory_space<vmem>>, vector<8x34xf32>
    tpu.vector_store %arg19[%c0_15, %c273], %16 {strides = array<i32>} : memref<8x580xf32, #tpu.memory_space<vmem>>, vector<8x34xf32>,
    %cst_16 = arith.constant 0.000000e+00 : f32
    %18 = vector.broadcast %cst_16 : f32 to vector<8x17xf32>
    %c0_17 = arith.constant 0 : index
    %c563 = arith.constant 563 : index
    %19 = vector.load %arg19[%c0_17, %c563] : memref<8x580xf32, #tpu.memory_space<vmem>>, vector<8x17xf32>
    tpu.vector_store %arg19[%c0_17, %c563], %18 {strides = array<i32>} : memref<8x580xf32, #tpu.memory_space<vmem>>, vector<8x17xf32>,
    %c0_18 = arith.constant 0 : index
    %c0_19 = arith.constant 0 : index
    %20 = vector.load %arg3[%c0_18, %c0_19] : memref<64x256xf32, #tpu.memory_space<vmem>>, vector<64x256xf32>
    %21 = vector.extract_strided_slice %13 {offsets = [0, 0], sizes = [4, 256], strides = [1, 1]} : vector<4x512xf32> to vector<4x256xf32>
    %cst_20 = arith.constant dense<0.000000e+00> : vector<4xf32>
    %22 = vector.multi_reduction <add>, %21, %cst_20 [1] : vector<4x256xf32> to vector<4xf32>
    %23 = vector.shape_cast %22 : vector<4xf32> to vector<4x1xf32>
    %cst_21 = arith.constant 2.560000e+02 : f32
    %24 = vector.broadcast %cst_21 : f32 to vector<4x1xf32>
    %25 = arith.divf %23, %24 : vector<4x1xf32>
    %c0_22 = arith.constant 0 : index
    %c0_23 = arith.constant 0 : index
    %c0_24 = arith.constant 0 : index
    %26 = vector.load %arg18[%c0_22, %c0_23, %c0_24] : memref<2x4x1xf32, #tpu.memory_space<vmem>>, vector<1x4x1xf32>
    %27 = vector.shape_cast %26 : vector<1x4x1xf32> to vector<4x1xf32>
    %28 = vector.shape_cast %25 : vector<4x1xf32> to vector<1x4x1xf32>
    tpu.vector_store %arg18[%c0_22, %c0_23, %c0_24], %28 {strides = array<i32>} : memref<2x4x1xf32, #tpu.memory_space<vmem>>, vector<1x4x1xf32>,
    %c0_25 = arith.constant 0 : index
    %c17 = arith.constant 17 : index
    %29 = vector.load %arg19[%c0_25, %c17] : memref<8x580xf32, #tpu.memory_space<vmem>>, vector<4x256xf32>
    tpu.vector_store %arg19[%c0_25, %c17], %21 {strides = array<i32>} : memref<8x580xf32, #tpu.memory_space<vmem>>, vector<4x256xf32>,
    %c0_26 = arith.constant 0 : index
    %c0_27 = arith.constant 0 : index
    %c0_28 = arith.constant 0 : index
    %30 = vector.load %arg2[%c0_26, %c0_27, %c0_28] : memref<2x4x64xbf16, #tpu.memory_space<vmem>>, vector<1x4x64xbf16>
    %31 = vector.shape_cast %30 : vector<1x4x64xbf16> to vector<4x64xbf16>
    %32 = arith.extf %31 : vector<4x64xbf16> to vector<4x64xf32>
    %cst_29 = arith.constant dense<0.000000e+00> : vector<4x256xf32>
    %33 = tpu.matmul %32, %20, %cst_29 {dimension_numbers = #tpu.dot_dimension_numbers<[1], [0], [0], [1], [0, 0, 1, 1], [], []>} : vector<4x64xf32>, vector<64x256xf32>, vector<4x256xf32> -> vector<4x256xf32>
    %c4 = arith.constant 4 : index
    %c17_30 = arith.constant 17 : index
    %34 = vector.load %arg19[%c4, %c17_30] : memref<8x580xf32, #tpu.memory_space<vmem>>, vector<4x256xf32>
    tpu.vector_store %arg19[%c4, %c17_30], %33 {strides = array<i32>} : memref<8x580xf32, #tpu.memory_space<vmem>>, vector<4x256xf32>,
    %35 = vector.extract_strided_slice %13 {offsets = [0, 256], sizes = [4, 256], strides = [1, 1]} : vector<4x512xf32> to vector<4x256xf32>
    %cst_31 = arith.constant dense<0.000000e+00> : vector<4xf32>
    %36 = vector.multi_reduction <add>, %35, %cst_31 [1] : vector<4x256xf32> to vector<4xf32>
    %37 = vector.shape_cast %36 : vector<4xf32> to vector<4x1xf32>
    %cst_32 = arith.constant 2.560000e+02 : f32
    %38 = vector.broadcast %cst_32 : f32 to vector<4x1xf32>
    %39 = arith.divf %37, %38 : vector<4x1xf32>
    %c1 = arith.constant 1 : index
    %c0_33 = arith.constant 0 : index
    %c0_34 = arith.constant 0 : index
    %40 = vector.load %arg18[%c1, %c0_33, %c0_34] : memref<2x4x1xf32, #tpu.memory_space<vmem>>, vector<1x4x1xf32>
    %41 = vector.shape_cast %40 : vector<1x4x1xf32> to vector<4x1xf32>
    %42 = vector.shape_cast %39 : vector<4x1xf32> to vector<1x4x1xf32>
    tpu.vector_store %arg18[%c1, %c0_33, %c0_34], %42 {strides = array<i32>} : memref<2x4x1xf32, #tpu.memory_space<vmem>>, vector<1x4x1xf32>,
    %c0_35 = arith.constant 0 : index
    %c307 = arith.constant 307 : index
    %43 = vector.load %arg19[%c0_35, %c307] : memref<8x580xf32, #tpu.memory_space<vmem>>, vector<4x256xf32>
    tpu.vector_store %arg19[%c0_35, %c307], %35 {strides = array<i32>} : memref<8x580xf32, #tpu.memory_space<vmem>>, vector<4x256xf32>,
    %c1_36 = arith.constant 1 : index
    %c0_37 = arith.constant 0 : index
    %c0_38 = arith.constant 0 : index
    %44 = vector.load %arg2[%c1_36, %c0_37, %c0_38] : memref<2x4x64xbf16, #tpu.memory_space<vmem>>, vector<1x4x64xbf16>
    %45 = vector.shape_cast %44 : vector<1x4x64xbf16> to vector<4x64xbf16>
    %46 = arith.extf %45 : vector<4x64xbf16> to vector<4x64xf32>
    %cst_39 = arith.constant dense<0.000000e+00> : vector<4x256xf32>
    %47 = tpu.matmul %46, %20, %cst_39 {dimension_numbers = #tpu.dot_dimension_numbers<[1], [0], [0], [1], [0, 0, 1, 1], [], []>} : vector<4x64xf32>, vector<64x256xf32>, vector<4x256xf32> -> vector<4x256xf32>
    %c4_40 = arith.constant 4 : index
    %c307_41 = arith.constant 307 : index
    %48 = vector.load %arg19[%c4_40, %c307_41] : memref<8x580xf32, #tpu.memory_space<vmem>>, vector<4x256xf32>
    tpu.vector_store %arg19[%c4_40, %c307_41], %47 {strides = array<i32>} : memref<8x580xf32, #tpu.memory_space<vmem>>, vector<4x256xf32>,
    %c0_42 = arith.constant 0 : index
    %c0_43 = arith.constant 0 : index
    %49 = vector.load %arg4[%c0_42, %c0_43] : memref<1x546xf32, #tpu.memory_space<vmem>>, vector<1x546xf32>
    %50 = vector.shape_cast %49 : vector<1x546xf32> to vector<1x546xf32>
    %51 = vector.broadcast %50 : vector<1x546xf32> to vector<8x546xf32>
    %c0_44 = arith.constant 0 : index
    %c0_45 = arith.constant 0 : index
    %52 = vector.load %arg5[%c0_44, %c0_45] : memref<1x546xf32, #tpu.memory_space<vmem>>, vector<1x546xf32>
    %53 = vector.shape_cast %52 : vector<1x546xf32> to vector<1x546xf32>
    %54 = vector.broadcast %53 : vector<1x546xf32> to vector<8x546xf32>
    %c0_46 = arith.constant 0 : index
    %c0_47 = arith.constant 0 : index
    %55 = vector.load %arg6[%c0_46, %c0_47] : memref<1x546xf32, #tpu.memory_space<vmem>>, vector<1x546xf32>
    %56 = vector.shape_cast %55 : vector<1x546xf32> to vector<1x546xf32>
    %57 = vector.broadcast %56 : vector<1x546xf32> to vector<8x546xf32>
    %c0_48 = arith.constant 0 : index
    %c0_49 = arith.constant 0 : index
    %58 = vector.load %arg19[%c0_48, %c0_49] : memref<8x580xf32, #tpu.memory_space<vmem>>, vector<8x546xf32>
    %59 = arith.mulf %58, %51 : vector<8x546xf32>
    %c0_50 = arith.constant 0 : index
    %c0_51 = arith.constant 0 : index
    %60 = vector.load %arg20[%c0_50, %c0_51] : memref<72x546xf32, #tpu.memory_space<vmem>>, vector<8x546xf32>
    tpu.vector_store %arg20[%c0_50, %c0_51], %59 {strides = array<i32>} : memref<72x546xf32, #tpu.memory_space<vmem>>, vector<8x546xf32>,
    %c0_52 = arith.constant 0 : index
    %c1_53 = arith.constant 1 : index
    %61 = vector.load %arg19[%c0_52, %c1_53] : memref<8x580xf32, #tpu.memory_space<vmem>>, vector<8x546xf32>
    %c8 = arith.constant 8 : index
    %c0_54 = arith.constant 0 : index
    %62 = vector.load %arg20[%c8, %c0_54] : memref<72x546xf32, #tpu.memory_space<vmem>>, vector<8x546xf32>
    tpu.vector_store %arg20[%c8, %c0_54], %61 {strides = array<i32>} : memref<72x546xf32, #tpu.memory_space<vmem>>, vector<8x546xf32>,
    %c0_55 = arith.constant 0 : index
    %c2 = arith.constant 2 : index
    %63 = vector.load %arg19[%c0_55, %c2] : memref<8x580xf32, #tpu.memory_space<vmem>>, vector<8x546xf32>
    %64 = arith.mulf %63, %54 : vector<8x546xf32>
    %c16 = arith.constant 16 : index
    %c0_56 = arith.constant 0 : index
    %65 = vector.load %arg20[%c16, %c0_56] : memref<72x546xf32, #tpu.memory_space<vmem>>, vector<8x546xf32>
    tpu.vector_store %arg20[%c16, %c0_56], %64 {strides = array<i32>} : memref<72x546xf32, #tpu.memory_space<vmem>>, vector<8x546xf32>,
    %c0_57 = arith.constant 0 : index
    %c16_58 = arith.constant 16 : index
    %66 = vector.load %arg19[%c0_57, %c16_58] : memref<8x580xf32, #tpu.memory_space<vmem>>, vector<8x546xf32>
    %67 = arith.mulf %66, %51 : vector<8x546xf32>
    %c24 = arith.constant 24 : index
    %c0_59 = arith.constant 0 : index
    %68 = vector.load %arg20[%c24, %c0_59] : memref<72x546xf32, #tpu.memory_space<vmem>>, vector<8x546xf32>
    tpu.vector_store %arg20[%c24, %c0_59], %67 {strides = array<i32>} : memref<72x546xf32, #tpu.memory_space<vmem>>, vector<8x546xf32>,
    %c0_60 = arith.constant 0 : index
    %c17_61 = arith.constant 17 : index
    %69 = vector.load %arg19[%c0_60, %c17_61] : memref<8x580xf32, #tpu.memory_space<vmem>>, vector<8x546xf32>
    %c32 = arith.constant 32 : index
    %c0_62 = arith.constant 0 : index
    %70 = vector.load %arg20[%c32, %c0_62] : memref<72x546xf32, #tpu.memory_space<vmem>>, vector<8x546xf32>
    tpu.vector_store %arg20[%c32, %c0_62], %69 {strides = array<i32>} : memref<72x546xf32, #tpu.memory_space<vmem>>, vector<8x546xf32>,
    %c0_63 = arith.constant 0 : index
    %c18 = arith.constant 18 : index
    %71 = vector.load %arg19[%c0_63, %c18] : memref<8x580xf32, #tpu.memory_space<vmem>>, vector<8x546xf32>
    %72 = arith.mulf %71, %54 : vector<8x546xf32>
    %c40 = arith.constant 40 : index
    %c0_64 = arith.constant 0 : index
    %73 = vector.load %arg20[%c40, %c0_64] : memref<72x546xf32, #tpu.memory_space<vmem>>, vector<8x546xf32>
    tpu.vector_store %arg20[%c40, %c0_64], %72 {strides = array<i32>} : memref<72x546xf32, #tpu.memory_space<vmem>>, vector<8x546xf32>,
    %c0_65 = arith.constant 0 : index
    %c32_66 = arith.constant 32 : index
    %74 = vector.load %arg19[%c0_65, %c32_66] : memref<8x580xf32, #tpu.memory_space<vmem>>, vector<8x546xf32>
    %75 = arith.mulf %74, %51 : vector<8x546xf32>
    %c48 = arith.constant 48 : index
    %c0_67 = arith.constant 0 : index
    %76 = vector.load %arg20[%c48, %c0_67] : memref<72x546xf32, #tpu.memory_space<vmem>>, vector<8x546xf32>
    tpu.vector_store %arg20[%c48, %c0_67], %75 {strides = array<i32>} : memref<72x546xf32, #tpu.memory_space<vmem>>, vector<8x546xf32>,
    %c0_68 = arith.constant 0 : index
    %c33 = arith.constant 33 : index
    %77 = vector.load %arg19[%c0_68, %c33] : memref<8x580xf32, #tpu.memory_space<vmem>>, vector<8x546xf32>
    %c56 = arith.constant 56 : index
    %c0_69 = arith.constant 0 : index
    %78 = vector.load %arg20[%c56, %c0_69] : memref<72x546xf32, #tpu.memory_space<vmem>>, vector<8x546xf32>
    tpu.vector_store %arg20[%c56, %c0_69], %77 {strides = array<i32>} : memref<72x546xf32, #tpu.memory_space<vmem>>, vector<8x546xf32>,
    %c0_70 = arith.constant 0 : index
    %c34 = arith.constant 34 : index
    %79 = vector.load %arg19[%c0_70, %c34] : memref<8x580xf32, #tpu.memory_space<vmem>>, vector<8x546xf32>
    %80 = arith.mulf %79, %54 : vector<8x546xf32>
    %c64 = arith.constant 64 : index
    %c0_71 = arith.constant 0 : index
    %81 = vector.load %arg20[%c64, %c0_71] : memref<72x546xf32, #tpu.memory_space<vmem>>, vector<8x546xf32>
    tpu.vector_store %arg20[%c64, %c0_71], %80 {strides = array<i32>} : memref<72x546xf32, #tpu.memory_space<vmem>>, vector<8x546xf32>,
    %c0_72 = arith.constant 0 : index
    %c0_73 = arith.constant 0 : index
    %82 = vector.load %arg11[%c0_72, %c0_73] : memref<8x72xf32, #tpu.memory_space<vmem>>, vector<8x72xf32>
    %c0_74 = arith.constant 0 : index
    %c0_75 = arith.constant 0 : index
    %83 = vector.load %arg20[%c0_74, %c0_75] : memref<72x546xf32, #tpu.memory_space<vmem>>, vector<72x546xf32>
    %cst_76 = arith.constant dense<0.000000e+00> : vector<8x546xf32>
    %84 = tpu.matmul %82, %83, %cst_76 {dimension_numbers = #tpu.dot_dimension_numbers<[1], [0], [0], [1], [0, 0, 1, 1], [], []>} : vector<8x72xf32>, vector<72x546xf32>, vector<8x546xf32> -> vector<8x546xf32>
    %c0_77 = arith.constant 0 : index
    %c0_78 = arith.constant 0 : index
    %85 = vector.load %arg12[%c0_77, %c0_78] : memref<8x1xf32, #tpu.memory_space<vmem>>, vector<8x1xf32>
    %86 = vector.broadcast %85 : vector<8x1xf32> to vector<8x546xf32>
    %87 = arith.addf %84, %86 : vector<8x546xf32>
    %cst_79 = arith.constant 0.000000e+00 : f32
    %88 = vector.broadcast %cst_79 : f32 to vector<8x546xf32>
    %89 = arith.maximumf %87, %88 : vector<8x546xf32>
    %90 = arith.mulf %89, %57 : vector<8x546xf32>
    %c0_80 = arith.constant 0 : index
    %c17_81 = arith.constant 17 : index
    %91 = vector.load %arg19[%c0_80, %c17_81] : memref<8x580xf32, #tpu.memory_space<vmem>>, vector<8x546xf32>
    tpu.vector_store %arg19[%c0_80, %c17_81], %90 {strides = array<i32>} : memref<8x580xf32, #tpu.memory_space<vmem>>, vector<8x546xf32>,
    %c0_82 = arith.constant 0 : index
    %c0_83 = arith.constant 0 : index
    %92 = vector.load %arg19[%c0_82, %c0_83] : memref<8x580xf32, #tpu.memory_space<vmem>>, vector<8x546xf32>
    %93 = arith.mulf %92, %51 : vector<8x546xf32>
    %c0_84 = arith.constant 0 : index
    %c0_85 = arith.constant 0 : index
    %94 = vector.load %arg20[%c0_84, %c0_85] : memref<72x546xf32, #tpu.memory_space<vmem>>, vector<8x546xf32>
    tpu.vector_store %arg20[%c0_84, %c0_85], %93 {strides = array<i32>} : memref<72x546xf32, #tpu.memory_space<vmem>>, vector<8x546xf32>,
    %c0_86 = arith.constant 0 : index
    %c1_87 = arith.constant 1 : index
    %95 = vector.load %arg19[%c0_86, %c1_87] : memref<8x580xf32, #tpu.memory_space<vmem>>, vector<8x546xf32>
    %c8_88 = arith.constant 8 : index
    %c0_89 = arith.constant 0 : index
    %96 = vector.load %arg20[%c8_88, %c0_89] : memref<72x546xf32, #tpu.memory_space<vmem>>, vector<8x546xf32>
    tpu.vector_store %arg20[%c8_88, %c0_89], %95 {strides = array<i32>} : memref<72x546xf32, #tpu.memory_space<vmem>>, vector<8x546xf32>,
    %c0_90 = arith.constant 0 : index
    %c2_91 = arith.constant 2 : index
    %97 = vector.load %arg19[%c0_90, %c2_91] : memref<8x580xf32, #tpu.memory_space<vmem>>, vector<8x546xf32>
    %98 = arith.mulf %97, %54 : vector<8x546xf32>
    %c16_92 = arith.constant 16 : index
    %c0_93 = arith.constant 0 : index
    %99 = vector.load %arg20[%c16_92, %c0_93] : memref<72x546xf32, #tpu.memory_space<vmem>>, vector<8x546xf32>
    tpu.vector_store %arg20[%c16_92, %c0_93], %98 {strides = array<i32>} : memref<72x546xf32, #tpu.memory_space<vmem>>, vector<8x546xf32>,
    %c0_94 = arith.constant 0 : index
    %c16_95 = arith.constant 16 : index
    %100 = vector.load %arg19[%c0_94, %c16_95] : memref<8x580xf32, #tpu.memory_space<vmem>>, vector<8x546xf32>
    %101 = arith.mulf %100, %51 : vector<8x546xf32>
    %c24_96 = arith.constant 24 : index
    %c0_97 = arith.constant 0 : index
    %102 = vector.load %arg20[%c24_96, %c0_97] : memref<72x546xf32, #tpu.memory_space<vmem>>, vector<8x546xf32>
    tpu.vector_store %arg20[%c24_96, %c0_97], %101 {strides = array<i32>} : memref<72x546xf32, #tpu.memory_space<vmem>>, vector<8x546xf32>,
    %c0_98 = arith.constant 0 : index
    %c17_99 = arith.constant 17 : index
    %103 = vector.load %arg19[%c0_98, %c17_99] : memref<8x580xf32, #tpu.memory_space<vmem>>, vector<8x546xf32>
    %c32_100 = arith.constant 32 : index
    %c0_101 = arith.constant 0 : index
    %104 = vector.load %arg20[%c32_100, %c0_101] : memref<72x546xf32, #tpu.memory_space<vmem>>, vector<8x546xf32>
    tpu.vector_store %arg20[%c32_100, %c0_101], %103 {strides = array<i32>} : memref<72x546xf32, #tpu.memory_space<vmem>>, vector<8x546xf32>,
    %c0_102 = arith.constant 0 : index
    %c18_103 = arith.constant 18 : index
    %105 = vector.load %arg19[%c0_102, %c18_103] : memref<8x580xf32, #tpu.memory_space<vmem>>, vector<8x546xf32>
    %106 = arith.mulf %105, %54 : vector<8x546xf32>
    %c40_104 = arith.constant 40 : index
    %c0_105 = arith.constant 0 : index
    %107 = vector.load %arg20[%c40_104, %c0_105] : memref<72x546xf32, #tpu.memory_space<vmem>>, vector<8x546xf32>
    tpu.vector_store %arg20[%c40_104, %c0_105], %106 {strides = array<i32>} : memref<72x546xf32, #tpu.memory_space<vmem>>, vector<8x546xf32>,
    %c0_106 = arith.constant 0 : index
    %c32_107 = arith.constant 32 : index
    %108 = vector.load %arg19[%c0_106, %c32_107] : memref<8x580xf32, #tpu.memory_space<vmem>>, vector<8x546xf32>
    %109 = arith.mulf %108, %51 : vector<8x546xf32>
    %c48_108 = arith.constant 48 : index
    %c0_109 = arith.constant 0 : index
    %110 = vector.load %arg20[%c48_108, %c0_109] : memref<72x546xf32, #tpu.memory_space<vmem>>, vector<8x546xf32>
    tpu.vector_store %arg20[%c48_108, %c0_109], %109 {strides = array<i32>} : memref<72x546xf32, #tpu.memory_space<vmem>>, vector<8x546xf32>,
    %c0_110 = arith.constant 0 : index
    %c33_111 = arith.constant 33 : index
    %111 = vector.load %arg19[%c0_110, %c33_111] : memref<8x580xf32, #tpu.memory_space<vmem>>, vector<8x546xf32>
    %c56_112 = arith.constant 56 : index
    %c0_113 = arith.constant 0 : index
    %112 = vector.load %arg20[%c56_112, %c0_113] : memref<72x546xf32, #tpu.memory_space<vmem>>, vector<8x546xf32>
    tpu.vector_store %arg20[%c56_112, %c0_113], %111 {strides = array<i32>} : memref<72x546xf32, #tpu.memory_space<vmem>>, vector<8x546xf32>,
    %c0_114 = arith.constant 0 : index
    %c34_115 = arith.constant 34 : index
    %113 = vector.load %arg19[%c0_114, %c34_115] : memref<8x580xf32, #tpu.memory_space<vmem>>, vector<8x546xf32>
    %114 = arith.mulf %113, %54 : vector<8x546xf32>
    %c64_116 = arith.constant 64 : index
    %c0_117 = arith.constant 0 : index
    %115 = vector.load %arg20[%c64_116, %c0_117] : memref<72x546xf32, #tpu.memory_space<vmem>>, vector<8x546xf32>
    tpu.vector_store %arg20[%c64_116, %c0_117], %114 {strides = array<i32>} : memref<72x546xf32, #tpu.memory_space<vmem>>, vector<8x546xf32>,
    %c0_118 = arith.constant 0 : index
    %c0_119 = arith.constant 0 : index
    %116 = vector.load %arg13[%c0_118, %c0_119] : memref<8x72xf32, #tpu.memory_space<vmem>>, vector<8x72xf32>
    %c0_120 = arith.constant 0 : index
    %c0_121 = arith.constant 0 : index
    %117 = vector.load %arg20[%c0_120, %c0_121] : memref<72x546xf32, #tpu.memory_space<vmem>>, vector<72x546xf32>
    %cst_122 = arith.constant dense<0.000000e+00> : vector<8x546xf32>
    %118 = tpu.matmul %116, %117, %cst_122 {dimension_numbers = #tpu.dot_dimension_numbers<[1], [0], [0], [1], [0, 0, 1, 1], [], []>} : vector<8x72xf32>, vector<72x546xf32>, vector<8x546xf32> -> vector<8x546xf32>
    %c0_123 = arith.constant 0 : index
    %c0_124 = arith.constant 0 : index
    %119 = vector.load %arg14[%c0_123, %c0_124] : memref<8x1xf32, #tpu.memory_space<vmem>>, vector<8x1xf32>
    %120 = vector.broadcast %119 : vector<8x1xf32> to vector<8x546xf32>
    %121 = arith.addf %118, %120 : vector<8x546xf32>
    %cst_125 = arith.constant 0.000000e+00 : f32
    %122 = vector.broadcast %cst_125 : f32 to vector<8x546xf32>
    %123 = arith.maximumf %121, %122 : vector<8x546xf32>
    %124 = arith.mulf %123, %57 : vector<8x546xf32>
    %c0_126 = arith.constant 0 : index
    %c17_127 = arith.constant 17 : index
    %125 = vector.load %arg19[%c0_126, %c17_127] : memref<8x580xf32, #tpu.memory_space<vmem>>, vector<8x546xf32>
    tpu.vector_store %arg19[%c0_126, %c17_127], %124 {strides = array<i32>} : memref<8x580xf32, #tpu.memory_space<vmem>>, vector<8x546xf32>,
    %c0_128 = arith.constant 0 : index
    %c0_129 = arith.constant 0 : index
    %126 = vector.load %arg19[%c0_128, %c0_129] : memref<8x580xf32, #tpu.memory_space<vmem>>, vector<8x546xf32>
    %127 = arith.mulf %126, %51 : vector<8x546xf32>
    %c0_130 = arith.constant 0 : index
    %c0_131 = arith.constant 0 : index
    %128 = vector.load %arg20[%c0_130, %c0_131] : memref<72x546xf32, #tpu.memory_space<vmem>>, vector<8x546xf32>
    tpu.vector_store %arg20[%c0_130, %c0_131], %127 {strides = array<i32>} : memref<72x546xf32, #tpu.memory_space<vmem>>, vector<8x546xf32>,
    %c0_132 = arith.constant 0 : index
    %c1_133 = arith.constant 1 : index
    %129 = vector.load %arg19[%c0_132, %c1_133] : memref<8x580xf32, #tpu.memory_space<vmem>>, vector<8x546xf32>
    %c8_134 = arith.constant 8 : index
    %c0_135 = arith.constant 0 : index
    %130 = vector.load %arg20[%c8_134, %c0_135] : memref<72x546xf32, #tpu.memory_space<vmem>>, vector<8x546xf32>
    tpu.vector_store %arg20[%c8_134, %c0_135], %129 {strides = array<i32>} : memref<72x546xf32, #tpu.memory_space<vmem>>, vector<8x546xf32>,
    %c0_136 = arith.constant 0 : index
    %c2_137 = arith.constant 2 : index
    %131 = vector.load %arg19[%c0_136, %c2_137] : memref<8x580xf32, #tpu.memory_space<vmem>>, vector<8x546xf32>
    %132 = arith.mulf %131, %54 : vector<8x546xf32>
    %c16_138 = arith.constant 16 : index
    %c0_139 = arith.constant 0 : index
    %133 = vector.load %arg20[%c16_138, %c0_139] : memref<72x546xf32, #tpu.memory_space<vmem>>, vector<8x546xf32>
    tpu.vector_store %arg20[%c16_138, %c0_139], %132 {strides = array<i32>} : memref<72x546xf32, #tpu.memory_space<vmem>>, vector<8x546xf32>,
    %c0_140 = arith.constant 0 : index
    %c16_141 = arith.constant 16 : index
    %134 = vector.load %arg19[%c0_140, %c16_141] : memref<8x580xf32, #tpu.memory_space<vmem>>, vector<8x546xf32>
    %135 = arith.mulf %134, %51 : vector<8x546xf32>
    %c24_142 = arith.constant 24 : index
    %c0_143 = arith.constant 0 : index
    %136 = vector.load %arg20[%c24_142, %c0_143] : memref<72x546xf32, #tpu.memory_space<vmem>>, vector<8x546xf32>
    tpu.vector_store %arg20[%c24_142, %c0_143], %135 {strides = array<i32>} : memref<72x546xf32, #tpu.memory_space<vmem>>, vector<8x546xf32>,
    %c0_144 = arith.constant 0 : index
    %c17_145 = arith.constant 17 : index
    %137 = vector.load %arg19[%c0_144, %c17_145] : memref<8x580xf32, #tpu.memory_space<vmem>>, vector<8x546xf32>
    %c32_146 = arith.constant 32 : index
    %c0_147 = arith.constant 0 : index
    %138 = vector.load %arg20[%c32_146, %c0_147] : memref<72x546xf32, #tpu.memory_space<vmem>>, vector<8x546xf32>
    tpu.vector_store %arg20[%c32_146, %c0_147], %137 {strides = array<i32>} : memref<72x546xf32, #tpu.memory_space<vmem>>, vector<8x546xf32>,
    %c0_148 = arith.constant 0 : index
    %c18_149 = arith.constant 18 : index
    %139 = vector.load %arg19[%c0_148, %c18_149] : memref<8x580xf32, #tpu.memory_space<vmem>>, vector<8x546xf32>
    %140 = arith.mulf %139, %54 : vector<8x546xf32>
    %c40_150 = arith.constant 40 : index
    %c0_151 = arith.constant 0 : index
    %141 = vector.load %arg20[%c40_150, %c0_151] : memref<72x546xf32, #tpu.memory_space<vmem>>, vector<8x546xf32>
    tpu.vector_store %arg20[%c40_150, %c0_151], %140 {strides = array<i32>} : memref<72x546xf32, #tpu.memory_space<vmem>>, vector<8x546xf32>,
    %c0_152 = arith.constant 0 : index
    %c32_153 = arith.constant 32 : index
    %142 = vector.load %arg19[%c0_152, %c32_153] : memref<8x580xf32, #tpu.memory_space<vmem>>, vector<8x546xf32>
    %143 = arith.mulf %142, %51 : vector<8x546xf32>
    %c48_154 = arith.constant 48 : index
    %c0_155 = arith.constant 0 : index
    %144 = vector.load %arg20[%c48_154, %c0_155] : memref<72x546xf32, #tpu.memory_space<vmem>>, vector<8x546xf32>
    tpu.vector_store %arg20[%c48_154, %c0_155], %143 {strides = array<i32>} : memref<72x546xf32, #tpu.memory_space<vmem>>, vector<8x546xf32>,
    %c0_156 = arith.constant 0 : index
    %c33_157 = arith.constant 33 : index
    %145 = vector.load %arg19[%c0_156, %c33_157] : memref<8x580xf32, #tpu.memory_space<vmem>>, vector<8x546xf32>
    %c56_158 = arith.constant 56 : index
    %c0_159 = arith.constant 0 : index
    %146 = vector.load %arg20[%c56_158, %c0_159] : memref<72x546xf32, #tpu.memory_space<vmem>>, vector<8x546xf32>
    tpu.vector_store %arg20[%c56_158, %c0_159], %145 {strides = array<i32>} : memref<72x546xf32, #tpu.memory_space<vmem>>, vector<8x546xf32>,
    %c0_160 = arith.constant 0 : index
    %c34_161 = arith.constant 34 : index
    %147 = vector.load %arg19[%c0_160, %c34_161] : memref<8x580xf32, #tpu.memory_space<vmem>>, vector<8x546xf32>
    %148 = arith.mulf %147, %54 : vector<8x546xf32>
    %c64_162 = arith.constant 64 : index
    %c0_163 = arith.constant 0 : index
    %149 = vector.load %arg20[%c64_162, %c0_163] : memref<72x546xf32, #tpu.memory_space<vmem>>, vector<8x546xf32>
    tpu.vector_store %arg20[%c64_162, %c0_163], %148 {strides = array<i32>} : memref<72x546xf32, #tpu.memory_space<vmem>>, vector<8x546xf32>,
    %c0_164 = arith.constant 0 : index
    %c0_165 = arith.constant 0 : index
    %150 = vector.load %arg15[%c0_164, %c0_165] : memref<4x72xf32, #tpu.memory_space<vmem>>, vector<4x72xf32>
    %c0_166 = arith.constant 0 : index
    %c0_167 = arith.constant 0 : index
    %151 = vector.load %arg20[%c0_166, %c0_167] : memref<72x546xf32, #tpu.memory_space<vmem>>, vector<72x546xf32>
    %cst_168 = arith.constant dense<0.000000e+00> : vector<4x546xf32>
    %152 = tpu.matmul %150, %151, %cst_168 {dimension_numbers = #tpu.dot_dimension_numbers<[1], [0], [0], [1], [0, 0, 1, 1], [], []>} : vector<4x72xf32>, vector<72x546xf32>, vector<4x546xf32> -> vector<4x546xf32>
    %c0_169 = arith.constant 0 : index
    %c0_170 = arith.constant 0 : index
    %153 = vector.load %arg16[%c0_169, %c0_170] : memref<4x1xf32, #tpu.memory_space<vmem>>, vector<4x1xf32>
    %154 = vector.broadcast %153 : vector<4x1xf32> to vector<4x546xf32>
    %155 = arith.addf %152, %154 : vector<4x546xf32>
    %cst_171 = arith.constant 0.000000e+00 : f32
    %156 = vector.broadcast %cst_171 : f32 to vector<4x546xf32>
    %157 = arith.maximumf %155, %156 : vector<4x546xf32>
    %158 = vector.extract_strided_slice %157 {offsets = [0, 0], sizes = [4, 256], strides = [1, 1]} : vector<4x546xf32> to vector<4x256xf32>
    %c0_172 = arith.constant 0 : index
    %c0_173 = arith.constant 0 : index
    %c0_174 = arith.constant 0 : index
    %159 = vector.load %arg17[%c0_172, %c0_173, %c0_174] : memref<2x4x256xf32, #tpu.memory_space<vmem>>, vector<1x4x256xf32>
    %160 = vector.shape_cast %159 : vector<1x4x256xf32> to vector<4x256xf32>
    %161 = vector.shape_cast %158 : vector<4x256xf32> to vector<1x4x256xf32>
    tpu.vector_store %arg17[%c0_172, %c0_173, %c0_174], %161 {strides = array<i32>} : memref<2x4x256xf32, #tpu.memory_space<vmem>>, vector<1x4x256xf32>,
    %162 = vector.extract_strided_slice %157 {offsets = [0, 290], sizes = [4, 256], strides = [1, 1]} : vector<4x546xf32> to vector<4x256xf32>
    %c1_175 = arith.constant 1 : index
    %c0_176 = arith.constant 0 : index
    %c0_177 = arith.constant 0 : index
    %163 = vector.load %arg17[%c1_175, %c0_176, %c0_177] : memref<2x4x256xf32, #tpu.memory_space<vmem>>, vector<1x4x256xf32>
    %164 = vector.shape_cast %163 : vector<1x4x256xf32> to vector<4x256xf32>
    %165 = vector.shape_cast %162 : vector<4x256xf32> to vector<1x4x256xf32>
    tpu.vector_store %arg17[%c1_175, %c0_176, %c0_177], %165 {strides = array<i32>} : memref<2x4x256xf32, #tpu.memory_space<vmem>>, vector<1x4x256xf32>,
    return
  }
  func.func @transform_0(%arg0: i32) -> (i32, i32) {
    %c0_i32 = arith.constant 0 : i32
    %c0_i32_0 = arith.constant 0 : i32
    return %c0_i32, %arg0 : i32, i32
  }
  func.func @transform_1(%arg0: i32) -> (i32, i32, i32) {
    %c0_i32 = arith.constant 0 : i32
    %c0_i32_0 = arith.constant 0 : i32
    %c0_i32_1 = arith.constant 0 : i32
    return %arg0, %c0_i32, %c0_i32_0 : i32, i32, i32
  }
  func.func @transform_2(%arg0: i32) -> (i32, i32) {
    %c0_i32 = arith.constant 0 : i32
    %c0_i32_0 = arith.constant 0 : i32
    %c0_i32_1 = arith.constant 0 : i32
    return %c0_i32, %c0_i32_0 : i32, i32
  }
  func.func @transform_3(%arg0: i32) -> (i32, i32) {
    %c0_i32 = arith.constant 0 : i32
    %c0_i32_0 = arith.constant 0 : i32
    %c0_i32_1 = arith.constant 0 : i32
    return %c0_i32, %c0_i32_0 : i32, i32
  }
  func.func @transform_4(%arg0: i32) -> (i32, i32) {
    %c0_i32 = arith.constant 0 : i32
    %c0_i32_0 = arith.constant 0 : i32
    %c0_i32_1 = arith.constant 0 : i32
    return %c0_i32, %c0_i32_0 : i32, i32
  }
  func.func @transform_5(%arg0: i32) -> (i32, i32) {
    %c0_i32 = arith.constant 0 : i32
    %c0_i32_0 = arith.constant 0 : i32
    %c0_i32_1 = arith.constant 0 : i32
    return %c0_i32, %c0_i32_0 : i32, i32
  }
  func.func @transform_6(%arg0: i32) -> (i32, i32) {
    %c0_i32 = arith.constant 0 : i32
    %c0_i32_0 = arith.constant 0 : i32
    %c0_i32_1 = arith.constant 0 : i32
    return %c0_i32, %c0_i32_0 : i32, i32
  }
  func.func @transform_7(%arg0: i32) -> (i32, i32) {
    %c0_i32 = arith.constant 0 : i32
    %c0_i32_0 = arith.constant 0 : i32
    %c0_i32_1 = arith.constant 0 : i32
    return %c0_i32, %c0_i32_0 : i32, i32
  }
  func.func @transform_8(%arg0: i32) -> (i32, i32) {
    %c0_i32 = arith.constant 0 : i32
    %c0_i32_0 = arith.constant 0 : i32
    %c0_i32_1 = arith.constant 0 : i32
    return %c0_i32, %c0_i32_0 : i32, i32
  }
  func.func @transform_9(%arg0: i32) -> (i32, i32) {
    %c0_i32 = arith.constant 0 : i32
    %c0_i32_0 = arith.constant 0 : i32
    %c0_i32_1 = arith.constant 0 : i32
    return %c0_i32, %c0_i32_0 : i32, i32
  }
  func.func @transform_10(%arg0: i32) -> (i32, i32) {
    %c0_i32 = arith.constant 0 : i32
    %c0_i32_0 = arith.constant 0 : i32
    %c0_i32_1 = arith.constant 0 : i32
    return %c0_i32, %c0_i32_0 : i32, i32
  }
  func.func @transform_11(%arg0: i32) -> (i32, i32) {
    %c0_i32 = arith.constant 0 : i32
    %c0_i32_0 = arith.constant 0 : i32
    %c0_i32_1 = arith.constant 0 : i32
    return %c0_i32, %c0_i32_0 : i32, i32
  }
  func.func @transform_12(%arg0: i32) -> (i32, i32) {
    %c0_i32 = arith.constant 0 : i32
    %c0_i32_0 = arith.constant 0 : i32
    %c0_i32_1 = arith.constant 0 : i32
    return %c0_i32, %c0_i32_0 : i32, i32
  }
  func.func @transform_13(%arg0: i32) -> (i32, i32) {
    %c0_i32 = arith.constant 0 : i32
    %c0_i32_0 = arith.constant 0 : i32
    %c0_i32_1 = arith.constant 0 : i32
    return %c0_i32, %c0_i32_0 : i32, i32
  }
  func.func @transform_14(%arg0: i32) -> (i32, i32) {
    %c0_i32 = arith.constant 0 : i32
    %c0_i32_0 = arith.constant 0 : i32
    %c0_i32_1 = arith.constant 0 : i32
    return %c0_i32, %c0_i32_0 : i32, i32
  }
  func.func @transform_15(%arg0: i32) -> (i32, i32) {
    %c0_i32 = arith.constant 0 : i32
    %c0_i32_0 = arith.constant 0 : i32
    %c0_i32_1 = arith.constant 0 : i32
    return %c0_i32, %c0_i32_0 : i32, i32
  }
  func.func @transform_16(%arg0: i32) -> (i32, i32, i32) {
    %c0_i32 = arith.constant 0 : i32
    %c0_i32_0 = arith.constant 0 : i32
    %c0_i32_1 = arith.constant 0 : i32
    return %arg0, %c0_i32, %c0_i32_0 : i32, i32, i32
  }
  func.func @transform_17(%arg0: i32) -> (i32, i32, i32) {
    %c0_i32 = arith.constant 0 : i32
    %c0_i32_0 = arith.constant 0 : i32
    %c0_i32_1 = arith.constant 0 : i32
    return %arg0, %c0_i32, %c0_i32_0 : i32, i32, i32
  }
}

</mosaic_0001>

<llo_original>
// kernel: tpu_custom_call.1
$region0: #{tpu_custom_call.1}
  #allocation0 [shape = 'u32[]', space=smem, size = 0x4, offset = 0x4, fixed_abs, tag = 'smem constant byte address 0x4 - core index']
  #allocation1 [shape = 'u32[144,128]{1,0:T(1,128)}', space=vmem, size = 0x12000, scoped, tag = 'internal scratch']
  #allocation2 [shape = 'f32[8,580]{1,0:T(8,128)}', space=vmem, size = 0x5000, scoped, tag = 'scratch operand']
  #allocation3 [shape = 'f32[72,546]{1,0:T(8,128)}', space=vmem, size = 0x2d000, scoped, tag = 'scratch operand']
  %s0 = inlined_call_operand.vmem [shape: bf16[8,512], index: 0, kind: input, shape index: {}]
  %s1 = inlined_call_operand.hbm [shape: bf16[2,4,64], index: 1, kind: input, shape index: {}]
  %s2 = inlined_call_operand.hbm [shape: f32[64,256], index: 2, kind: input, shape index: {}]
  %s3 = inlined_call_operand.vmem [shape: f32[1,546], index: 3, kind: input, shape index: {}]
  %s4 = inlined_call_operand.vmem [shape: f32[1,546], index: 4, kind: input, shape index: {}]
  %s5 = inlined_call_operand.vmem [shape: f32[1,546], index: 5, kind: input, shape index: {}]
  %s6 = inlined_call_operand.vmem [shape: f32[4,8], index: 6, kind: input, shape index: {}]
  %s7 = inlined_call_operand.vmem [shape: f32[4,1], index: 7, kind: input, shape index: {}]
  %s8 = inlined_call_operand.vmem [shape: f32[4,4], index: 8, kind: input, shape index: {}]
  %s9 = inlined_call_operand.vmem [shape: f32[4,1], index: 9, kind: input, shape index: {}]
  %s10 = inlined_call_operand.vmem [shape: f32[8,72], index: 10, kind: input, shape index: {}]
  %s11 = inlined_call_operand.vmem [shape: f32[8,1], index: 11, kind: input, shape index: {}]
  %s12 = inlined_call_operand.vmem [shape: f32[8,72], index: 12, kind: input, shape index: {}]
  %s13 = inlined_call_operand.vmem [shape: f32[8,1], index: 13, kind: input, shape index: {}]
  %s14 = inlined_call_operand.vmem [shape: f32[4,72], index: 14, kind: input, shape index: {}]
  %s15 = inlined_call_operand.vmem [shape: f32[4,1], index: 15, kind: input, shape index: {}]
  %s16 = inlined_call_operand.hbm [shape: f32[2,4,256], index: 16, kind: output, shape index: {0}]
  %s17 = inlined_call_operand.vmem [shape: f32[2,4,1], index: 17, kind: output, shape index: {1}]
  %18 = xla_tuple %s16, %s17
  %s19 = sld [smem:[#allocation0]]
  $region90: #{tpu_custom_call.1} parent=0
    _
  %s21 = ssub.s32 1, %s19
  %s22 = scalar_select 0, %s21, %s19
  $region1: #{tpu_custom_call.1} parent=0
    #allocation4 [shape = 'u8[2048]{0}', space=vmem, size = 0x800, scoped, tag = 'input window, operand 1, single buffered']
    #allocation5 [shape = 's32[1]{0}', space=sflag, size = 0x4, scoped, tag = 'scoped memory for tpu_custom_call.1']
    #allocation6 [shape = 's32[1]{0}', space=sflag, size = 0x4, scoped, tag = 'scoped memory for tpu_custom_call.1']
    #allocation7 [shape = 'u8[65536]{0}', space=vmem, size = 0x10000, scoped, tag = 'input window, operand 2, single buffered']
    #allocation8 [shape = 's32[1]{0}', space=sflag, size = 0x4, scoped, tag = 'scoped memory for tpu_custom_call.1']
    #allocation9 [shape = 'u8[8192]{0}', space=vmem, size = 0x2000, scoped, tag = 'output window, operand 0, single buffered']
    %23 = vsyncpa [#allocation5], 0
    %24 = vsyncpa [#allocation8], 0
    %25 = vsyncpa [#allocation6], 0
    // Predicated region
    $region2: #{tpu_custom_call.1} parent=1 // pred_check
      _
    $region3: #{tpu_custom_call.1} parent=1 // pred_check_branch
      %27 = sbr.rel (0) target = $region5
    $region4: #{tpu_custom_call.1} parent=1 // pred_region
      _
    $region5: #{tpu_custom_call.1} parent=1 // pred_fallthru
      _
    // Predicated region
    $region6: #{tpu_custom_call.1} parent=1 // pred_check
      _
    $region7: #{tpu_custom_call.1} parent=1 // pred_check_branch
      %29 = sbr.rel (0) target = $region9
    $region8: #{tpu_custom_call.1} parent=1 // pred_region
      %s31 = ssub.s32 64, 64
      %32 = vsyncadd [#allocation5], %s31
      %s33 = sshll.u32 [#allocation4], 4
      %s34 = int_to_ptr.vmem [resolvable:$true] %s33
      %39 = dma.hbm_to_vmem [thread:$0]  %s1, 64, %s34, [#allocation5], 32, 32, 2
    $region9: #{tpu_custom_call.1} parent=1 // pred_fallthru
      _
    // Predicated region
    $region10: #{tpu_custom_call.1} parent=1 // pred_check
      _
    $region11: #{tpu_custom_call.1} parent=1 // pred_check_branch
      %41 = sbr.rel (0) target = $region13
    $region12: #{tpu_custom_call.1} parent=1 // pred_region
      %s43 = ssub.s32 2048, 2048
      %44 = vsyncadd [#allocation8], %s43
      %s45 = sshll.u32 [#allocation7], 4
      %s46 = int_to_ptr.vmem [resolvable:$true] %s45
      %51 = dma.hbm_to_vmem [thread:$0]  %s2, 2048, %s46, [#allocation8], 256, 256, 16
    $region13: #{tpu_custom_call.1} parent=1 // pred_fallthru
      _
    // Predicated region
    $region14: #{tpu_custom_call.1} parent=1 // pred_check
      _
    $region15: #{tpu_custom_call.1} parent=1 // pred_check_branch
      %53 = sbr.rel (0) target = $region17
    $region16: #{tpu_custom_call.1} parent=1 // pred_region
      _
    $region17: #{tpu_custom_call.1} parent=1 // pred_fallthru
      _
    // Predicated region
    $region18: #{tpu_custom_call.1} parent=1 // pred_check
      _
    $region19: #{tpu_custom_call.1} parent=1 // pred_check_branch
      %55 = sbr.rel (0) target = $region21
    $region20: #{tpu_custom_call.1} parent=1 // pred_region
      _
    $region21: #{tpu_custom_call.1} parent=1 // pred_fallthru
      _
    // Predicated region
    $region22: #{tpu_custom_call.1} parent=1 // pred_check
      _
    $region23: #{tpu_custom_call.1} parent=1 // pred_check_branch
      %57 = sbr.rel (0) target = $region25
    $region24: #{tpu_custom_call.1} parent=1 // pred_region
      _
    $region25: #{tpu_custom_call.1} parent=1 // pred_fallthru
      _
    // Predicated region
    $region26: #{tpu_custom_call.1} parent=1 // pred_check
      _
    $region27: #{tpu_custom_call.1} parent=1 // pred_check_branch
      %59 = sbr.rel (0) target = $region29
    $region28: #{tpu_custom_call.1} parent=1 // pred_region
      _
    $region29: #{tpu_custom_call.1} parent=1 // pred_fallthru
      _
    // Predicated region
    $region30: #{tpu_custom_call.1} parent=1 // pred_check
      _
    $region31: #{tpu_custom_call.1} parent=1 // pred_check_branch
      %61 = sbr.rel (0) target = $region33
    $region32: #{tpu_custom_call.1} parent=1 // pred_region
      _
    $region33: #{tpu_custom_call.1} parent=1 // pred_fallthru
      _
    // Predicated region
    $region34: #{tpu_custom_call.1} parent=1 // pred_check
      _
    $region35: #{tpu_custom_call.1} parent=1 // pred_check_branch
      %63 = sbr.rel (0) target = $region37
    $region36: #{tpu_custom_call.1} parent=1 // pred_region
      _
    $region37: #{tpu_custom_call.1} parent=1 // pred_fallthru
      _
    // Predicated region
    $region38: #{tpu_custom_call.1} parent=1 // pred_check
      _
    $region39: #{tpu_custom_call.1} parent=1 // pred_check_branch
      %65 = sbr.rel (0) target = $region41
    $region40: #{tpu_custom_call.1} parent=1 // pred_region
      _
    $region41: #{tpu_custom_call.1} parent=1 // pred_fallthru
      _
    // Predicated region
    $region42: #{tpu_custom_call.1} parent=1 // pred_check
      _
    $region43: #{tpu_custom_call.1} parent=1 // pred_check_branch
      %67 = sbr.rel (0) target = $region45
    $region44: #{tpu_custom_call.1} parent=1 // pred_region
      _
    $region45: #{tpu_custom_call.1} parent=1 // pred_fallthru
      _
    // Predicated region
    $region46: #{tpu_custom_call.1} parent=1 // pred_check
      _
    $region47: #{tpu_custom_call.1} parent=1 // pred_check_branch
      %69 = sbr.rel (0) target = $region49
    $region48: #{tpu_custom_call.1} parent=1 // pred_region
      _
    $region49: #{tpu_custom_call.1} parent=1 // pred_fallthru
      _
    // Predicated region
    $region50: #{tpu_custom_call.1} parent=1 // pred_check
      _
    $region51: #{tpu_custom_call.1} parent=1 // pred_check_branch
      %71 = sbr.rel (0) target = $region53
    $region52: #{tpu_custom_call.1} parent=1 // pred_region
      _
    $region53: #{tpu_custom_call.1} parent=1 // pred_fallthru
      _
    // Predicated region
    $region54: #{tpu_custom_call.1} parent=1 // pred_check
      _
    $region55: #{tpu_custom_call.1} parent=1 // pred_check_branch
      %73 = sbr.rel (0) target = $region57
    $region56: #{tpu_custom_call.1} parent=1 // pred_region
      _
    $region57: #{tpu_custom_call.1} parent=1 // pred_fallthru
      _
    // Predicated region
    $region58: #{tpu_custom_call.1} parent=1 // pred_check
      _
    $region59: #{tpu_custom_call.1} parent=1 // pred_check_branch
      %75 = sbr.rel (0) target = $region61
    $region60: #{tpu_custom_call.1} parent=1 // pred_region
      _
    $region61: #{tpu_custom_call.1} parent=1 // pred_fallthru
      _
    // Predicated region
    $region62: #{tpu_custom_call.1} parent=1 // pred_check
      _
    $region63: #{tpu_custom_call.1} parent=1 // pred_check_branch
      %77 = sbr.rel (0) target = $region65
    $region64: #{tpu_custom_call.1} parent=1 // pred_region
      _
    $region65: #{tpu_custom_call.1} parent=1 // pred_fallthru
      _
    // Predicated region
    $region66: #{tpu_custom_call.1} parent=1 // pred_check
      _
    $region67: #{tpu_custom_call.1} parent=1 // pred_check_branch
      %79 = sbr.rel (0) target = $region69
    $region68: #{tpu_custom_call.1} parent=1 // pred_region
      %80 = dma.done [#allocation5], 64
    $region69: #{tpu_custom_call.1} parent=1 // pred_fallthru
      _
    // Predicated region
    $region70: #{tpu_custom_call.1} parent=1 // pred_check
      _
    $region71: #{tpu_custom_call.1} parent=1 // pred_check_branch
      %82 = sbr.rel (0) target = $region73
    $region72: #{tpu_custom_call.1} parent=1 // pred_region
      %83 = dma.done [#allocation8], 2048
    $region73: #{tpu_custom_call.1} parent=1 // pred_fallthru
      _
    %v84 = vld [vmem:[%s0] sm:$0xff]
    %v85 = vld [vmem:[%s0 + $0x8] sm:$0xff]
    %v86 = vunpack.c.l.bf16 %v84
    %v87 = vunpack.c.h.bf16 %v84
    %v88 = vunpack.c.l.bf16 %v85
    %v89 = vunpack.c.h.bf16 %v85
    %v90 = vld [vmem:[%s6] sm:$0xf]
    %v91 = vld [vmem:[%s7] sm:$0xf]
    %93 = vset.pattern.permute.xlu0 0
    %94 = vperm.xlu0 %93, %v91
    %v95 = vpop.permute.xlu0 %94
    %vm97 = vcmask 64512
    %v99 = vsel %vm97, %v90, 0
    %101 = vmatprep.subr.mxu0 %v87
    %102 = vmatpush1.msra.mxu0 %v86
    %103 = vmatprep.subr.mxu0 0.0
    %104 = vmatpush1.msra.mxu0 0.0
    %105 = vmatprep.subr.mxu0 0.0
    %106 = vmatpush1.msra.mxu0 0.0
    %107 = vmatprep.subr.mxu0 0.0
    %108 = vmatpush1.msra.mxu0 0.0
    %109 = vmatprep.subr.mxu0 0.0
    %110 = vmatpush1.msra.mxu0 0.0
    %111 = vmatprep.subr.mxu0 0.0
    %112 = vmatpush1.msra.mxu0 0.0
    %113 = vmatprep.subr.mxu0 0.0
    %114 = vmatpush1.msra.mxu0 0.0
    %115 = vmatprep.subr.mxu0 0.0
    %116 = vmatpush1.msra.mxu0 0.0
    %117 = vmatprep.subr.mxu0 0.0
    %118 = vmatpush1.msra.mxu0 0.0
    %119 = vmatprep.subr.mxu0 0.0
    %120 = vmatpush1.msra.mxu0 0.0
    %121 = vmatprep.subr.mxu0 0.0
    %122 = vmatpush1.msra.mxu0 0.0
    %123 = vmatprep.subr.mxu0 0.0
    %124 = vmatpush1.msra.mxu0 0.0
    %125 = vmatprep.subr.mxu0 0.0
    %126 = vmatpush1.msra.mxu0 0.0
    %127 = vmatprep.subr.mxu0 0.0
    %128 = vmatpush1.msra.mxu0 0.0
    %129 = vmatprep.subr.mxu0 0.0
    %130 = vmatpush1.msra.mxu0 0.0
    %131 = vmatprep.subr.mxu0 0.0
    %132 = vmatpush1.msra.mxu0 0.0
    %133 = vmatprep.subr.mxu0 0.0
    %134 = vmatpush1.msra.mxu0 0.0
    %135 = vmatprep.subr.mxu0 0.0
    %136 = vmatpush1.msra.mxu0 0.0
    %137 = vmatprep.subr.mxu0 0.0
    %138 = vmatpush1.msra.mxu0 0.0
    %139 = vmatprep.subr.mxu0 0.0
    %140 = vmatpush1.msra.mxu0 0.0
    %141 = vmatprep.subr.mxu0 0.0
    %142 = vmatpush1.msra.mxu0 0.0
    %143 = vmatprep.subr.mxu0 0.0
    %144 = vmatpush1.msra.mxu0 0.0
    %145 = vmatprep.subr.mxu0 0.0
    %146 = vmatpush1.msra.mxu0 0.0
    %147 = vmatprep.subr.mxu0 0.0
    %148 = vmatpush1.msra.mxu0 0.0
    %149 = vmatprep.subr.mxu0 0.0
    %150 = vmatpush1.msra.mxu0 0.0
    %151 = vmatprep.subr.mxu0 0.0
    %152 = vmatpush1.msra.mxu0 0.0
    %153 = vmatprep.subr.mxu0 0.0
    %154 = vmatpush1.msra.mxu0 0.0
    %155 = vmatprep.subr.mxu0 0.0
    %156 = vmatpush1.msra.mxu0 0.0
    %157 = vmatprep.subr.mxu0 0.0
    %158 = vmatpush1.msra.mxu0 0.0
    %159 = vmatprep.subr.mxu0 0.0
    %160 = vmatpush1.msra.mxu0 0.0
    %161 = vmatprep.subr.mxu0 0.0
    %162 = vmatpush1.msra.mxu0 0.0
    %163 = vmatprep.subr.mxu0 0.0
    %164 = vmatpush1.msra.mxu0 0.0
    %165 = vmatprep.mubr.f32.mxu0 0.0
    %166 = vmatmul.mubr.f32.gmra.mrb[0].mxu0 %v99
    %v167 = vpop.f32.mrb[0].mxu0
    %v168 = vadd.f32 %v95, %v167
    %v169 = vpop.f32.mrb[0].mxu0
    %v170 = vadd.f32 %v95, %v169
    %171 = vdwg.mxu0
    %172 = vmatprep.subr.mxu0 %v89
    %173 = vmatpush1.msra.mxu0 %v88
    %174 = vmatprep.subr.mxu0 0.0
    %175 = vmatpush1.msra.mxu0 0.0
    %176 = vmatprep.subr.mxu0 0.0
    %177 = vmatpush1.msra.mxu0 0.0
    %178 = vmatprep.subr.mxu0 0.0
    %179 = vmatpush1.msra.mxu0 0.0
    %180 = vmatprep.subr.mxu0 0.0
    %181 = vmatpush1.msra.mxu0 0.0
    %182 = vmatprep.subr.mxu0 0.0
    %183 = vmatpush1.msra.mxu0 0.0
    %184 = vmatprep.subr.mxu0 0.0
    %185 = vmatpush1.msra.mxu0 0.0
    %186 = vmatprep.subr.mxu0 0.0
    %187 = vmatpush1.msra.mxu0 0.0
    %188 = vmatprep.subr.mxu0 0.0
    %189 = vmatpush1.msra.mxu0 0.0
    %190 = vmatprep.subr.mxu0 0.0
    %191 = vmatpush1.msra.mxu0 0.0
    %192 = vmatprep.subr.mxu0 0.0
    %193 = vmatpush1.msra.mxu0 0.0
    %194 = vmatprep.subr.mxu0 0.0
    %195 = vmatpush1.msra.mxu0 0.0
    %196 = vmatprep.subr.mxu0 0.0
    %197 = vmatpush1.msra.mxu0 0.0
    %198 = vmatprep.subr.mxu0 0.0
    %199 = vmatpush1.msra.mxu0 0.0
    %200 = vmatprep.subr.mxu0 0.0
    %201 = vmatpush1.msra.mxu0 0.0
    %202 = vmatprep.subr.mxu0 0.0
    %203 = vmatpush1.msra.mxu0 0.0
    %204 = vmatprep.subr.mxu0 0.0
    %205 = vmatpush1.msra.mxu0 0.0
    %206 = vmatprep.subr.mxu0 0.0
    %207 = vmatpush1.msra.mxu0 0.0
    %208 = vmatprep.subr.mxu0 0.0
    %209 = vmatpush1.msra.mxu0 0.0
    %210 = vmatprep.subr.mxu0 0.0
    %211 = vmatpush1.msra.mxu0 0.0
    %212 = vmatprep.subr.mxu0 0.0
    %213 = vmatpush1.msra.mxu0 0.0
    %214 = vmatprep.subr.mxu0 0.0
    %215 = vmatpush1.msra.mxu0 0.0
    %216 = vmatprep.subr.mxu0 0.0
    %217 = vmatpush1.msra.mxu0 0.0
    %218 = vmatprep.subr.mxu0 0.0
    %219 = vmatpush1.msra.mxu0 0.0
    %220 = vmatprep.subr.mxu0 0.0
    %221 = vmatpush1.msra.mxu0 0.0
    %222 = vmatprep.subr.mxu0 0.0
    %223 = vmatpush1.msra.mxu0 0.0
    %224 = vmatprep.subr.mxu0 0.0
    %225 = vmatpush1.msra.mxu0 0.0
    %226 = vmatprep.subr.mxu0 0.0
    %227 = vmatpush1.msra.mxu0 0.0
    %228 = vmatprep.subr.mxu0 0.0
    %229 = vmatpush1.msra.mxu0 0.0
    %230 = vmatprep.subr.mxu0 0.0
    %231 = vmatpush1.msra.mxu0 0.0
    %232 = vmatprep.subr.mxu0 0.0
    %233 = vmatpush1.msra.mxu0 0.0
    %234 = vmatprep.subr.mxu0 0.0
    %235 = vmatpush1.msra.mxu0 0.0
    %236 = vmatprep.mubr.f32.mxu0 0.0
    %237 = vmatmul.mubr.f32.gmra.mrb[0].mxu0 %v99
    %v238 = vpop.f32.mrb[0].mxu0
    %v239 = vadd.f32 %v95, %v238
    %v240 = vpop.f32.mrb[0].mxu0
    %v241 = vadd.f32 %v95, %v240
    %242 = vdwg.mxu0
    %v243 = vmax.f32 %v168, 0.0
    %v244 = vmax.f32 %v170, 0.0
    %v245 = vmax.f32 %v239, 0.0
    %v246 = vmax.f32 %v241, 0.0
    %v247 = vld [vmem:[%s8] sm:$0xf]
    %v248 = vld [vmem:[%s9] sm:$0xf]
    %250 = vset.pattern.permute.xlu0 0
    %251 = vperm.xlu0 %250, %v248
    %v252 = vpop.permute.xlu0 %251
    %vm254 = vcmask 31744
    %v256 = vsel %vm254, %v247, 0
    %vm258 = vcmask 1043456
    %v260 = vsel %vm258, %v243, 0
    %v263 = vsel %vm258, %v244, 0
    %v266 = vsel %vm258, %v245, 0
    %v269 = vsel %vm258, %v246, 0
    %271 = vmatprep.subr.mxu0 %v263
    %272 = vmatpush1.msra.mxu0 %v260
    %273 = vmatprep.subr.mxu0 0.0
    %274 = vmatpush1.msra.mxu0 0.0
    %275 = vmatprep.subr.mxu0 0.0
    %276 = vmatpush1.msra.mxu0 0.0
    %277 = vmatprep.subr.mxu0 0.0
    %278 = vmatpush1.msra.mxu0 0.0
    %279 = vmatprep.subr.mxu0 0.0
    %280 = vmatpush1.msra.mxu0 0.0
    %281 = vmatprep.subr.mxu0 0.0
    %282 = vmatpush1.msra.mxu0 0.0
    %283 = vmatprep.subr.mxu0 0.0
    %284 = vmatpush1.msra.mxu0 0.0
    %285 = vmatprep.subr.mxu0 0.0
    %286 = vmatpush1.msra.mxu0 0.0
    %287 = vmatprep.subr.mxu0 0.0
    %288 = vmatpush1.msra.mxu0 0.0
    %289 = vmatprep.subr.mxu0 0.0
    %290 = vmatpush1.msra.mxu0 0.0
    %291 = vmatprep.subr.mxu0 0.0
    %292 = vmatpush1.msra.mxu0 0.0
    %293 = vmatprep.subr.mxu0 0.0
    %294 = vmatpush1.msra.mxu0 0.0
    %295 = vmatprep.subr.mxu0 0.0
    %296 = vmatpush1.msra.mxu0 0.0
    %297 = vmatprep.subr.mxu0 0.0
    %298 = vmatpush1.msra.mxu0 0.0
    %299 = vmatprep.subr.mxu0 0.0
    %300 = vmatpush1.msra.mxu0 0.0
    %301 = vmatprep.subr.mxu0 0.0
    %302 = vmatpush1.msra.mxu0 0.0
    %303 = vmatprep.subr.mxu0 0.0
    %304 = vmatpush1.msra.mxu0 0.0
    %305 = vmatprep.subr.mxu0 0.0
    %306 = vmatpush1.msra.mxu0 0.0
    %307 = vmatprep.subr.mxu0 0.0
    %308 = vmatpush1.msra.mxu0 0.0
    %309 = vmatprep.subr.mxu0 0.0
    %310 = vmatpush1.msra.mxu0 0.0
    %311 = vmatprep.subr.mxu0 0.0
    %312 = vmatpush1.msra.mxu0 0.0
    %313 = vmatprep.subr.mxu0 0.0
    %314 = vmatpush1.msra.mxu0 0.0
    %315 = vmatprep.subr.mxu0 0.0
    %316 = vmatpush1.msra.mxu0 0.0
    %317 = vmatprep.subr.mxu0 0.0
    %318 = vmatpush1.msra.mxu0 0.0
    %319 = vmatprep.subr.mxu0 0.0
    %320 = vmatpush1.msra.mxu0 0.0
    %321 = vmatprep.subr.mxu0 0.0
    %322 = vmatpush1.msra.mxu0 0.0
    %323 = vmatprep.subr.mxu0 0.0
    %324 = vmatpush1.msra.mxu0 0.0
    %325 = vmatprep.subr.mxu0 0.0
    %326 = vmatpush1.msra.mxu0 0.0
    %327 = vmatprep.subr.mxu0 0.0
    %328 = vmatpush1.msra.mxu0 0.0
    %329 = vmatprep.subr.mxu0 0.0
    %330 = vmatpush1.msra.mxu0 0.0
    %331 = vmatprep.subr.mxu0 0.0
    %332 = vmatpush1.msra.mxu0 0.0
    %333 = vmatprep.subr.mxu0 0.0
    %334 = vmatpush1.msra.mxu0 0.0
    %335 = vmatprep.mubr.f32.mxu0 0.0
    %336 = vmatmul.mubr.f32.gmra.mrb[0].mxu0 %v256
    %v337 = vpop.f32.mrb[0].mxu0
    %v338 = vadd.f32 %v252, %v337
    %v339 = vpop.f32.mrb[0].mxu0
    %v340 = vadd.f32 %v252, %v339
    %341 = vdwg.mxu0
    %342 = vmatprep.subr.mxu0 %v269
    %343 = vmatpush1.msra.mxu0 %v266
    %344 = vmatprep.subr.mxu0 0.0
    %345 = vmatpush1.msra.mxu0 0.0
    %346 = vmatprep.subr.mxu0 0.0
    %347 = vmatpush1.msra.mxu0 0.0
    %348 = vmatprep.subr.mxu0 0.0
    %349 = vmatpush1.msra.mxu0 0.0
    %350 = vmatprep.subr.mxu0 0.0
    %351 = vmatpush1.msra.mxu0 0.0
    %352 = vmatprep.subr.mxu0 0.0
    %353 = vmatpush1.msra.mxu0 0.0
    %354 = vmatprep.subr.mxu0 0.0
    %355 = vmatpush1.msra.mxu0 0.0
    %356 = vmatprep.subr.mxu0 0.0
    %357 = vmatpush1.msra.mxu0 0.0
    %358 = vmatprep.subr.mxu0 0.0
    %359 = vmatpush1.msra.mxu0 0.0
    %360 = vmatprep.subr.mxu0 0.0
    %361 = vmatpush1.msra.mxu0 0.0
    %362 = vmatprep.subr.mxu0 0.0
    %363 = vmatpush1.msra.mxu0 0.0
    %364 = vmatprep.subr.mxu0 0.0
    %365 = vmatpush1.msra.mxu0 0.0
    %366 = vmatprep.subr.mxu0 0.0
    %367 = vmatpush1.msra.mxu0 0.0
    %368 = vmatprep.subr.mxu0 0.0
    %369 = vmatpush1.msra.mxu0 0.0
    %370 = vmatprep.subr.mxu0 0.0
    %371 = vmatpush1.msra.mxu0 0.0
    %372 = vmatprep.subr.mxu0 0.0
    %373 = vmatpush1.msra.mxu0 0.0
    %374 = vmatprep.subr.mxu0 0.0
    %375 = vmatpush1.msra.mxu0 0.0
    %376 = vmatprep.subr.mxu0 0.0
    %377 = vmatpush1.msra.mxu0 0.0
    %378 = vmatprep.subr.mxu0 0.0
    %379 = vmatpush1.msra.mxu0 0.0
    %380 = vmatprep.subr.mxu0 0.0
    %381 = vmatpush1.msra.mxu0 0.0
    %382 = vmatprep.subr.mxu0 0.0
    %383 = vmatpush1.msra.mxu0 0.0
    %384 = vmatprep.subr.mxu0 0.0
    %385 = vmatpush1.msra.mxu0 0.0
    %386 = vmatprep.subr.mxu0 0.0
    %387 = vmatpush1.msra.mxu0 0.0
    %388 = vmatprep.subr.mxu0 0.0
    %389 = vmatpush1.msra.mxu0 0.0
    %390 = vmatprep.subr.mxu0 0.0
    %391 = vmatpush1.msra.mxu0 0.0
    %392 = vmatprep.subr.mxu0 0.0
    %393 = vmatpush1.msra.mxu0 0.0
    %394 = vmatprep.subr.mxu0 0.0
    %395 = vmatpush1.msra.mxu0 0.0
    %396 = vmatprep.subr.mxu0 0.0
    %397 = vmatpush1.msra.mxu0 0.0
    %398 = vmatprep.subr.mxu0 0.0
    %399 = vmatpush1.msra.mxu0 0.0
    %400 = vmatprep.subr.mxu0 0.0
    %401 = vmatpush1.msra.mxu0 0.0
    %402 = vmatprep.subr.mxu0 0.0
    %403 = vmatpush1.msra.mxu0 0.0
    %404 = vmatprep.subr.mxu0 0.0
    %405 = vmatpush1.msra.mxu0 0.0
    %406 = vmatprep.mubr.f32.mxu0 0.0
    %407 = vmatmul.mubr.f32.gmra.mrb[0].mxu0 %v256
    %v408 = vpop.f32.mrb[0].mxu0
    %v409 = vadd.f32 %v252, %v408
    %v410 = vpop.f32.mrb[0].mxu0
    %v411 = vadd.f32 %v252, %v410
    %412 = vdwg.mxu0
    %vm413 = vcmask 138240
    %414 = vst.msk [vmem:[#allocation2] sm:$0xff] %vm413, 0.0
    %vm415 = vcmask 416904
    %416 = vst.msk [vmem:[#allocation2 + $0x10] sm:$0xff] %vm415, 0.0
    %vm417 = vcmask 556440
    %418 = vst.msk [vmem:[#allocation2 + $0x20] sm:$0xff] %vm417, 0.0
    %v419 = vld [vmem:[#allocation7] sm:$0xff]
    %v420 = vld [vmem:[#allocation7 + $0x8] sm:$0xff]
    %v421 = vld [vmem:[#allocation7 + $0x10] sm:$0xff]
    %v422 = vld [vmem:[#allocation7 + $0x18] sm:$0xff]
    %v423 = vld [vmem:[#allocation7 + $0x20] sm:$0xff]
    %v424 = vld [vmem:[#allocation7 + $0x28] sm:$0xff]
    %v425 = vld [vmem:[#allocation7 + $0x30] sm:$0xff]
    %v426 = vld [vmem:[#allocation7 + $0x38] sm:$0xff]
    %v427 = vld [vmem:[#allocation7 + $0x40] sm:$0xff]
    %v428 = vld [vmem:[#allocation7 + $0x48] sm:$0xff]
    %v429 = vld [vmem:[#allocation7 + $0x50] sm:$0xff]
    %v430 = vld [vmem:[#allocation7 + $0x58] sm:$0xff]
    %v431 = vld [vmem:[#allocation7 + $0x60] sm:$0xff]
    %v432 = vld [vmem:[#allocation7 + $0x68] sm:$0xff]
    %v433 = vld [vmem:[#allocation7 + $0x70] sm:$0xff]
    %v434 = vld [vmem:[#allocation7 + $0x78] sm:$0xff]
    %v435 = vsel %vm258, %v338, 0.0
    %v436 = vsel %vm258, %v340, 0.0
    %v437 = vadd.f32 %v435, %v436
    %438 = vadd.xlane.f32.xlu0 %v437
    %v439 = vpop.xlane.xlu0 %438
    %v440 = vrcp.pop 256.0
    %v441 = vmul.f32 %v439, %v440
    %vm442 = vcmask 3072
    %443 = vst.msk [vmem:[%s17] sm:$0xf] %vm442, %v441
    %446 = vrot.lane.b32.xlu0 %v338, 17
    %v447 = vpop.permute.xlu0 %446
    %448 = vrot.lane.b32.xlu0 %v340, 17
    %v449 = vpop.permute.xlu0 %448
    %v450 = vsel %vm413, %v447, %v449
    %vm454 = vcmask 1043592
    %455 = vst.msk [vmem:[#allocation2] sm:$0xf] %vm454, %v447
    %456 = vst [vmem:[#allocation2 + $0x8] sm:$0xf] %v450
    %vm457 = vcmask 134144
    %458 = vst.msk [vmem:[#allocation2 + $0x10] sm:$0xf] %vm457, %v449
    %v459 = vld [vmem:[#allocation4] sm:$0x3]
    %v460 = vunpack.c.l.bf16 %v459
    %vm461 = vcmask 523264
    %v463 = vsel %vm461, %v460, 0
    %465 = vmatprep.subr.mxu0 %v420
    %466 = vmatpush1.msra.mxu0 %v419
    %467 = vmatprep.subr.mxu0 %v422
    %468 = vmatpush1.msra.mxu0 %v421
    %469 = vmatprep.subr.mxu0 %v424
    %470 = vmatpush1.msra.mxu0 %v423
    %471 = vmatprep.subr.mxu0 %v426
    %472 = vmatpush1.msra.mxu0 %v425
    %473 = vmatprep.subr.mxu0 %v428
    %474 = vmatpush1.msra.mxu0 %v427
    %475 = vmatprep.subr.mxu0 %v430
    %476 = vmatpush1.msra.mxu0 %v429
    %477 = vmatprep.subr.mxu0 %v432
    %478 = vmatpush1.msra.mxu0 %v431
    %479 = vmatprep.subr.mxu0 %v434
    %480 = vmatpush1.msra.mxu0 %v433
    %481 = vmatprep.subr.mxu0 0.0
    %482 = vmatpush1.msra.mxu0 0.0
    %483 = vmatprep.subr.mxu0 0.0
    %484 = vmatpush1.msra.mxu0 0.0
    %485 = vmatprep.subr.mxu0 0.0
    %486 = vmatpush1.msra.mxu0 0.0
    %487 = vmatprep.subr.mxu0 0.0
    %488 = vmatpush1.msra.mxu0 0.0
    %489 = vmatprep.subr.mxu0 0.0
    %490 = vmatpush1.msra.mxu0 0.0
    %491 = vmatprep.subr.mxu0 0.0
    %492 = vmatpush1.msra.mxu0 0.0
    %493 = vmatprep.subr.mxu0 0.0
    %494 = vmatpush1.msra.mxu0 0.0
    %495 = vmatprep.subr.mxu0 0.0
    %496 = vmatpush1.msra.mxu0 0.0
    %497 = vmatprep.subr.mxu0 0.0
    %498 = vmatpush1.msra.mxu0 0.0
    %499 = vmatprep.subr.mxu0 0.0
    %500 = vmatpush1.msra.mxu0 0.0
    %501 = vmatprep.subr.mxu0 0.0
    %502 = vmatpush1.msra.mxu0 0.0
    %503 = vmatprep.subr.mxu0 0.0
    %504 = vmatpush1.msra.mxu0 0.0
    %505 = vmatprep.subr.mxu0 0.0
    %506 = vmatpush1.msra.mxu0 0.0
    %507 = vmatprep.subr.mxu0 0.0
    %508 = vmatpush1.msra.mxu0 0.0
    %509 = vmatprep.subr.mxu0 0.0
    %510 = vmatpush1.msra.mxu0 0.0
    %511 = vmatprep.subr.mxu0 0.0
    %512 = vmatpush1.msra.mxu0 0.0
    %513 = vmatprep.subr.mxu0 0.0
    %514 = vmatpush1.msra.mxu0 0.0
    %515 = vmatprep.subr.mxu0 0.0
    %516 = vmatpush1.msra.mxu0 0.0
    %517 = vmatprep.subr.mxu0 0.0
    %518 = vmatpush1.msra.mxu0 0.0
    %519 = vmatprep.subr.mxu0 0.0
    %520 = vmatpush1.msra.mxu0 0.0
    %521 = vmatprep.subr.mxu0 0.0
    %522 = vmatpush1.msra.mxu0 0.0
    %523 = vmatprep.subr.mxu0 0.0
    %524 = vmatpush1.msra.mxu0 0.0
    %525 = vmatprep.subr.mxu0 0.0
    %526 = vmatpush1.msra.mxu0 0.0
    %527 = vmatprep.subr.mxu0 0.0
    %528 = vmatpush1.msra.mxu0 0.0
    %529 = vmatprep.mubr.f32.mxu0 0.0
    %530 = vmatmul.mubr.f32.gmra.mrb[0].mxu0 %v463
    %v531 = vpop.f32.mrb[0].mxu0
    %v532 = vadd.f32 0.0, %v531
    %v533 = vpop.f32.mrb[0].mxu0
    %v534 = vadd.f32 0.0, %v533
    %535 = vdwg.mxu0
    %v538 = vrot.slane %v532, 4
    %v539 = vrot.slane %v534, 4
    %540 = vrot.lane.b32.xlu0 %v538, 17
    %v541 = vpop.permute.xlu0 %540
    %542 = vrot.lane.b32.xlu0 %v539, 17
    %v543 = vpop.permute.xlu0 %542
    %v544 = vsel %vm413, %v541, %v543
    %vm548 = vcmask 1047692
    %549 = vst.msk [vmem:[#allocation2] sm:$0xf0] %vm548, %v541
    %550 = vst [vmem:[#allocation2 + $0x8] sm:$0xf0] %v544
    %vm551 = vcmask 138244
    %552 = vst.msk [vmem:[#allocation2 + $0x10] sm:$0xf0] %vm551, %v543
    %v553 = vsel %vm258, %v409, 0.0
    %v554 = vsel %vm258, %v411, 0.0
    %v555 = vadd.f32 %v553, %v554
    %556 = vadd.xlane.f32.xlu0 %v555
    %v557 = vpop.xlane.xlu0 %556
    %v558 = vmul.f32 %v557, %v440
    %s559 = scalar_lea.vmem %s17, 4
    %560 = vst.msk [vmem:[%s559] sm:$0xf] %vm442, %v558
    %563 = vrot.lane.b32.xlu0 %v409, 51
    %v564 = vpop.permute.xlu0 %563
    %565 = vrot.lane.b32.xlu0 %v411, 51
    %v566 = vpop.permute.xlu0 %565
    %vm567 = vcmask 416768
    %v568 = vsel %vm567, %v564, %v566
    %vm572 = vcmask 1043864
    %573 = vst.msk [vmem:[#allocation2 + $0x10] sm:$0xf] %vm572, %v564
    %574 = vst [vmem:[#allocation2 + $0x18] sm:$0xf] %v568
    %vm575 = vcmask 412672
    %576 = vst.msk [vmem:[#allocation2 + $0x20] sm:$0xf] %vm575, %v566
    %s577 = scalar_lea.vmem [#allocation4], 2
    %v578 = vld [vmem:[%s577] sm:$0x3]
    %v579 = vunpack.c.l.bf16 %v578
    %v581 = vsel %vm461, %v579, 0
    %583 = vmatprep.subr.mxu0 %v420
    %584 = vmatpush1.msra.mxu0 %v419
    %585 = vmatprep.subr.mxu0 %v422
    %586 = vmatpush1.msra.mxu0 %v421
    %587 = vmatprep.subr.mxu0 %v424
    %588 = vmatpush1.msra.mxu0 %v423
    %589 = vmatprep.subr.mxu0 %v426
    %590 = vmatpush1.msra.mxu0 %v425
    %591 = vmatprep.subr.mxu0 %v428
    %592 = vmatpush1.msra.mxu0 %v427
    %593 = vmatprep.subr.mxu0 %v430
    %594 = vmatpush1.msra.mxu0 %v429
    %595 = vmatprep.subr.mxu0 %v432
    %596 = vmatpush1.msra.mxu0 %v431
    %597 = vmatprep.subr.mxu0 %v434
    %598 = vmatpush1.msra.mxu0 %v433
    %599 = vmatprep.subr.mxu0 0.0
    %600 = vmatpush1.msra.mxu0 0.0
    %601 = vmatprep.subr.mxu0 0.0
    %602 = vmatpush1.msra.mxu0 0.0
    %603 = vmatprep.subr.mxu0 0.0
    %604 = vmatpush1.msra.mxu0 0.0
    %605 = vmatprep.subr.mxu0 0.0
    %606 = vmatpush1.msra.mxu0 0.0
    %607 = vmatprep.subr.mxu0 0.0
    %608 = vmatpush1.msra.mxu0 0.0
    %609 = vmatprep.subr.mxu0 0.0
    %610 = vmatpush1.msra.mxu0 0.0
    %611 = vmatprep.subr.mxu0 0.0
    %612 = vmatpush1.msra.mxu0 0.0
    %613 = vmatprep.subr.mxu0 0.0
    %614 = vmatpush1.msra.mxu0 0.0
    %615 = vmatprep.subr.mxu0 0.0
    %616 = vmatpush1.msra.mxu0 0.0
    %617 = vmatprep.subr.mxu0 0.0
    %618 = vmatpush1.msra.mxu0 0.0
    %619 = vmatprep.subr.mxu0 0.0
    %620 = vmatpush1.msra.mxu0 0.0
    %621 = vmatprep.subr.mxu0 0.0
    %622 = vmatpush1.msra.mxu0 0.0
    %623 = vmatprep.subr.mxu0 0.0
    %624 = vmatpush1.msra.mxu0 0.0
    %625 = vmatprep.subr.mxu0 0.0
    %626 = vmatpush1.msra.mxu0 0.0
    %627 = vmatprep.subr.mxu0 0.0
    %628 = vmatpush1.msra.mxu0 0.0
    %629 = vmatprep.subr.mxu0 0.0
    %630 = vmatpush1.msra.mxu0 0.0
    %631 = vmatprep.subr.mxu0 0.0
    %632 = vmatpush1.msra.mxu0 0.0
    %633 = vmatprep.subr.mxu0 0.0
    %634 = vmatpush1.msra.mxu0 0.0
    %635 = vmatprep.subr.mxu0 0.0
    %636 = vmatpush1.msra.mxu0 0.0
    %637 = vmatprep.subr.mxu0 0.0
    %638 = vmatpush1.msra.mxu0 0.0
    %639 = vmatprep.subr.mxu0 0.0
    %640 = vmatpush1.msra.mxu0 0.0
    %641 = vmatprep.subr.mxu0 0.0
    %642 = vmatpush1.msra.mxu0 0.0
    %643 = vmatprep.subr.mxu0 0.0
    %644 = vmatpush1.msra.mxu0 0.0
    %645 = vmatprep.subr.mxu0 0.0
    %646 = vmatpush1.msra.mxu0 0.0
    %647 = vmatprep.mubr.f32.mxu0 0.0
    %648 = vmatmul.mubr.f32.gmra.mrb[0].mxu0 %v581
    %v649 = vpop.f32.mrb[0].mxu0
    %v650 = vadd.f32 0.0, %v649
    %v651 = vpop.f32.mrb[0].mxu0
    %v652 = vadd.f32 0.0, %v651
    %653 = vdwg.mxu0
    %v656 = vrot.slane %v650, 4
    %v657 = vrot.slane %v652, 4
    %658 = vrot.lane.b32.xlu0 %v656, 51
    %v659 = vpop.permute.xlu0 %658
    %660 = vrot.lane.b32.xlu0 %v657, 51
    %v661 = vpop.permute.xlu0 %660
    %v662 = vsel %vm567, %v659, %v661
    %vm666 = vcmask 1047964
    %667 = vst.msk [vmem:[#allocation2 + $0x10] sm:$0xf0] %vm666, %v659
    %668 = vst [vmem:[#allocation2 + $0x18] sm:$0xf0] %v662
    %vm669 = vcmask 416772
    %670 = vst.msk [vmem:[#allocation2 + $0x20] sm:$0xf0] %vm669, %v661
    %v671 = vld [vmem:[%s3] sm:$0x1f]
    %v673 = vlaneseq
    %v674 = vshrl.u32 %v673, 7
    %v675 = vsub.s32 0, %v674
    %v676 = vrot.slane %v671, %v675
    %v677 = vlaneseq
    %v678 = vshrl.u32 %v677, 7
    %v679 = vsub.s32 1, %v678
    %v680 = vrot.slane %v671, %v679
    %v681 = vlaneseq
    %v682 = vshrl.u32 %v681, 7
    %v683 = vsub.s32 2, %v682
    %v684 = vrot.slane %v671, %v683
    %v685 = vlaneseq
    %v686 = vshrl.u32 %v685, 7
    %v687 = vsub.s32 3, %v686
    %v688 = vrot.slane %v671, %v687
    %v689 = vlaneseq
    %v690 = vshrl.u32 %v689, 7
    %v691 = vsub.s32 4, %v690
    %v692 = vrot.slane %v671, %v691
    %v698 = vld [vmem:[%s4] sm:$0x1f]
    %v700 = vlaneseq
    %v701 = vshrl.u32 %v700, 7
    %v702 = vsub.s32 0, %v701
    %v703 = vrot.slane %v698, %v702
    %v704 = vlaneseq
    %v705 = vshrl.u32 %v704, 7
    %v706 = vsub.s32 1, %v705
    %v707 = vrot.slane %v698, %v706
    %v708 = vlaneseq
    %v709 = vshrl.u32 %v708, 7
    %v710 = vsub.s32 2, %v709
    %v711 = vrot.slane %v698, %v710
    %v712 = vlaneseq
    %v713 = vshrl.u32 %v712, 7
    %v714 = vsub.s32 3, %v713
    %v715 = vrot.slane %v698, %v714
    %v716 = vlaneseq
    %v717 = vshrl.u32 %v716, 7
    %v718 = vsub.s32 4, %v717
    %v719 = vrot.slane %v698, %v718
    %v720 = vld [vmem:[%s5] sm:$0x1f]
    %v722 = vlaneseq
    %v723 = vshrl.u32 %v722, 7
    %v724 = vsub.s32 0, %v723
    %v725 = vrot.slane %v720, %v724
    %v726 = vlaneseq
    %v727 = vshrl.u32 %v726, 7
    %v728 = vsub.s32 1, %v727
    %v729 = vrot.slane %v720, %v728
    %v730 = vlaneseq
    %v731 = vshrl.u32 %v730, 7
    %v732 = vsub.s32 2, %v731
    %v733 = vrot.slane %v720, %v732
    %v734 = vlaneseq
    %v735 = vshrl.u32 %v734, 7
    %v736 = vsub.s32 3, %v735
    %v737 = vrot.slane %v720, %v736
    %v738 = vlaneseq
    %v739 = vshrl.u32 %v738, 7
    %v740 = vsub.s32 4, %v739
    %v741 = vrot.slane %v720, %v740
    %v747 = vld [vmem:[#allocation2] sm:$0xff]
    %v748 = vld [vmem:[#allocation2 + $0x8] sm:$0xff]
    %v749 = vld [vmem:[#allocation2 + $0x10] sm:$0xff]
    %v750 = vld [vmem:[#allocation2 + $0x18] sm:$0xff]
    %v751 = vld [vmem:[#allocation2 + $0x20] sm:$0xff]
    %v752 = vmul.f32 %v747, %v676
    %v753 = vmul.f32 %v748, %v680
    %v754 = vmul.f32 %v749, %v684
    %v755 = vmul.f32 %v750, %v688
    %v756 = vmul.f32 %v751, %v692
    %757 = vst [vmem:[#allocation3] sm:$0xff] %v752
    %758 = vst [vmem:[#allocation3 + $0x8] sm:$0xff] %v753
    %759 = vst [vmem:[#allocation3 + $0x10] sm:$0xff] %v754
    %760 = vst [vmem:[#allocation3 + $0x18] sm:$0xff] %v755
    %vm761 = vcmask 277504
    %762 = vst.msk [vmem:[#allocation3 + $0x20] sm:$0xff] %vm761, %v756
    %v763 = vld [vmem:[#allocation2] sm:$0xff]
    %v764 = vld [vmem:[#allocation2 + $0x8] sm:$0xff]
    %v765 = vld [vmem:[#allocation2 + $0x10] sm:$0xff]
    %v766 = vld [vmem:[#allocation2 + $0x18] sm:$0xff]
    %v767 = vld [vmem:[#allocation2 + $0x20] sm:$0xff]
    %773 = vrot.lane.b32.xlu0 %v763, 127
    %v774 = vpop.permute.xlu0 %773
    %775 = vrot.lane.b32.xlu0 %v764, 127
    %v776 = vpop.permute.xlu0 %775
    %777 = vrot.lane.b32.xlu0 %v765, 127
    %v778 = vpop.permute.xlu0 %777
    %779 = vrot.lane.b32.xlu0 %v766, 127
    %v780 = vpop.permute.xlu0 %779
    %781 = vrot.lane.b32.xlu0 %v767, 127
    %v782 = vpop.permute.xlu0 %781
    %vm783 = vcmask 1039360
    %v784 = vsel %vm783, %v774, %v776
    %v785 = vsel %vm783, %v776, %v778
    %v786 = vsel %vm783, %v778, %v780
    %v787 = vsel %vm783, %v780, %v782
    %793 = vst [vmem:[#allocation3 + $0x28] sm:$0xff] %v784
    %794 = vst [vmem:[#allocation3 + $0x30] sm:$0xff] %v785
    %795 = vst [vmem:[#allocation3 + $0x38] sm:$0xff] %v786
    %796 = vst [vmem:[#allocation3 + $0x40] sm:$0xff] %v787
    %797 = vst.msk [vmem:[#allocation3 + $0x48] sm:$0xff] %vm761, %v782
    %v798 = vld [vmem:[#allocation2] sm:$0xff]
    %v799 = vld [vmem:[#allocation2 + $0x8] sm:$0xff]
    %v800 = vld [vmem:[#allocation2 + $0x10] sm:$0xff]
    %v801 = vld [vmem:[#allocation2 + $0x18] sm:$0xff]
    %v802 = vld [vmem:[#allocation2 + $0x20] sm:$0xff]
    %803 = vrot.lane.b32.xlu0 %v703, 2
    %v804 = vpop.permute.xlu0 %803
    %805 = vrot.lane.b32.xlu0 %v707, 2
    %v806 = vpop.permute.xlu0 %805
    %807 = vrot.lane.b32.xlu0 %v711, 2
    %v808 = vpop.permute.xlu0 %807
    %809 = vrot.lane.b32.xlu0 %v715, 2
    %v810 = vpop.permute.xlu0 %809
    %811 = vrot.lane.b32.xlu0 %v719, 2
    %v812 = vpop.permute.xlu0 %811
    %vm813 = vcmask 15360
    %v814 = vsel %vm813, %v804, %v806
    %v815 = vsel %vm813, %v806, %v808
    %v816 = vsel %vm813, %v808, %v810
    %v817 = vsel %vm813, %v810, %v812
    %v823 = vmul.f32 %v798, %v804
    %v824 = vmul.f32 %v799, %v814
    %v825 = vmul.f32 %v800, %v815
    %v826 = vmul.f32 %v801, %v816
    %v827 = vmul.f32 %v802, %v817
    %833 = vrot.lane.b32.xlu0 %v823, 126
    %v834 = vpop.permute.xlu0 %833
    %835 = vrot.lane.b32.xlu0 %v824, 126
    %v836 = vpop.permute.xlu0 %835
    %837 = vrot.lane.b32.xlu0 %v825, 126
    %v838 = vpop.permute.xlu0 %837
    %839 = vrot.lane.b32.xlu0 %v826, 126
    %v840 = vpop.permute.xlu0 %839
    %841 = vrot.lane.b32.xlu0 %v827, 126
    %v842 = vpop.permute.xlu0 %841
    %vm843 = vcmask 1031168
    %v844 = vsel %vm843, %v834, %v836
    %v845 = vsel %vm843, %v836, %v838
    %v846 = vsel %vm843, %v838, %v840
    %v847 = vsel %vm843, %v840, %v842
    %853 = vst [vmem:[#allocation3 + $0x50] sm:$0xff] %v844
    %854 = vst [vmem:[#allocation3 + $0x58] sm:$0xff] %v845
    %855 = vst [vmem:[#allocation3 + $0x60] sm:$0xff] %v846
    %856 = vst [vmem:[#allocation3 + $0x68] sm:$0xff] %v847
    %857 = vst.msk [vmem:[#allocation3 + $0x70] sm:$0xff] %vm761, %v842
    %v858 = vld [vmem:[#allocation2] sm:$0xff]
    %v859 = vld [vmem:[#allocation2 + $0x8] sm:$0xff]
    %v860 = vld [vmem:[#allocation2 + $0x10] sm:$0xff]
    %v861 = vld [vmem:[#allocation2 + $0x18] sm:$0xff]
    %v862 = vld [vmem:[#allocation2 + $0x20] sm:$0xff]
    %863 = vrot.lane.b32.xlu0 %v676, 16
    %v864 = vpop.permute.xlu0 %863
    %865 = vrot.lane.b32.xlu0 %v680, 16
    %v866 = vpop.permute.xlu0 %865
    %867 = vrot.lane.b32.xlu0 %v684, 16
    %v868 = vpop.permute.xlu0 %867
    %869 = vrot.lane.b32.xlu0 %v688, 16
    %v870 = vpop.permute.xlu0 %869
    %871 = vrot.lane.b32.xlu0 %v692, 16
    %v872 = vpop.permute.xlu0 %871
    %vm873 = vcmask 130048
    %v874 = vsel %vm873, %v864, %v866
    %v875 = vsel %vm873, %v866, %v868
    %v876 = vsel %vm873, %v868, %v870
    %v877 = vsel %vm873, %v870, %v872
    %v883 = vmul.f32 %v858, %v864
    %v884 = vmul.f32 %v859, %v874
    %v885 = vmul.f32 %v860, %v875
    %v886 = vmul.f32 %v861, %v876
    %v887 = vmul.f32 %v862, %v877
    %893 = vrot.lane.b32.xlu0 %v883, 112
    %v894 = vpop.permute.xlu0 %893
    %895 = vrot.lane.b32.xlu0 %v884, 112
    %v896 = vpop.permute.xlu0 %895
    %897 = vrot.lane.b32.xlu0 %v885, 112
    %v898 = vpop.permute.xlu0 %897
    %899 = vrot.lane.b32.xlu0 %v886, 112
    %v900 = vpop.permute.xlu0 %899
    %901 = vrot.lane.b32.xlu0 %v887, 112
    %v902 = vpop.permute.xlu0 %901
    %vm903 = vcmask 916480
    %v904 = vsel %vm903, %v894, %v896
    %v905 = vsel %vm903, %v896, %v898
    %v906 = vsel %vm903, %v898, %v900
    %v907 = vsel %vm903, %v900, %v902
    %913 = vst [vmem:[#allocation3 + $0x78] sm:$0xff] %v904
    %914 = vst [vmem:[#allocation3 + $0x80] sm:$0xff] %v905
    %915 = vst [vmem:[#allocation3 + $0x88] sm:$0xff] %v906
    %916 = vst [vmem:[#allocation3 + $0x90] sm:$0xff] %v907
    %917 = vst.msk [vmem:[#allocation3 + $0x98] sm:$0xff] %vm761, %v902
    %v918 = vld [vmem:[#allocation2] sm:$0xff]
    %v919 = vld [vmem:[#allocation2 + $0x8] sm:$0xff]
    %v920 = vld [vmem:[#allocation2 + $0x10] sm:$0xff]
    %v921 = vld [vmem:[#allocation2 + $0x18] sm:$0xff]
    %v922 = vld [vmem:[#allocation2 + $0x20] sm:$0xff]
    %928 = vrot.lane.b32.xlu0 %v918, 111
    %v929 = vpop.permute.xlu0 %928
    %930 = vrot.lane.b32.xlu0 %v919, 111
    %v931 = vpop.permute.xlu0 %930
    %932 = vrot.lane.b32.xlu0 %v920, 111
    %v933 = vpop.permute.xlu0 %932
    %934 = vrot.lane.b32.xlu0 %v921, 111
    %v935 = vpop.permute.xlu0 %934
    %936 = vrot.lane.b32.xlu0 %v922, 111
    %v937 = vpop.permute.xlu0 %936
    %vm938 = vcmask 908288
    %v939 = vsel %vm938, %v929, %v931
    %v940 = vsel %vm938, %v931, %v933
    %v941 = vsel %vm938, %v933, %v935
    %v942 = vsel %vm938, %v935, %v937
    %948 = vst [vmem:[#allocation3 + $0xa0] sm:$0xff] %v939
    %949 = vst [vmem:[#allocation3 + $0xa8] sm:$0xff] %v940
    %950 = vst [vmem:[#allocation3 + $0xb0] sm:$0xff] %v941
    %951 = vst [vmem:[#allocation3 + $0xb8] sm:$0xff] %v942
    %952 = vst.msk [vmem:[#allocation3 + $0xc0] sm:$0xff] %vm761, %v937
    %v953 = vld [vmem:[#allocation2] sm:$0xff]
    %v954 = vld [vmem:[#allocation2 + $0x8] sm:$0xff]
    %v955 = vld [vmem:[#allocation2 + $0x10] sm:$0xff]
    %v956 = vld [vmem:[#allocation2 + $0x18] sm:$0xff]
    %v957 = vld [vmem:[#allocation2 + $0x20] sm:$0xff]
    %958 = vrot.lane.b32.xlu0 %v703, 18
    %v959 = vpop.permute.xlu0 %958
    %960 = vrot.lane.b32.xlu0 %v707, 18
    %v961 = vpop.permute.xlu0 %960
    %962 = vrot.lane.b32.xlu0 %v711, 18
    %v963 = vpop.permute.xlu0 %962
    %964 = vrot.lane.b32.xlu0 %v715, 18
    %v965 = vpop.permute.xlu0 %964
    %966 = vrot.lane.b32.xlu0 %v719, 18
    %v967 = vpop.permute.xlu0 %966
    %vm968 = vcmask 146432
    %v969 = vsel %vm968, %v959, %v961
    %v970 = vsel %vm968, %v961, %v963
    %v971 = vsel %vm968, %v963, %v965
    %v972 = vsel %vm968, %v965, %v967
    %v978 = vmul.f32 %v953, %v959
    %v979 = vmul.f32 %v954, %v969
    %v980 = vmul.f32 %v955, %v970
    %v981 = vmul.f32 %v956, %v971
    %v982 = vmul.f32 %v957, %v972
    %988 = vrot.lane.b32.xlu0 %v978, 110
    %v989 = vpop.permute.xlu0 %988
    %990 = vrot.lane.b32.xlu0 %v979, 110
    %v991 = vpop.permute.xlu0 %990
    %992 = vrot.lane.b32.xlu0 %v980, 110
    %v993 = vpop.permute.xlu0 %992
    %994 = vrot.lane.b32.xlu0 %v981, 110
    %v995 = vpop.permute.xlu0 %994
    %996 = vrot.lane.b32.xlu0 %v982, 110
    %v997 = vpop.permute.xlu0 %996
    %vm998 = vcmask 900096
    %v999 = vsel %vm998, %v989, %v991
    %v1000 = vsel %vm998, %v991, %v993
    %v1001 = vsel %vm998, %v993, %v995
    %v1002 = vsel %vm998, %v995, %v997
    %1008 = vst [vmem:[#allocation3 + $0xc8] sm:$0xff] %v999
    %1009 = vst [vmem:[#allocation3 + $0xd0] sm:$0xff] %v1000
    %1010 = vst [vmem:[#allocation3 + $0xd8] sm:$0xff] %v1001
    %1011 = vst [vmem:[#allocation3 + $0xe0] sm:$0xff] %v1002
    %1012 = vst.msk [vmem:[#allocation3 + $0xe8] sm:$0xff] %vm761, %v997
    %v1013 = vld [vmem:[#allocation2] sm:$0xff]
    %v1014 = vld [vmem:[#allocation2 + $0x8] sm:$0xff]
    %v1015 = vld [vmem:[#allocation2 + $0x10] sm:$0xff]
    %v1016 = vld [vmem:[#allocation2 + $0x18] sm:$0xff]
    %v1017 = vld [vmem:[#allocation2 + $0x20] sm:$0xff]
    %1018 = vrot.lane.b32.xlu0 %v676, 32
    %v1019 = vpop.permute.xlu0 %1018
    %1020 = vrot.lane.b32.xlu0 %v680, 32
    %v1021 = vpop.permute.xlu0 %1020
    %1022 = vrot.lane.b32.xlu0 %v684, 32
    %v1023 = vpop.permute.xlu0 %1022
    %1024 = vrot.lane.b32.xlu0 %v688, 32
    %v1025 = vpop.permute.xlu0 %1024
    %1026 = vrot.lane.b32.xlu0 %v692, 32
    %v1027 = vpop.permute.xlu0 %1026
    %vm1028 = vcmask 261120
    %v1029 = vsel %vm1028, %v1019, %v1021
    %v1030 = vsel %vm1028, %v1021, %v1023
    %v1031 = vsel %vm1028, %v1023, %v1025
    %v1032 = vsel %vm1028, %v1025, %v1027
    %v1038 = vmul.f32 %v1013, %v1019
    %v1039 = vmul.f32 %v1014, %v1029
    %v1040 = vmul.f32 %v1015, %v1030
    %v1041 = vmul.f32 %v1016, %v1031
    %v1042 = vmul.f32 %v1017, %v1032
    %1048 = vrot.lane.b32.xlu0 %v1038, 96
    %v1049 = vpop.permute.xlu0 %1048
    %1050 = vrot.lane.b32.xlu0 %v1039, 96
    %v1051 = vpop.permute.xlu0 %1050
    %1052 = vrot.lane.b32.xlu0 %v1040, 96
    %v1053 = vpop.permute.xlu0 %1052
    %1054 = vrot.lane.b32.xlu0 %v1041, 96
    %v1055 = vpop.permute.xlu0 %1054
    %1056 = vrot.lane.b32.xlu0 %v1042, 96
    %v1057 = vpop.permute.xlu0 %1056
    %vm1058 = vcmask 785408
    %v1059 = vsel %vm1058, %v1049, %v1051
    %v1060 = vsel %vm1058, %v1051, %v1053
    %v1061 = vsel %vm1058, %v1053, %v1055
    %v1062 = vsel %vm1058, %v1055, %v1057
    %1068 = vst [vmem:[#allocation3 + $0xf0] sm:$0xff] %v1059
    %1069 = vst [vmem:[#allocation3 + $0xf8] sm:$0xff] %v1060
    %1070 = vst [vmem:[#allocation3 + $0x100] sm:$0xff] %v1061
    %1071 = vst [vmem:[#allocation3 + $0x108] sm:$0xff] %v1062
    %1072 = vst.msk [vmem:[#allocation3 + $0x110] sm:$0xff] %vm761, %v1057
    %v1073 = vld [vmem:[#allocation2] sm:$0xff]
    %v1074 = vld [vmem:[#allocation2 + $0x8] sm:$0xff]
    %v1075 = vld [vmem:[#allocation2 + $0x10] sm:$0xff]
    %v1076 = vld [vmem:[#allocation2 + $0x18] sm:$0xff]
    %v1077 = vld [vmem:[#allocation2 + $0x20] sm:$0xff]
    %1083 = vrot.lane.b32.xlu0 %v1073, 95
    %v1084 = vpop.permute.xlu0 %1083
    %1085 = vrot.lane.b32.xlu0 %v1074, 95
    %v1086 = vpop.permute.xlu0 %1085
    %1087 = vrot.lane.b32.xlu0 %v1075, 95
    %v1088 = vpop.permute.xlu0 %1087
    %1089 = vrot.lane.b32.xlu0 %v1076, 95
    %v1090 = vpop.permute.xlu0 %1089
    %1091 = vrot.lane.b32.xlu0 %v1077, 95
    %v1092 = vpop.permute.xlu0 %1091
    %vm1093 = vcmask 777216
    %v1094 = vsel %vm1093, %v1084, %v1086
    %v1095 = vsel %vm1093, %v1086, %v1088
    %v1096 = vsel %vm1093, %v1088, %v1090
    %v1097 = vsel %vm1093, %v1090, %v1092
    %1103 = vst [vmem:[#allocation3 + $0x118] sm:$0xff] %v1094
    %1104 = vst [vmem:[#allocation3 + $0x120] sm:$0xff] %v1095
    %1105 = vst [vmem:[#allocation3 + $0x128] sm:$0xff] %v1096
    %1106 = vst [vmem:[#allocation3 + $0x130] sm:$0xff] %v1097
    %1107 = vst.msk [vmem:[#allocation3 + $0x138] sm:$0xff] %vm761, %v1092
    %v1108 = vld [vmem:[#allocation2] sm:$0xff]
    %v1109 = vld [vmem:[#allocation2 + $0x8] sm:$0xff]
    %v1110 = vld [vmem:[#allocation2 + $0x10] sm:$0xff]
    %v1111 = vld [vmem:[#allocation2 + $0x18] sm:$0xff]
    %v1112 = vld [vmem:[#allocation2 + $0x20] sm:$0xff]
    %1113 = vrot.lane.b32.xlu0 %v703, 34
    %v1114 = vpop.permute.xlu0 %1113
    %1115 = vrot.lane.b32.xlu0 %v707, 34
    %v1116 = vpop.permute.xlu0 %1115
    %1117 = vrot.lane.b32.xlu0 %v711, 34
    %v1118 = vpop.permute.xlu0 %1117
    %1119 = vrot.lane.b32.xlu0 %v715, 34
    %v1120 = vpop.permute.xlu0 %1119
    %1121 = vrot.lane.b32.xlu0 %v719, 34
    %v1122 = vpop.permute.xlu0 %1121
    %v1123 = vsel %vm761, %v1114, %v1116
    %v1124 = vsel %vm761, %v1116, %v1118
    %v1125 = vsel %vm761, %v1118, %v1120
    %v1126 = vsel %vm761, %v1120, %v1122
    %v1132 = vmul.f32 %v1108, %v1114
    %v1133 = vmul.f32 %v1109, %v1123
    %v1134 = vmul.f32 %v1110, %v1124
    %v1135 = vmul.f32 %v1111, %v1125
    %v1136 = vmul.f32 %v1112, %v1126
    %1142 = vrot.lane.b32.xlu0 %v1132, 94
    %v1143 = vpop.permute.xlu0 %1142
    %1144 = vrot.lane.b32.xlu0 %v1133, 94
    %v1145 = vpop.permute.xlu0 %1144
    %1146 = vrot.lane.b32.xlu0 %v1134, 94
    %v1147 = vpop.permute.xlu0 %1146
    %1148 = vrot.lane.b32.xlu0 %v1135, 94
    %v1149 = vpop.permute.xlu0 %1148
    %1150 = vrot.lane.b32.xlu0 %v1136, 94
    %v1151 = vpop.permute.xlu0 %1150
    %vm1152 = vcmask 769024
    %v1153 = vsel %vm1152, %v1143, %v1145
    %v1154 = vsel %vm1152, %v1145, %v1147
    %v1155 = vsel %vm1152, %v1147, %v1149
    %v1156 = vsel %vm1152, %v1149, %v1151
    %1162 = vst [vmem:[#allocation3 + $0x140] sm:$0xff] %v1153
    %1163 = vst [vmem:[#allocation3 + $0x148] sm:$0xff] %v1154
    %1164 = vst [vmem:[#allocation3 + $0x150] sm:$0xff] %v1155
    %1165 = vst [vmem:[#allocation3 + $0x158] sm:$0xff] %v1156
    %1166 = vst.msk [vmem:[#allocation3 + $0x160] sm:$0xff] %vm761, %v1151
    %v1167 = vld [vmem:[%s10] sm:$0xff]
    %v1168 = vld [vmem:[#allocation3] sm:$0xff]
    %v1169 = vld [vmem:[#allocation3 + $0x8] sm:$0xff]
    %v1170 = vld [vmem:[#allocation3 + $0x10] sm:$0xff]
    %v1171 = vld [vmem:[#allocation3 + $0x18] sm:$0xff]
    %v1172 = vld [vmem:[#allocation3 + $0x20] sm:$0xff]
    %v1173 = vld [vmem:[#allocation3 + $0x28] sm:$0xff]
    %v1174 = vld [vmem:[#allocation3 + $0x30] sm:$0xff]
    %v1175 = vld [vmem:[#allocation3 + $0x38] sm:$0xff]
    %v1176 = vld [vmem:[#allocation3 + $0x40] sm:$0xff]
    %v1177 = vld [vmem:[#allocation3 + $0x48] sm:$0xff]
    %v1178 = vld [vmem:[#allocation3 + $0x50] sm:$0xff]
    %v1179 = vld [vmem:[#allocation3 + $0x58] sm:$0xff]
    %v1180 = vld [vmem:[#allocation3 + $0x60] sm:$0xff]
    %v1181 = vld [vmem:[#allocation3 + $0x68] sm:$0xff]
    %v1182 = vld [vmem:[#allocation3 + $0x70] sm:$0xff]
    %v1183 = vld [vmem:[#allocation3 + $0x78] sm:$0xff]
    %v1184 = vld [vmem:[#allocation3 + $0x80] sm:$0xff]
    %v1185 = vld [vmem:[#allocation3 + $0x88] sm:$0xff]
    %v1186 = vld [vmem:[#allocation3 + $0x90] sm:$0xff]
    %v1187 = vld [vmem:[#allocation3 + $0x98] sm:$0xff]
    %v1188 = vld [vmem:[#allocation3 + $0xa0] sm:$0xff]
    %v1189 = vld [vmem:[#allocation3 + $0xa8] sm:$0xff]
    %v1190 = vld [vmem:[#allocation3 + $0xb0] sm:$0xff]
    %v1191 = vld [vmem:[#allocation3 + $0xb8] sm:$0xff]
    %v1192 = vld [vmem:[#allocation3 + $0xc0] sm:$0xff]
    %v1193 = vld [vmem:[#allocation3 + $0xc8] sm:$0xff]
    %v1194 = vld [vmem:[#allocation3 + $0xd0] sm:$0xff]
    %v1195 = vld [vmem:[#allocation3 + $0xd8] sm:$0xff]
    %v1196 = vld [vmem:[#allocation3 + $0xe0] sm:$0xff]
    %v1197 = vld [vmem:[#allocation3 + $0xe8] sm:$0xff]
    %v1198 = vld [vmem:[#allocation3 + $0xf0] sm:$0xff]
    %v1199 = vld [vmem:[#allocation3 + $0xf8] sm:$0xff]
    %v1200 = vld [vmem:[#allocation3 + $0x100] sm:$0xff]
    %v1201 = vld [vmem:[#allocation3 + $0x108] sm:$0xff]
    %v1202 = vld [vmem:[#allocation3 + $0x110] sm:$0xff]
    %v1203 = vld [vmem:[#allocation3 + $0x118] sm:$0xff]
    %v1204 = vld [vmem:[#allocation3 + $0x120] sm:$0xff]
    %v1205 = vld [vmem:[#allocation3 + $0x128] sm:$0xff]
    %v1206 = vld [vmem:[#allocation3 + $0x130] sm:$0xff]
    %v1207 = vld [vmem:[#allocation3 + $0x138] sm:$0xff]
    %v1208 = vld [vmem:[#allocation3 + $0x140] sm:$0xff]
    %v1209 = vld [vmem:[#allocation3 + $0x148] sm:$0xff]
    %v1210 = vld [vmem:[#allocation3 + $0x150] sm:$0xff]
    %v1211 = vld [vmem:[#allocation3 + $0x158] sm:$0xff]
    %v1212 = vld [vmem:[#allocation3 + $0x160] sm:$0xff]
    %v1213 = vld [vmem:[%s11] sm:$0xff]
    %1215 = vset.pattern.permute.xlu0 0
    %1216 = vperm.xlu0 %1215, %v1213
    %v1217 = vpop.permute.xlu0 %1216
    %vm1219 = vcmask 588800
    %v1221 = vsel %vm1219, %v1167, 0
    %1223 = vmatprep.subr.mxu0 %v1169
    %1224 = vmatpush1.msra.mxu0 %v1168
    %1225 = vmatprep.subr.mxu0 %v1174
    %1226 = vmatpush1.msra.mxu0 %v1173
    %1227 = vmatprep.subr.mxu0 %v1179
    %1228 = vmatpush1.msra.mxu0 %v1178
    %1229 = vmatprep.subr.mxu0 %v1184
    %1230 = vmatpush1.msra.mxu0 %v1183
    %1231 = vmatprep.subr.mxu0 %v1189
    %1232 = vmatpush1.msra.mxu0 %v1188
    %1233 = vmatprep.subr.mxu0 %v1194
    %1234 = vmatpush1.msra.mxu0 %v1193
    %1235 = vmatprep.subr.mxu0 %v1199
    %1236 = vmatpush1.msra.mxu0 %v1198
    %1237 = vmatprep.subr.mxu0 %v1204
    %1238 = vmatpush1.msra.mxu0 %v1203
    %1239 = vmatprep.subr.mxu0 %v1209
    %1240 = vmatpush1.msra.mxu0 %v1208
    %1241 = vmatprep.subr.mxu0 0.0
    %1242 = vmatpush1.msra.mxu0 0.0
    %1243 = vmatprep.subr.mxu0 0.0
    %1244 = vmatpush1.msra.mxu0 0.0
    %1245 = vmatprep.subr.mxu0 0.0
    %1246 = vmatpush1.msra.mxu0 0.0
    %1247 = vmatprep.subr.mxu0 0.0
    %1248 = vmatpush1.msra.mxu0 0.0
    %1249 = vmatprep.subr.mxu0 0.0
    %1250 = vmatpush1.msra.mxu0 0.0
    %1251 = vmatprep.subr.mxu0 0.0
    %1252 = vmatpush1.msra.mxu0 0.0
    %1253 = vmatprep.subr.mxu0 0.0
    %1254 = vmatpush1.msra.mxu0 0.0
    %1255 = vmatprep.subr.mxu0 0.0
    %1256 = vmatpush1.msra.mxu0 0.0
    %1257 = vmatprep.subr.mxu0 0.0
    %1258 = vmatpush1.msra.mxu0 0.0
    %1259 = vmatprep.subr.mxu0 0.0
    %1260 = vmatpush1.msra.mxu0 0.0
    %1261 = vmatprep.subr.mxu0 0.0
    %1262 = vmatpush1.msra.mxu0 0.0
    %1263 = vmatprep.subr.mxu0 0.0
    %1264 = vmatpush1.msra.mxu0 0.0
    %1265 = vmatprep.subr.mxu0 0.0
    %1266 = vmatpush1.msra.mxu0 0.0
    %1267 = vmatprep.subr.mxu0 0.0
    %1268 = vmatpush1.msra.mxu0 0.0
    %1269 = vmatprep.subr.mxu0 0.0
    %1270 = vmatpush1.msra.mxu0 0.0
    %1271 = vmatprep.subr.mxu0 0.0
    %1272 = vmatpush1.msra.mxu0 0.0
    %1273 = vmatprep.subr.mxu0 0.0
    %1274 = vmatpush1.msra.mxu0 0.0
    %1275 = vmatprep.subr.mxu0 0.0
    %1276 = vmatpush1.msra.mxu0 0.0
    %1277 = vmatprep.subr.mxu0 0.0
    %1278 = vmatpush1.msra.mxu0 0.0
    %1279 = vmatprep.subr.mxu0 0.0
    %1280 = vmatpush1.msra.mxu0 0.0
    %1281 = vmatprep.subr.mxu0 0.0
    %1282 = vmatpush1.msra.mxu0 0.0
    %1283 = vmatprep.subr.mxu0 0.0
    %1284 = vmatpush1.msra.mxu0 0.0
    %1285 = vmatprep.subr.mxu0 0.0
    %1286 = vmatpush1.msra.mxu0 0.0
    %1287 = vmatprep.mubr.f32.mxu0 0.0
    %1288 = vmatmul.mubr.f32.gmra.mrb[0].mxu0 %v1221
    %v1289 = vpop.f32.mrb[0].mxu0
    %v1290 = vadd.f32 %v1217, %v1289
    %v1291 = vpop.f32.mrb[0].mxu0
    %v1292 = vadd.f32 %v1217, %v1291
    %1293 = vdwg.mxu0
    %1294 = vmatprep.subr.mxu0 %v1171
    %1295 = vmatpush1.msra.mxu0 %v1170
    %1296 = vmatprep.subr.mxu0 %v1176
    %1297 = vmatpush1.msra.mxu0 %v1175
    %1298 = vmatprep.subr.mxu0 %v1181
    %1299 = vmatpush1.msra.mxu0 %v1180
    %1300 = vmatprep.subr.mxu0 %v1186
    %1301 = vmatpush1.msra.mxu0 %v1185
    %1302 = vmatprep.subr.mxu0 %v1191
    %1303 = vmatpush1.msra.mxu0 %v1190
    %1304 = vmatprep.subr.mxu0 %v1196
    %1305 = vmatpush1.msra.mxu0 %v1195
    %1306 = vmatprep.subr.mxu0 %v1201
    %1307 = vmatpush1.msra.mxu0 %v1200
    %1308 = vmatprep.subr.mxu0 %v1206
    %1309 = vmatpush1.msra.mxu0 %v1205
    %1310 = vmatprep.subr.mxu0 %v1211
    %1311 = vmatpush1.msra.mxu0 %v1210
    %1312 = vmatprep.subr.mxu0 0.0
    %1313 = vmatpush1.msra.mxu0 0.0
    %1314 = vmatprep.subr.mxu0 0.0
    %1315 = vmatpush1.msra.mxu0 0.0
    %1316 = vmatprep.subr.mxu0 0.0
    %1317 = vmatpush1.msra.mxu0 0.0
    %1318 = vmatprep.subr.mxu0 0.0
    %1319 = vmatpush1.msra.mxu0 0.0
    %1320 = vmatprep.subr.mxu0 0.0
    %1321 = vmatpush1.msra.mxu0 0.0
    %1322 = vmatprep.subr.mxu0 0.0
    %1323 = vmatpush1.msra.mxu0 0.0
    %1324 = vmatprep.subr.mxu0 0.0
    %1325 = vmatpush1.msra.mxu0 0.0
    %1326 = vmatprep.subr.mxu0 0.0
    %1327 = vmatpush1.msra.mxu0 0.0
    %1328 = vmatprep.subr.mxu0 0.0
    %1329 = vmatpush1.msra.mxu0 0.0
    %1330 = vmatprep.subr.mxu0 0.0
    %1331 = vmatpush1.msra.mxu0 0.0
    %1332 = vmatprep.subr.mxu0 0.0
    %1333 = vmatpush1.msra.mxu0 0.0
    %1334 = vmatprep.subr.mxu0 0.0
    %1335 = vmatpush1.msra.mxu0 0.0
    %1336 = vmatprep.subr.mxu0 0.0
    %1337 = vmatpush1.msra.mxu0 0.0
    %1338 = vmatprep.subr.mxu0 0.0
    %1339 = vmatpush1.msra.mxu0 0.0
    %1340 = vmatprep.subr.mxu0 0.0
    %1341 = vmatpush1.msra.mxu0 0.0
    %1342 = vmatprep.subr.mxu0 0.0
    %1343 = vmatpush1.msra.mxu0 0.0
    %1344 = vmatprep.subr.mxu0 0.0
    %1345 = vmatpush1.msra.mxu0 0.0
    %1346 = vmatprep.subr.mxu0 0.0
    %1347 = vmatpush1.msra.mxu0 0.0
    %1348 = vmatprep.subr.mxu0 0.0
    %1349 = vmatpush1.msra.mxu0 0.0
    %1350 = vmatprep.subr.mxu0 0.0
    %1351 = vmatpush1.msra.mxu0 0.0
    %1352 = vmatprep.subr.mxu0 0.0
    %1353 = vmatpush1.msra.mxu0 0.0
    %1354 = vmatprep.subr.mxu0 0.0
    %1355 = vmatpush1.msra.mxu0 0.0
    %1356 = vmatprep.subr.mxu0 0.0
    %1357 = vmatpush1.msra.mxu0 0.0
    %1358 = vmatprep.mubr.f32.mxu0 0.0
    %1359 = vmatmul.mubr.f32.gmra.mrb[0].mxu0 %v1221
    %v1360 = vpop.f32.mrb[0].mxu0
    %v1361 = vadd.f32 %v1217, %v1360
    %v1362 = vpop.f32.mrb[0].mxu0
    %v1363 = vadd.f32 %v1217, %v1362
    %1364 = vdwg.mxu0
    %1365 = vmatprep.subr.mxu0 0.0
    %1366 = vmatpush1.msra.mxu0 %v1172
    %1367 = vmatprep.subr.mxu0 0.0
    %1368 = vmatpush1.msra.mxu0 %v1177
    %1369 = vmatprep.subr.mxu0 0.0
    %1370 = vmatpush1.msra.mxu0 %v1182
    %1371 = vmatprep.subr.mxu0 0.0
    %1372 = vmatpush1.msra.mxu0 %v1187
    %1373 = vmatprep.subr.mxu0 0.0
    %1374 = vmatpush1.msra.mxu0 %v1192
    %1375 = vmatprep.subr.mxu0 0.0
    %1376 = vmatpush1.msra.mxu0 %v1197
    %1377 = vmatprep.subr.mxu0 0.0
    %1378 = vmatpush1.msra.mxu0 %v1202
    %1379 = vmatprep.subr.mxu0 0.0
    %1380 = vmatpush1.msra.mxu0 %v1207
    %1381 = vmatprep.subr.mxu0 0.0
    %1382 = vmatpush1.msra.mxu0 %v1212
    %1383 = vmatprep.subr.mxu0 0.0
    %1384 = vmatpush1.msra.mxu0 0.0
    %1385 = vmatprep.subr.mxu0 0.0
    %1386 = vmatpush1.msra.mxu0 0.0
    %1387 = vmatprep.subr.mxu0 0.0
    %1388 = vmatpush1.msra.mxu0 0.0
    %1389 = vmatprep.subr.mxu0 0.0
    %1390 = vmatpush1.msra.mxu0 0.0
    %1391 = vmatprep.subr.mxu0 0.0
    %1392 = vmatpush1.msra.mxu0 0.0
    %1393 = vmatprep.subr.mxu0 0.0
    %1394 = vmatpush1.msra.mxu0 0.0
    %1395 = vmatprep.subr.mxu0 0.0
    %1396 = vmatpush1.msra.mxu0 0.0
    %1397 = vmatprep.subr.mxu0 0.0
    %1398 = vmatpush1.msra.mxu0 0.0
    %1399 = vmatprep.subr.mxu0 0.0
    %1400 = vmatpush1.msra.mxu0 0.0
    %1401 = vmatprep.subr.mxu0 0.0
    %1402 = vmatpush1.msra.mxu0 0.0
    %1403 = vmatprep.subr.mxu0 0.0
    %1404 = vmatpush1.msra.mxu0 0.0
    %1405 = vmatprep.subr.mxu0 0.0
    %1406 = vmatpush1.msra.mxu0 0.0
    %1407 = vmatprep.subr.mxu0 0.0
    %1408 = vmatpush1.msra.mxu0 0.0
    %1409 = vmatprep.subr.mxu0 0.0
    %1410 = vmatpush1.msra.mxu0 0.0
    %1411 = vmatprep.subr.mxu0 0.0
    %1412 = vmatpush1.msra.mxu0 0.0
    %1413 = vmatprep.subr.mxu0 0.0
    %1414 = vmatpush1.msra.mxu0 0.0
    %1415 = vmatprep.subr.mxu0 0.0
    %1416 = vmatpush1.msra.mxu0 0.0
    %1417 = vmatprep.subr.mxu0 0.0
    %1418 = vmatpush1.msra.mxu0 0.0
    %1419 = vmatprep.subr.mxu0 0.0
    %1420 = vmatpush1.msra.mxu0 0.0
    %1421 = vmatprep.subr.mxu0 0.0
    %1422 = vmatpush1.msra.mxu0 0.0
    %1423 = vmatprep.subr.mxu0 0.0
    %1424 = vmatpush1.msra.mxu0 0.0
    %1425 = vmatprep.subr.mxu0 0.0
    %1426 = vmatpush1.msra.mxu0 0.0
    %1427 = vmatprep.subr.mxu0 0.0
    %1428 = vmatpush1.msra.mxu0 0.0
    %1429 = vmatprep.mubr.f32.mxu0 0.0
    %1430 = vmatmul.mubr.f32.gmra.mrb[0].mxu0 %v1221
    %v1431 = vpop.f32.mrb[0].mxu0
    %v1432 = vadd.f32 %v1217, %v1431
    %v1433 = vpop.f32.mrb[0].mxu0
    %1434 = vdwg.mxu0
    %v1435 = vmax.f32 %v1290, 0.0
    %v1436 = vmax.f32 %v1292, 0.0
    %v1437 = vmax.f32 %v1361, 0.0
    %v1438 = vmax.f32 %v1363, 0.0
    %v1439 = vmax.f32 %v1432, 0.0
    %v1440 = vmul.f32 %v1435, %v725
    %v1441 = vmul.f32 %v1436, %v729
    %v1442 = vmul.f32 %v1437, %v733
    %v1443 = vmul.f32 %v1438, %v737
    %v1444 = vmul.f32 %v1439, %v741
    %1450 = vrot.lane.b32.xlu0 %v1440, 17
    %v1451 = vpop.permute.xlu0 %1450
    %1452 = vrot.lane.b32.xlu0 %v1441, 17
    %v1453 = vpop.permute.xlu0 %1452
    %1454 = vrot.lane.b32.xlu0 %v1442, 17
    %v1455 = vpop.permute.xlu0 %1454
    %1456 = vrot.lane.b32.xlu0 %v1443, 17
    %v1457 = vpop.permute.xlu0 %1456
    %1458 = vrot.lane.b32.xlu0 %v1444, 17
    %v1459 = vpop.permute.xlu0 %1458
    %v1460 = vsel %vm413, %v1451, %v1453
    %v1461 = vsel %vm413, %v1453, %v1455
    %v1462 = vsel %vm413, %v1455, %v1457
    %v1463 = vsel %vm413, %v1457, %v1459
    %vm1469 = vcmask 1047688
    %1470 = vst.msk [vmem:[#allocation2] sm:$0xff] %vm1469, %v1451
    %1471 = vst [vmem:[#allocation2 + $0x8] sm:$0xff] %v1460
    %1472 = vst [vmem:[#allocation2 + $0x10] sm:$0xff] %v1461
    %1473 = vst [vmem:[#allocation2 + $0x18] sm:$0xff] %v1462
    %1474 = vst.msk [vmem:[#allocation2 + $0x20] sm:$0xff] %vm567, %v1463
    %v1475 = vld [vmem:[#allocation2] sm:$0xff]
    %v1476 = vld [vmem:[#allocation2 + $0x8] sm:$0xff]
    %v1477 = vld [vmem:[#allocation2 + $0x10] sm:$0xff]
    %v1478 = vld [vmem:[#allocation2 + $0x18] sm:$0xff]
    %v1479 = vld [vmem:[#allocation2 + $0x20] sm:$0xff]
    %v1480 = vmul.f32 %v1475, %v676
    %v1481 = vmul.f32 %v1476, %v680
    %v1482 = vmul.f32 %v1477, %v684
    %v1483 = vmul.f32 %v1478, %v688
    %v1484 = vmul.f32 %v1479, %v692
    %1485 = vst [vmem:[#allocation3] sm:$0xff] %v1480
    %1486 = vst [vmem:[#allocation3 + $0x8] sm:$0xff] %v1481
    %1487 = vst [vmem:[#allocation3 + $0x10] sm:$0xff] %v1482
    %1488 = vst [vmem:[#allocation3 + $0x18] sm:$0xff] %v1483
    %1489 = vst.msk [vmem:[#allocation3 + $0x20] sm:$0xff] %vm761, %v1484
    %v1490 = vld [vmem:[#allocation2] sm:$0xff]
    %v1491 = vld [vmem:[#allocation2 + $0x8] sm:$0xff]
    %v1492 = vld [vmem:[#allocation2 + $0x10] sm:$0xff]
    %v1493 = vld [vmem:[#allocation2 + $0x18] sm:$0xff]
    %v1494 = vld [vmem:[#allocation2 + $0x20] sm:$0xff]
    %1500 = vrot.lane.b32.xlu0 %v1490, 127
    %v1501 = vpop.permute.xlu0 %1500
    %1502 = vrot.lane.b32.xlu0 %v1491, 127
    %v1503 = vpop.permute.xlu0 %1502
    %1504 = vrot.lane.b32.xlu0 %v1492, 127
    %v1505 = vpop.permute.xlu0 %1504
    %1506 = vrot.lane.b32.xlu0 %v1493, 127
    %v1507 = vpop.permute.xlu0 %1506
    %1508 = vrot.lane.b32.xlu0 %v1494, 127
    %v1509 = vpop.permute.xlu0 %1508
    %v1510 = vsel %vm783, %v1501, %v1503
    %v1511 = vsel %vm783, %v1503, %v1505
    %v1512 = vsel %vm783, %v1505, %v1507
    %v1513 = vsel %vm783, %v1507, %v1509
    %1519 = vst [vmem:[#allocation3 + $0x28] sm:$0xff] %v1510
    %1520 = vst [vmem:[#allocation3 + $0x30] sm:$0xff] %v1511
    %1521 = vst [vmem:[#allocation3 + $0x38] sm:$0xff] %v1512
    %1522 = vst [vmem:[#allocation3 + $0x40] sm:$0xff] %v1513
    %1523 = vst.msk [vmem:[#allocation3 + $0x48] sm:$0xff] %vm761, %v1509
    %v1524 = vld [vmem:[#allocation2] sm:$0xff]
    %v1525 = vld [vmem:[#allocation2 + $0x8] sm:$0xff]
    %v1526 = vld [vmem:[#allocation2 + $0x10] sm:$0xff]
    %v1527 = vld [vmem:[#allocation2 + $0x18] sm:$0xff]
    %v1528 = vld [vmem:[#allocation2 + $0x20] sm:$0xff]
    %v1529 = vmul.f32 %v1524, %v804
    %v1530 = vmul.f32 %v1525, %v814
    %v1531 = vmul.f32 %v1526, %v815
    %v1532 = vmul.f32 %v1527, %v816
    %v1533 = vmul.f32 %v1528, %v817
    %1539 = vrot.lane.b32.xlu0 %v1529, 126
    %v1540 = vpop.permute.xlu0 %1539
    %1541 = vrot.lane.b32.xlu0 %v1530, 126
    %v1542 = vpop.permute.xlu0 %1541
    %1543 = vrot.lane.b32.xlu0 %v1531, 126
    %v1544 = vpop.permute.xlu0 %1543
    %1545 = vrot.lane.b32.xlu0 %v1532, 126
    %v1546 = vpop.permute.xlu0 %1545
    %1547 = vrot.lane.b32.xlu0 %v1533, 126
    %v1548 = vpop.permute.xlu0 %1547
    %v1549 = vsel %vm843, %v1540, %v1542
    %v1550 = vsel %vm843, %v1542, %v1544
    %v1551 = vsel %vm843, %v1544, %v1546
    %v1552 = vsel %vm843, %v1546, %v1548
    %1558 = vst [vmem:[#allocation3 + $0x50] sm:$0xff] %v1549
    %1559 = vst [vmem:[#allocation3 + $0x58] sm:$0xff] %v1550
    %1560 = vst [vmem:[#allocation3 + $0x60] sm:$0xff] %v1551
    %1561 = vst [vmem:[#allocation3 + $0x68] sm:$0xff] %v1552
    %1562 = vst.msk [vmem:[#allocation3 + $0x70] sm:$0xff] %vm761, %v1548
    %v1563 = vld [vmem:[#allocation2] sm:$0xff]
    %v1564 = vld [vmem:[#allocation2 + $0x8] sm:$0xff]
    %v1565 = vld [vmem:[#allocation2 + $0x10] sm:$0xff]
    %v1566 = vld [vmem:[#allocation2 + $0x18] sm:$0xff]
    %v1567 = vld [vmem:[#allocation2 + $0x20] sm:$0xff]
    %v1568 = vmul.f32 %v1563, %v864
    %v1569 = vmul.f32 %v1564, %v874
    %v1570 = vmul.f32 %v1565, %v875
    %v1571 = vmul.f32 %v1566, %v876
    %v1572 = vmul.f32 %v1567, %v877
    %1578 = vrot.lane.b32.xlu0 %v1568, 112
    %v1579 = vpop.permute.xlu0 %1578
    %1580 = vrot.lane.b32.xlu0 %v1569, 112
    %v1581 = vpop.permute.xlu0 %1580
    %1582 = vrot.lane.b32.xlu0 %v1570, 112
    %v1583 = vpop.permute.xlu0 %1582
    %1584 = vrot.lane.b32.xlu0 %v1571, 112
    %v1585 = vpop.permute.xlu0 %1584
    %1586 = vrot.lane.b32.xlu0 %v1572, 112
    %v1587 = vpop.permute.xlu0 %1586
    %v1588 = vsel %vm903, %v1579, %v1581
    %v1589 = vsel %vm903, %v1581, %v1583
    %v1590 = vsel %vm903, %v1583, %v1585
    %v1591 = vsel %vm903, %v1585, %v1587
    %1597 = vst [vmem:[#allocation3 + $0x78] sm:$0xff] %v1588
    %1598 = vst [vmem:[#allocation3 + $0x80] sm:$0xff] %v1589
    %1599 = vst [vmem:[#allocation3 + $0x88] sm:$0xff] %v1590
    %1600 = vst [vmem:[#allocation3 + $0x90] sm:$0xff] %v1591
    %1601 = vst.msk [vmem:[#allocation3 + $0x98] sm:$0xff] %vm761, %v1587
    %v1602 = vld [vmem:[#allocation2] sm:$0xff]
    %v1603 = vld [vmem:[#allocation2 + $0x8] sm:$0xff]
    %v1604 = vld [vmem:[#allocation2 + $0x10] sm:$0xff]
    %v1605 = vld [vmem:[#allocation2 + $0x18] sm:$0xff]
    %v1606 = vld [vmem:[#allocation2 + $0x20] sm:$0xff]
    %1612 = vrot.lane.b32.xlu0 %v1602, 111
    %v1613 = vpop.permute.xlu0 %1612
    %1614 = vrot.lane.b32.xlu0 %v1603, 111
    %v1615 = vpop.permute.xlu0 %1614
    %1616 = vrot.lane.b32.xlu0 %v1604, 111
    %v1617 = vpop.permute.xlu0 %1616
    %1618 = vrot.lane.b32.xlu0 %v1605, 111
    %v1619 = vpop.permute.xlu0 %1618
    %1620 = vrot.lane.b32.xlu0 %v1606, 111
    %v1621 = vpop.permute.xlu0 %1620
    %v1622 = vsel %vm938, %v1613, %v1615
    %v1623 = vsel %vm938, %v1615, %v1617
    %v1624 = vsel %vm938, %v1617, %v1619
    %v1625 = vsel %vm938, %v1619, %v1621
    %1631 = vst [vmem:[#allocation3 + $0xa0] sm:$0xff] %v1622
    %1632 = vst [vmem:[#allocation3 + $0xa8] sm:$0xff] %v1623
    %1633 = vst [vmem:[#allocation3 + $0xb0] sm:$0xff] %v1624
    %1634 = vst [vmem:[#allocation3 + $0xb8] sm:$0xff] %v1625
    %1635 = vst.msk [vmem:[#allocation3 + $0xc0] sm:$0xff] %vm761, %v1621
    %v1636 = vld [vmem:[#allocation2] sm:$0xff]
    %v1637 = vld [vmem:[#allocation2 + $0x8] sm:$0xff]
    %v1638 = vld [vmem:[#allocation2 + $0x10] sm:$0xff]
    %v1639 = vld [vmem:[#allocation2 + $0x18] sm:$0xff]
    %v1640 = vld [vmem:[#allocation2 + $0x20] sm:$0xff]
    %v1641 = vmul.f32 %v1636, %v959
    %v1642 = vmul.f32 %v1637, %v969
    %v1643 = vmul.f32 %v1638, %v970
    %v1644 = vmul.f32 %v1639, %v971
    %v1645 = vmul.f32 %v1640, %v972
    %1651 = vrot.lane.b32.xlu0 %v1641, 110
    %v1652 = vpop.permute.xlu0 %1651
    %1653 = vrot.lane.b32.xlu0 %v1642, 110
    %v1654 = vpop.permute.xlu0 %1653
    %1655 = vrot.lane.b32.xlu0 %v1643, 110
    %v1656 = vpop.permute.xlu0 %1655
    %1657 = vrot.lane.b32.xlu0 %v1644, 110
    %v1658 = vpop.permute.xlu0 %1657
    %1659 = vrot.lane.b32.xlu0 %v1645, 110
    %v1660 = vpop.permute.xlu0 %1659
    %v1661 = vsel %vm998, %v1652, %v1654
    %v1662 = vsel %vm998, %v1654, %v1656
    %v1663 = vsel %vm998, %v1656, %v1658
    %v1664 = vsel %vm998, %v1658, %v1660
    %1670 = vst [vmem:[#allocation3 + $0xc8] sm:$0xff] %v1661
    %1671 = vst [vmem:[#allocation3 + $0xd0] sm:$0xff] %v1662
    %1672 = vst [vmem:[#allocation3 + $0xd8] sm:$0xff] %v1663
    %1673 = vst [vmem:[#allocation3 + $0xe0] sm:$0xff] %v1664
    %1674 = vst.msk [vmem:[#allocation3 + $0xe8] sm:$0xff] %vm761, %v1660
    %v1675 = vld [vmem:[#allocation2] sm:$0xff]
    %v1676 = vld [vmem:[#allocation2 + $0x8] sm:$0xff]
    %v1677 = vld [vmem:[#allocation2 + $0x10] sm:$0xff]
    %v1678 = vld [vmem:[#allocation2 + $0x18] sm:$0xff]
    %v1679 = vld [vmem:[#allocation2 + $0x20] sm:$0xff]
    %v1680 = vmul.f32 %v1675, %v1019
    %v1681 = vmul.f32 %v1676, %v1029
    %v1682 = vmul.f32 %v1677, %v1030
    %v1683 = vmul.f32 %v1678, %v1031
    %v1684 = vmul.f32 %v1679, %v1032
    %1690 = vrot.lane.b32.xlu0 %v1680, 96
    %v1691 = vpop.permute.xlu0 %1690
    %1692 = vrot.lane.b32.xlu0 %v1681, 96
    %v1693 = vpop.permute.xlu0 %1692
    %1694 = vrot.lane.b32.xlu0 %v1682, 96
    %v1695 = vpop.permute.xlu0 %1694
    %1696 = vrot.lane.b32.xlu0 %v1683, 96
    %v1697 = vpop.permute.xlu0 %1696
    %1698 = vrot.lane.b32.xlu0 %v1684, 96
    %v1699 = vpop.permute.xlu0 %1698
    %v1700 = vsel %vm1058, %v1691, %v1693
    %v1701 = vsel %vm1058, %v1693, %v1695
    %v1702 = vsel %vm1058, %v1695, %v1697
    %v1703 = vsel %vm1058, %v1697, %v1699
    %1709 = vst [vmem:[#allocation3 + $0xf0] sm:$0xff] %v1700
    %1710 = vst [vmem:[#allocation3 + $0xf8] sm:$0xff] %v1701
    %1711 = vst [vmem:[#allocation3 + $0x100] sm:$0xff] %v1702
    %1712 = vst [vmem:[#allocation3 + $0x108] sm:$0xff] %v1703
    %1713 = vst.msk [vmem:[#allocation3 + $0x110] sm:$0xff] %vm761, %v1699
    %v1714 = vld [vmem:[#allocation2] sm:$0xff]
    %v1715 = vld [vmem:[#allocation2 + $0x8] sm:$0xff]
    %v1716 = vld [vmem:[#allocation2 + $0x10] sm:$0xff]
    %v1717 = vld [vmem:[#allocation2 + $0x18] sm:$0xff]
    %v1718 = vld [vmem:[#allocation2 + $0x20] sm:$0xff]
    %1724 = vrot.lane.b32.xlu0 %v1714, 95
    %v1725 = vpop.permute.xlu0 %1724
    %1726 = vrot.lane.b32.xlu0 %v1715, 95
    %v1727 = vpop.permute.xlu0 %1726
    %1728 = vrot.lane.b32.xlu0 %v1716, 95
    %v1729 = vpop.permute.xlu0 %1728
    %1730 = vrot.lane.b32.xlu0 %v1717, 95
    %v1731 = vpop.permute.xlu0 %1730
    %1732 = vrot.lane.b32.xlu0 %v1718, 95
    %v1733 = vpop.permute.xlu0 %1732
    %v1734 = vsel %vm1093, %v1725, %v1727
    %v1735 = vsel %vm1093, %v1727, %v1729
    %v1736 = vsel %vm1093, %v1729, %v1731
    %v1737 = vsel %vm1093, %v1731, %v1733
    %1743 = vst [vmem:[#allocation3 + $0x118] sm:$0xff] %v1734
    %1744 = vst [vmem:[#allocation3 + $0x120] sm:$0xff] %v1735
    %1745 = vst [vmem:[#allocation3 + $0x128] sm:$0xff] %v1736
    %1746 = vst [vmem:[#allocation3 + $0x130] sm:$0xff] %v1737
    %1747 = vst.msk [vmem:[#allocation3 + $0x138] sm:$0xff] %vm761, %v1733
    %v1748 = vld [vmem:[#allocation2] sm:$0xff]
    %v1749 = vld [vmem:[#allocation2 + $0x8] sm:$0xff]
    %v1750 = vld [vmem:[#allocation2 + $0x10] sm:$0xff]
    %v1751 = vld [vmem:[#allocation2 + $0x18] sm:$0xff]
    %v1752 = vld [vmem:[#allocation2 + $0x20] sm:$0xff]
    %v1753 = vmul.f32 %v1748, %v1114
    %v1754 = vmul.f32 %v1749, %v1123
    %v1755 = vmul.f32 %v1750, %v1124
    %v1756 = vmul.f32 %v1751, %v1125
    %v1757 = vmul.f32 %v1752, %v1126
    %1763 = vrot.lane.b32.xlu0 %v1753, 94
    %v1764 = vpop.permute.xlu0 %1763
    %1765 = vrot.lane.b32.xlu0 %v1754, 94
    %v1766 = vpop.permute.xlu0 %1765
    %1767 = vrot.lane.b32.xlu0 %v1755, 94
    %v1768 = vpop.permute.xlu0 %1767
    %1769 = vrot.lane.b32.xlu0 %v1756, 94
    %v1770 = vpop.permute.xlu0 %1769
    %1771 = vrot.lane.b32.xlu0 %v1757, 94
    %v1772 = vpop.permute.xlu0 %1771
    %v1773 = vsel %vm1152, %v1764, %v1766
    %v1774 = vsel %vm1152, %v1766, %v1768
    %v1775 = vsel %vm1152, %v1768, %v1770
    %v1776 = vsel %vm1152, %v1770, %v1772
    %1782 = vst [vmem:[#allocation3 + $0x140] sm:$0xff] %v1773
    %1783 = vst [vmem:[#allocation3 + $0x148] sm:$0xff] %v1774
    %1784 = vst [vmem:[#allocation3 + $0x150] sm:$0xff] %v1775
    %1785 = vst [vmem:[#allocation3 + $0x158] sm:$0xff] %v1776
    %1786 = vst.msk [vmem:[#allocation3 + $0x160] sm:$0xff] %vm761, %v1772
    %v1787 = vld [vmem:[%s12] sm:$0xff]
    %v1788 = vld [vmem:[#allocation3] sm:$0xff]
    %v1789 = vld [vmem:[#allocation3 + $0x8] sm:$0xff]
    %v1790 = vld [vmem:[#allocation3 + $0x10] sm:$0xff]
    %v1791 = vld [vmem:[#allocation3 + $0x18] sm:$0xff]
    %v1792 = vld [vmem:[#allocation3 + $0x20] sm:$0xff]
    %v1793 = vld [vmem:[#allocation3 + $0x28] sm:$0xff]
    %v1794 = vld [vmem:[#allocation3 + $0x30] sm:$0xff]
    %v1795 = vld [vmem:[#allocation3 + $0x38] sm:$0xff]
    %v1796 = vld [vmem:[#allocation3 + $0x40] sm:$0xff]
    %v1797 = vld [vmem:[#allocation3 + $0x48] sm:$0xff]
    %v1798 = vld [vmem:[#allocation3 + $0x50] sm:$0xff]
    %v1799 = vld [vmem:[#allocation3 + $0x58] sm:$0xff]
    %v1800 = vld [vmem:[#allocation3 + $0x60] sm:$0xff]
    %v1801 = vld [vmem:[#allocation3 + $0x68] sm:$0xff]
    %v1802 = vld [vmem:[#allocation3 + $0x70] sm:$0xff]
    %v1803 = vld [vmem:[#allocation3 + $0x78] sm:$0xff]
    %v1804 = vld [vmem:[#allocation3 + $0x80] sm:$0xff]
    %v1805 = vld [vmem:[#allocation3 + $0x88] sm:$0xff]
    %v1806 = vld [vmem:[#allocation3 + $0x90] sm:$0xff]
    %v1807 = vld [vmem:[#allocation3 + $0x98] sm:$0xff]
    %v1808 = vld [vmem:[#allocation3 + $0xa0] sm:$0xff]
    %v1809 = vld [vmem:[#allocation3 + $0xa8] sm:$0xff]
    %v1810 = vld [vmem:[#allocation3 + $0xb0] sm:$0xff]
    %v1811 = vld [vmem:[#allocation3 + $0xb8] sm:$0xff]
    %v1812 = vld [vmem:[#allocation3 + $0xc0] sm:$0xff]
    %v1813 = vld [vmem:[#allocation3 + $0xc8] sm:$0xff]
    %v1814 = vld [vmem:[#allocation3 + $0xd0] sm:$0xff]
    %v1815 = vld [vmem:[#allocation3 + $0xd8] sm:$0xff]
    %v1816 = vld [vmem:[#allocation3 + $0xe0] sm:$0xff]
    %v1817 = vld [vmem:[#allocation3 + $0xe8] sm:$0xff]
    %v1818 = vld [vmem:[#allocation3 + $0xf0] sm:$0xff]
    %v1819 = vld [vmem:[#allocation3 + $0xf8] sm:$0xff]
    %v1820 = vld [vmem:[#allocation3 + $0x100] sm:$0xff]
    %v1821 = vld [vmem:[#allocation3 + $0x108] sm:$0xff]
    %v1822 = vld [vmem:[#allocation3 + $0x110] sm:$0xff]
    %v1823 = vld [vmem:[#allocation3 + $0x118] sm:$0xff]
    %v1824 = vld [vmem:[#allocation3 + $0x120] sm:$0xff]
    %v1825 = vld [vmem:[#allocation3 + $0x128] sm:$0xff]
    %v1826 = vld [vmem:[#allocation3 + $0x130] sm:$0xff]
    %v1827 = vld [vmem:[#allocation3 + $0x138] sm:$0xff]
    %v1828 = vld [vmem:[#allocation3 + $0x140] sm:$0xff]
    %v1829 = vld [vmem:[#allocation3 + $0x148] sm:$0xff]
    %v1830 = vld [vmem:[#allocation3 + $0x150] sm:$0xff]
    %v1831 = vld [vmem:[#allocation3 + $0x158] sm:$0xff]
    %v1832 = vld [vmem:[#allocation3 + $0x160] sm:$0xff]
    %v1833 = vld [vmem:[%s13] sm:$0xff]
    %1835 = vset.pattern.permute.xlu0 0
    %1836 = vperm.xlu0 %1835, %v1833
    %v1837 = vpop.permute.xlu0 %1836
    %v1840 = vsel %vm1219, %v1787, 0
    %1842 = vmatprep.subr.mxu0 %v1789
    %1843 = vmatpush1.msra.mxu0 %v1788
    %1844 = vmatprep.subr.mxu0 %v1794
    %1845 = vmatpush1.msra.mxu0 %v1793
    %1846 = vmatprep.subr.mxu0 %v1799
    %1847 = vmatpush1.msra.mxu0 %v1798
    %1848 = vmatprep.subr.mxu0 %v1804
    %1849 = vmatpush1.msra.mxu0 %v1803
    %1850 = vmatprep.subr.mxu0 %v1809
    %1851 = vmatpush1.msra.mxu0 %v1808
    %1852 = vmatprep.subr.mxu0 %v1814
    %1853 = vmatpush1.msra.mxu0 %v1813
    %1854 = vmatprep.subr.mxu0 %v1819
    %1855 = vmatpush1.msra.mxu0 %v1818
    %1856 = vmatprep.subr.mxu0 %v1824
    %1857 = vmatpush1.msra.mxu0 %v1823
    %1858 = vmatprep.subr.mxu0 %v1829
    %1859 = vmatpush1.msra.mxu0 %v1828
    %1860 = vmatprep.subr.mxu0 0.0
    %1861 = vmatpush1.msra.mxu0 0.0
    %1862 = vmatprep.subr.mxu0 0.0
    %1863 = vmatpush1.msra.mxu0 0.0
    %1864 = vmatprep.subr.mxu0 0.0
    %1865 = vmatpush1.msra.mxu0 0.0
    %1866 = vmatprep.subr.mxu0 0.0
    %1867 = vmatpush1.msra.mxu0 0.0
    %1868 = vmatprep.subr.mxu0 0.0
    %1869 = vmatpush1.msra.mxu0 0.0
    %1870 = vmatprep.subr.mxu0 0.0
    %1871 = vmatpush1.msra.mxu0 0.0
    %1872 = vmatprep.subr.mxu0 0.0
    %1873 = vmatpush1.msra.mxu0 0.0
    %1874 = vmatprep.subr.mxu0 0.0
    %1875 = vmatpush1.msra.mxu0 0.0
    %1876 = vmatprep.subr.mxu0 0.0
    %1877 = vmatpush1.msra.mxu0 0.0
    %1878 = vmatprep.subr.mxu0 0.0
    %1879 = vmatpush1.msra.mxu0 0.0
    %1880 = vmatprep.subr.mxu0 0.0
    %1881 = vmatpush1.msra.mxu0 0.0
    %1882 = vmatprep.subr.mxu0 0.0
    %1883 = vmatpush1.msra.mxu0 0.0
    %1884 = vmatprep.subr.mxu0 0.0
    %1885 = vmatpush1.msra.mxu0 0.0
    %1886 = vmatprep.subr.mxu0 0.0
    %1887 = vmatpush1.msra.mxu0 0.0
    %1888 = vmatprep.subr.mxu0 0.0
    %1889 = vmatpush1.msra.mxu0 0.0
    %1890 = vmatprep.subr.mxu0 0.0
    %1891 = vmatpush1.msra.mxu0 0.0
    %1892 = vmatprep.subr.mxu0 0.0
    %1893 = vmatpush1.msra.mxu0 0.0
    %1894 = vmatprep.subr.mxu0 0.0
    %1895 = vmatpush1.msra.mxu0 0.0
    %1896 = vmatprep.subr.mxu0 0.0
    %1897 = vmatpush1.msra.mxu0 0.0
    %1898 = vmatprep.subr.mxu0 0.0
    %1899 = vmatpush1.msra.mxu0 0.0
    %1900 = vmatprep.subr.mxu0 0.0
    %1901 = vmatpush1.msra.mxu0 0.0
    %1902 = vmatprep.subr.mxu0 0.0
    %1903 = vmatpush1.msra.mxu0 0.0
    %1904 = vmatprep.subr.mxu0 0.0
    %1905 = vmatpush1.msra.mxu0 0.0
    %1906 = vmatprep.mubr.f32.mxu0 0.0
    %1907 = vmatmul.mubr.f32.gmra.mrb[0].mxu0 %v1840
    %v1908 = vpop.f32.mrb[0].mxu0
    %v1909 = vadd.f32 %v1837, %v1908
    %v1910 = vpop.f32.mrb[0].mxu0
    %v1911 = vadd.f32 %v1837, %v1910
    %1912 = vdwg.mxu0
    %1913 = vmatprep.subr.mxu0 %v1791
    %1914 = vmatpush1.msra.mxu0 %v1790
    %1915 = vmatprep.subr.mxu0 %v1796
    %1916 = vmatpush1.msra.mxu0 %v1795
    %1917 = vmatprep.subr.mxu0 %v1801
    %1918 = vmatpush1.msra.mxu0 %v1800
    %1919 = vmatprep.subr.mxu0 %v1806
    %1920 = vmatpush1.msra.mxu0 %v1805
    %1921 = vmatprep.subr.mxu0 %v1811
    %1922 = vmatpush1.msra.mxu0 %v1810
    %1923 = vmatprep.subr.mxu0 %v1816
    %1924 = vmatpush1.msra.mxu0 %v1815
    %1925 = vmatprep.subr.mxu0 %v1821
    %1926 = vmatpush1.msra.mxu0 %v1820
    %1927 = vmatprep.subr.mxu0 %v1826
    %1928 = vmatpush1.msra.mxu0 %v1825
    %1929 = vmatprep.subr.mxu0 %v1831
    %1930 = vmatpush1.msra.mxu0 %v1830
    %1931 = vmatprep.subr.mxu0 0.0
    %1932 = vmatpush1.msra.mxu0 0.0
    %1933 = vmatprep.subr.mxu0 0.0
    %1934 = vmatpush1.msra.mxu0 0.0
    %1935 = vmatprep.subr.mxu0 0.0
    %1936 = vmatpush1.msra.mxu0 0.0
    %1937 = vmatprep.subr.mxu0 0.0
    %1938 = vmatpush1.msra.mxu0 0.0
    %1939 = vmatprep.subr.mxu0 0.0
    %1940 = vmatpush1.msra.mxu0 0.0
    %1941 = vmatprep.subr.mxu0 0.0
    %1942 = vmatpush1.msra.mxu0 0.0
    %1943 = vmatprep.subr.mxu0 0.0
    %1944 = vmatpush1.msra.mxu0 0.0
    %1945 = vmatprep.subr.mxu0 0.0
    %1946 = vmatpush1.msra.mxu0 0.0
    %1947 = vmatprep.subr.mxu0 0.0
    %1948 = vmatpush1.msra.mxu0 0.0
    %1949 = vmatprep.subr.mxu0 0.0
    %1950 = vmatpush1.msra.mxu0 0.0
    %1951 = vmatprep.subr.mxu0 0.0
    %1952 = vmatpush1.msra.mxu0 0.0
    %1953 = vmatprep.subr.mxu0 0.0
    %1954 = vmatpush1.msra.mxu0 0.0
    %1955 = vmatprep.subr.mxu0 0.0
    %1956 = vmatpush1.msra.mxu0 0.0
    %1957 = vmatprep.subr.mxu0 0.0
    %1958 = vmatpush1.msra.mxu0 0.0
    %1959 = vmatprep.subr.mxu0 0.0
    %1960 = vmatpush1.msra.mxu0 0.0
    %1961 = vmatprep.subr.mxu0 0.0
    %1962 = vmatpush1.msra.mxu0 0.0
    %1963 = vmatprep.subr.mxu0 0.0
    %1964 = vmatpush1.msra.mxu0 0.0
    %1965 = vmatprep.subr.mxu0 0.0
    %1966 = vmatpush1.msra.mxu0 0.0
    %1967 = vmatprep.subr.mxu0 0.0
    %1968 = vmatpush1.msra.mxu0 0.0
    %1969 = vmatprep.subr.mxu0 0.0
    %1970 = vmatpush1.msra.mxu0 0.0
    %1971 = vmatprep.subr.mxu0 0.0
    %1972 = vmatpush1.msra.mxu0 0.0
    %1973 = vmatprep.subr.mxu0 0.0
    %1974 = vmatpush1.msra.mxu0 0.0
    %1975 = vmatprep.subr.mxu0 0.0
    %1976 = vmatpush1.msra.mxu0 0.0
    %1977 = vmatprep.mubr.f32.mxu0 0.0
    %1978 = vmatmul.mubr.f32.gmra.mrb[0].mxu0 %v1840
    %v1979 = vpop.f32.mrb[0].mxu0
    %v1980 = vadd.f32 %v1837, %v1979
    %v1981 = vpop.f32.mrb[0].mxu0
    %v1982 = vadd.f32 %v1837, %v1981
    %1983 = vdwg.mxu0
    %1984 = vmatprep.subr.mxu0 0.0
    %1985 = vmatpush1.msra.mxu0 %v1792
    %1986 = vmatprep.subr.mxu0 0.0
    %1987 = vmatpush1.msra.mxu0 %v1797
    %1988 = vmatprep.subr.mxu0 0.0
    %1989 = vmatpush1.msra.mxu0 %v1802
    %1990 = vmatprep.subr.mxu0 0.0
    %1991 = vmatpush1.msra.mxu0 %v1807
    %1992 = vmatprep.subr.mxu0 0.0
    %1993 = vmatpush1.msra.mxu0 %v1812
    %1994 = vmatprep.subr.mxu0 0.0
    %1995 = vmatpush1.msra.mxu0 %v1817
    %1996 = vmatprep.subr.mxu0 0.0
    %1997 = vmatpush1.msra.mxu0 %v1822
    %1998 = vmatprep.subr.mxu0 0.0
    %1999 = vmatpush1.msra.mxu0 %v1827
    %2000 = vmatprep.subr.mxu0 0.0
    %2001 = vmatpush1.msra.mxu0 %v1832
    %2002 = vmatprep.subr.mxu0 0.0
    %2003 = vmatpush1.msra.mxu0 0.0
    %2004 = vmatprep.subr.mxu0 0.0
    %2005 = vmatpush1.msra.mxu0 0.0
    %2006 = vmatprep.subr.mxu0 0.0
    %2007 = vmatpush1.msra.mxu0 0.0
    %2008 = vmatprep.subr.mxu0 0.0
    %2009 = vmatpush1.msra.mxu0 0.0
    %2010 = vmatprep.subr.mxu0 0.0
    %2011 = vmatpush1.msra.mxu0 0.0
    %2012 = vmatprep.subr.mxu0 0.0
    %2013 = vmatpush1.msra.mxu0 0.0
    %2014 = vmatprep.subr.mxu0 0.0
    %2015 = vmatpush1.msra.mxu0 0.0
    %2016 = vmatprep.subr.mxu0 0.0
    %2017 = vmatpush1.msra.mxu0 0.0
    %2018 = vmatprep.subr.mxu0 0.0
    %2019 = vmatpush1.msra.mxu0 0.0
    %2020 = vmatprep.subr.mxu0 0.0
    %2021 = vmatpush1.msra.mxu0 0.0
    %2022 = vmatprep.subr.mxu0 0.0
    %2023 = vmatpush1.msra.mxu0 0.0
    %2024 = vmatprep.subr.mxu0 0.0
    %2025 = vmatpush1.msra.mxu0 0.0
    %2026 = vmatprep.subr.mxu0 0.0
    %2027 = vmatpush1.msra.mxu0 0.0
    %2028 = vmatprep.subr.mxu0 0.0
    %2029 = vmatpush1.msra.mxu0 0.0
    %2030 = vmatprep.subr.mxu0 0.0
    %2031 = vmatpush1.msra.mxu0 0.0
    %2032 = vmatprep.subr.mxu0 0.0
    %2033 = vmatpush1.msra.mxu0 0.0
    %2034 = vmatprep.subr.mxu0 0.0
    %2035 = vmatpush1.msra.mxu0 0.0
    %2036 = vmatprep.subr.mxu0 0.0
    %2037 = vmatpush1.msra.mxu0 0.0
    %2038 = vmatprep.subr.mxu0 0.0
    %2039 = vmatpush1.msra.mxu0 0.0
    %2040 = vmatprep.subr.mxu0 0.0
    %2041 = vmatpush1.msra.mxu0 0.0
    %2042 = vmatprep.subr.mxu0 0.0
    %2043 = vmatpush1.msra.mxu0 0.0
    %2044 = vmatprep.subr.mxu0 0.0
    %2045 = vmatpush1.msra.mxu0 0.0
    %2046 = vmatprep.subr.mxu0 0.0
    %2047 = vmatpush1.msra.mxu0 0.0
    %2048 = vmatprep.mubr.f32.mxu0 0.0
    %2049 = vmatmul.mubr.f32.gmra.mrb[0].mxu0 %v1840
    %v2050 = vpop.f32.mrb[0].mxu0
    %v2051 = vadd.f32 %v1837, %v2050
    %v2052 = vpop.f32.mrb[0].mxu0
    %2053 = vdwg.mxu0
    %v2054 = vmax.f32 %v1909, 0.0
    %v2055 = vmax.f32 %v1911, 0.0
    %v2056 = vmax.f32 %v1980, 0.0
    %v2057 = vmax.f32 %v1982, 0.0
    %v2058 = vmax.f32 %v2051, 0.0
    %v2059 = vmul.f32 %v2054, %v725
    %v2060 = vmul.f32 %v2055, %v729
    %v2061 = vmul.f32 %v2056, %v733
    %v2062 = vmul.f32 %v2057, %v737
    %v2063 = vmul.f32 %v2058, %v741
    %2069 = vrot.lane.b32.xlu0 %v2059, 17
    %v2070 = vpop.permute.xlu0 %2069
    %2071 = vrot.lane.b32.xlu0 %v2060, 17
    %v2072 = vpop.permute.xlu0 %2071
    %2073 = vrot.lane.b32.xlu0 %v2061, 17
    %v2074 = vpop.permute.xlu0 %2073
    %2075 = vrot.lane.b32.xlu0 %v2062, 17
    %v2076 = vpop.permute.xlu0 %2075
    %2077 = vrot.lane.b32.xlu0 %v2063, 17
    %v2078 = vpop.permute.xlu0 %2077
    %v2079 = vsel %vm413, %v2070, %v2072
    %v2080 = vsel %vm413, %v2072, %v2074
    %v2081 = vsel %vm413, %v2074, %v2076
    %v2082 = vsel %vm413, %v2076, %v2078
    %2088 = vst.msk [vmem:[#allocation2] sm:$0xff] %vm1469, %v2070
    %2089 = vst [vmem:[#allocation2 + $0x8] sm:$0xff] %v2079
    %2090 = vst [vmem:[#allocation2 + $0x10] sm:$0xff] %v2080
    %2091 = vst [vmem:[#allocation2 + $0x18] sm:$0xff] %v2081
    %2092 = vst.msk [vmem:[#allocation2 + $0x20] sm:$0xff] %vm567, %v2082
    %v2093 = vld [vmem:[#allocation2] sm:$0xff]
    %v2094 = vld [vmem:[#allocation2 + $0x8] sm:$0xff]
    %v2095 = vld [vmem:[#allocation2 + $0x10] sm:$0xff]
    %v2096 = vld [vmem:[#allocation2 + $0x18] sm:$0xff]
    %v2097 = vld [vmem:[#allocation2 + $0x20] sm:$0xff]
    %v2098 = vmul.f32 %v2093, %v676
    %v2099 = vmul.f32 %v2094, %v680
    %v2100 = vmul.f32 %v2095, %v684
    %v2101 = vmul.f32 %v2096, %v688
    %v2102 = vmul.f32 %v2097, %v692
    %2103 = vst [vmem:[#allocation3] sm:$0xff] %v2098
    %2104 = vst [vmem:[#allocation3 + $0x8] sm:$0xff] %v2099
    %2105 = vst [vmem:[#allocation3 + $0x10] sm:$0xff] %v2100
    %2106 = vst [vmem:[#allocation3 + $0x18] sm:$0xff] %v2101
    %2107 = vst.msk [vmem:[#allocation3 + $0x20] sm:$0xff] %vm761, %v2102
    %v2108 = vld [vmem:[#allocation2] sm:$0xff]
    %v2109 = vld [vmem:[#allocation2 + $0x8] sm:$0xff]
    %v2110 = vld [vmem:[#allocation2 + $0x10] sm:$0xff]
    %v2111 = vld [vmem:[#allocation2 + $0x18] sm:$0xff]
    %v2112 = vld [vmem:[#allocation2 + $0x20] sm:$0xff]
    %2118 = vrot.lane.b32.xlu0 %v2108, 127
    %v2119 = vpop.permute.xlu0 %2118
    %2120 = vrot.lane.b32.xlu0 %v2109, 127
    %v2121 = vpop.permute.xlu0 %2120
    %2122 = vrot.lane.b32.xlu0 %v2110, 127
    %v2123 = vpop.permute.xlu0 %2122
    %2124 = vrot.lane.b32.xlu0 %v2111, 127
    %v2125 = vpop.permute.xlu0 %2124
    %2126 = vrot.lane.b32.xlu0 %v2112, 127
    %v2127 = vpop.permute.xlu0 %2126
    %v2128 = vsel %vm783, %v2119, %v2121
    %v2129 = vsel %vm783, %v2121, %v2123
    %v2130 = vsel %vm783, %v2123, %v2125
    %v2131 = vsel %vm783, %v2125, %v2127
    %2137 = vst [vmem:[#allocation3 + $0x28] sm:$0xff] %v2128
    %2138 = vst [vmem:[#allocation3 + $0x30] sm:$0xff] %v2129
    %2139 = vst [vmem:[#allocation3 + $0x38] sm:$0xff] %v2130
    %2140 = vst [vmem:[#allocation3 + $0x40] sm:$0xff] %v2131
    %2141 = vst.msk [vmem:[#allocation3 + $0x48] sm:$0xff] %vm761, %v2127
    %v2142 = vld [vmem:[#allocation2] sm:$0xff]
    %v2143 = vld [vmem:[#allocation2 + $0x8] sm:$0xff]
    %v2144 = vld [vmem:[#allocation2 + $0x10] sm:$0xff]
    %v2145 = vld [vmem:[#allocation2 + $0x18] sm:$0xff]
    %v2146 = vld [vmem:[#allocation2 + $0x20] sm:$0xff]
    %v2147 = vmul.f32 %v2142, %v804
    %v2148 = vmul.f32 %v2143, %v814
    %v2149 = vmul.f32 %v2144, %v815
    %v2150 = vmul.f32 %v2145, %v816
    %v2151 = vmul.f32 %v2146, %v817
    %2157 = vrot.lane.b32.xlu0 %v2147, 126
    %v2158 = vpop.permute.xlu0 %2157
    %2159 = vrot.lane.b32.xlu0 %v2148, 126
    %v2160 = vpop.permute.xlu0 %2159
    %2161 = vrot.lane.b32.xlu0 %v2149, 126
    %v2162 = vpop.permute.xlu0 %2161
    %2163 = vrot.lane.b32.xlu0 %v2150, 126
    %v2164 = vpop.permute.xlu0 %2163
    %2165 = vrot.lane.b32.xlu0 %v2151, 126
    %v2166 = vpop.permute.xlu0 %2165
    %v2167 = vsel %vm843, %v2158, %v2160
    %v2168 = vsel %vm843, %v2160, %v2162
    %v2169 = vsel %vm843, %v2162, %v2164
    %v2170 = vsel %vm843, %v2164, %v2166
    %2176 = vst [vmem:[#allocation3 + $0x50] sm:$0xff] %v2167
    %2177 = vst [vmem:[#allocation3 + $0x58] sm:$0xff] %v2168
    %2178 = vst [vmem:[#allocation3 + $0x60] sm:$0xff] %v2169
    %2179 = vst [vmem:[#allocation3 + $0x68] sm:$0xff] %v2170
    %2180 = vst.msk [vmem:[#allocation3 + $0x70] sm:$0xff] %vm761, %v2166
    %v2181 = vld [vmem:[#allocation2] sm:$0xff]
    %v2182 = vld [vmem:[#allocation2 + $0x8] sm:$0xff]
    %v2183 = vld [vmem:[#allocation2 + $0x10] sm:$0xff]
    %v2184 = vld [vmem:[#allocation2 + $0x18] sm:$0xff]
    %v2185 = vld [vmem:[#allocation2 + $0x20] sm:$0xff]
    %v2186 = vmul.f32 %v2181, %v864
    %v2187 = vmul.f32 %v2182, %v874
    %v2188 = vmul.f32 %v2183, %v875
    %v2189 = vmul.f32 %v2184, %v876
    %v2190 = vmul.f32 %v2185, %v877
    %2196 = vrot.lane.b32.xlu0 %v2186, 112
    %v2197 = vpop.permute.xlu0 %2196
    %2198 = vrot.lane.b32.xlu0 %v2187, 112
    %v2199 = vpop.permute.xlu0 %2198
    %2200 = vrot.lane.b32.xlu0 %v2188, 112
    %v2201 = vpop.permute.xlu0 %2200
    %2202 = vrot.lane.b32.xlu0 %v2189, 112
    %v2203 = vpop.permute.xlu0 %2202
    %2204 = vrot.lane.b32.xlu0 %v2190, 112
    %v2205 = vpop.permute.xlu0 %2204
    %v2206 = vsel %vm903, %v2197, %v2199
    %v2207 = vsel %vm903, %v2199, %v2201
    %v2208 = vsel %vm903, %v2201, %v2203
    %v2209 = vsel %vm903, %v2203, %v2205
    %2215 = vst [vmem:[#allocation3 + $0x78] sm:$0xff] %v2206
    %2216 = vst [vmem:[#allocation3 + $0x80] sm:$0xff] %v2207
    %2217 = vst [vmem:[#allocation3 + $0x88] sm:$0xff] %v2208
    %2218 = vst [vmem:[#allocation3 + $0x90] sm:$0xff] %v2209
    %2219 = vst.msk [vmem:[#allocation3 + $0x98] sm:$0xff] %vm761, %v2205
    %v2220 = vld [vmem:[#allocation2] sm:$0xff]
    %v2221 = vld [vmem:[#allocation2 + $0x8] sm:$0xff]
    %v2222 = vld [vmem:[#allocation2 + $0x10] sm:$0xff]
    %v2223 = vld [vmem:[#allocation2 + $0x18] sm:$0xff]
    %v2224 = vld [vmem:[#allocation2 + $0x20] sm:$0xff]
    %2230 = vrot.lane.b32.xlu0 %v2220, 111
    %v2231 = vpop.permute.xlu0 %2230
    %2232 = vrot.lane.b32.xlu0 %v2221, 111
    %v2233 = vpop.permute.xlu0 %2232
    %2234 = vrot.lane.b32.xlu0 %v2222, 111
    %v2235 = vpop.permute.xlu0 %2234
    %2236 = vrot.lane.b32.xlu0 %v2223, 111
    %v2237 = vpop.permute.xlu0 %2236
    %2238 = vrot.lane.b32.xlu0 %v2224, 111
    %v2239 = vpop.permute.xlu0 %2238
    %v2240 = vsel %vm938, %v2231, %v2233
    %v2241 = vsel %vm938, %v2233, %v2235
    %v2242 = vsel %vm938, %v2235, %v2237
    %v2243 = vsel %vm938, %v2237, %v2239
    %2249 = vst [vmem:[#allocation3 + $0xa0] sm:$0xff] %v2240
    %2250 = vst [vmem:[#allocation3 + $0xa8] sm:$0xff] %v2241
    %2251 = vst [vmem:[#allocation3 + $0xb0] sm:$0xff] %v2242
    %2252 = vst [vmem:[#allocation3 + $0xb8] sm:$0xff] %v2243
    %2253 = vst.msk [vmem:[#allocation3 + $0xc0] sm:$0xff] %vm761, %v2239
    %v2254 = vld [vmem:[#allocation2] sm:$0xff]
    %v2255 = vld [vmem:[#allocation2 + $0x8] sm:$0xff]
    %v2256 = vld [vmem:[#allocation2 + $0x10] sm:$0xff]
    %v2257 = vld [vmem:[#allocation2 + $0x18] sm:$0xff]
    %v2258 = vld [vmem:[#allocation2 + $0x20] sm:$0xff]
    %v2259 = vmul.f32 %v2254, %v959
    %v2260 = vmul.f32 %v2255, %v969
    %v2261 = vmul.f32 %v2256, %v970
    %v2262 = vmul.f32 %v2257, %v971
    %v2263 = vmul.f32 %v2258, %v972
    %2269 = vrot.lane.b32.xlu0 %v2259, 110
    %v2270 = vpop.permute.xlu0 %2269
    %2271 = vrot.lane.b32.xlu0 %v2260, 110
    %v2272 = vpop.permute.xlu0 %2271
    %2273 = vrot.lane.b32.xlu0 %v2261, 110
    %v2274 = vpop.permute.xlu0 %2273
    %2275 = vrot.lane.b32.xlu0 %v2262, 110
    %v2276 = vpop.permute.xlu0 %2275
    %2277 = vrot.lane.b32.xlu0 %v2263, 110
    %v2278 = vpop.permute.xlu0 %2277
    %v2279 = vsel %vm998, %v2270, %v2272
    %v2280 = vsel %vm998, %v2272, %v2274
    %v2281 = vsel %vm998, %v2274, %v2276
    %v2282 = vsel %vm998, %v2276, %v2278
    %2288 = vst [vmem:[#allocation3 + $0xc8] sm:$0xff] %v2279
    %2289 = vst [vmem:[#allocation3 + $0xd0] sm:$0xff] %v2280
    %2290 = vst [vmem:[#allocation3 + $0xd8] sm:$0xff] %v2281
    %2291 = vst [vmem:[#allocation3 + $0xe0] sm:$0xff] %v2282
    %2292 = vst.msk [vmem:[#allocation3 + $0xe8] sm:$0xff] %vm761, %v2278
    %v2293 = vld [vmem:[#allocation2] sm:$0xff]
    %v2294 = vld [vmem:[#allocation2 + $0x8] sm:$0xff]
    %v2295 = vld [vmem:[#allocation2 + $0x10] sm:$0xff]
    %v2296 = vld [vmem:[#allocation2 + $0x18] sm:$0xff]
    %v2297 = vld [vmem:[#allocation2 + $0x20] sm:$0xff]
    %v2298 = vmul.f32 %v2293, %v1019
    %v2299 = vmul.f32 %v2294, %v1029
    %v2300 = vmul.f32 %v2295, %v1030
    %v2301 = vmul.f32 %v2296, %v1031
    %v2302 = vmul.f32 %v2297, %v1032
    %2308 = vrot.lane.b32.xlu0 %v2298, 96
    %v2309 = vpop.permute.xlu0 %2308
    %2310 = vrot.lane.b32.xlu0 %v2299, 96
    %v2311 = vpop.permute.xlu0 %2310
    %2312 = vrot.lane.b32.xlu0 %v2300, 96
    %v2313 = vpop.permute.xlu0 %2312
    %2314 = vrot.lane.b32.xlu0 %v2301, 96
    %v2315 = vpop.permute.xlu0 %2314
    %2316 = vrot.lane.b32.xlu0 %v2302, 96
    %v2317 = vpop.permute.xlu0 %2316
    %v2318 = vsel %vm1058, %v2309, %v2311
    %v2319 = vsel %vm1058, %v2311, %v2313
    %v2320 = vsel %vm1058, %v2313, %v2315
    %v2321 = vsel %vm1058, %v2315, %v2317
    %2327 = vst [vmem:[#allocation3 + $0xf0] sm:$0xff] %v2318
    %2328 = vst [vmem:[#allocation3 + $0xf8] sm:$0xff] %v2319
    %2329 = vst [vmem:[#allocation3 + $0x100] sm:$0xff] %v2320
    %2330 = vst [vmem:[#allocation3 + $0x108] sm:$0xff] %v2321
    %2331 = vst.msk [vmem:[#allocation3 + $0x110] sm:$0xff] %vm761, %v2317
    %v2332 = vld [vmem:[#allocation2] sm:$0xff]
    %v2333 = vld [vmem:[#allocation2 + $0x8] sm:$0xff]
    %v2334 = vld [vmem:[#allocation2 + $0x10] sm:$0xff]
    %v2335 = vld [vmem:[#allocation2 + $0x18] sm:$0xff]
    %v2336 = vld [vmem:[#allocation2 + $0x20] sm:$0xff]
    %2342 = vrot.lane.b32.xlu0 %v2332, 95
    %v2343 = vpop.permute.xlu0 %2342
    %2344 = vrot.lane.b32.xlu0 %v2333, 95
    %v2345 = vpop.permute.xlu0 %2344
    %2346 = vrot.lane.b32.xlu0 %v2334, 95
    %v2347 = vpop.permute.xlu0 %2346
    %2348 = vrot.lane.b32.xlu0 %v2335, 95
    %v2349 = vpop.permute.xlu0 %2348
    %2350 = vrot.lane.b32.xlu0 %v2336, 95
    %v2351 = vpop.permute.xlu0 %2350
    %v2352 = vsel %vm1093, %v2343, %v2345
    %v2353 = vsel %vm1093, %v2345, %v2347
    %v2354 = vsel %vm1093, %v2347, %v2349
    %v2355 = vsel %vm1093, %v2349, %v2351
    %2361 = vst [vmem:[#allocation3 + $0x118] sm:$0xff] %v2352
    %2362 = vst [vmem:[#allocation3 + $0x120] sm:$0xff] %v2353
    %2363 = vst [vmem:[#allocation3 + $0x128] sm:$0xff] %v2354
    %2364 = vst [vmem:[#allocation3 + $0x130] sm:$0xff] %v2355
    %2365 = vst.msk [vmem:[#allocation3 + $0x138] sm:$0xff] %vm761, %v2351
    %v2366 = vld [vmem:[#allocation2] sm:$0xff]
    %v2367 = vld [vmem:[#allocation2 + $0x8] sm:$0xff]
    %v2368 = vld [vmem:[#allocation2 + $0x10] sm:$0xff]
    %v2369 = vld [vmem:[#allocation2 + $0x18] sm:$0xff]
    %v2370 = vld [vmem:[#allocation2 + $0x20] sm:$0xff]
    %v2371 = vmul.f32 %v2366, %v1114
    %v2372 = vmul.f32 %v2367, %v1123
    %v2373 = vmul.f32 %v2368, %v1124
    %v2374 = vmul.f32 %v2369, %v1125
    %v2375 = vmul.f32 %v2370, %v1126
    %2381 = vrot.lane.b32.xlu0 %v2371, 94
    %v2382 = vpop.permute.xlu0 %2381
    %2383 = vrot.lane.b32.xlu0 %v2372, 94
    %v2384 = vpop.permute.xlu0 %2383
    %2385 = vrot.lane.b32.xlu0 %v2373, 94
    %v2386 = vpop.permute.xlu0 %2385
    %2387 = vrot.lane.b32.xlu0 %v2374, 94
    %v2388 = vpop.permute.xlu0 %2387
    %2389 = vrot.lane.b32.xlu0 %v2375, 94
    %v2390 = vpop.permute.xlu0 %2389
    %v2391 = vsel %vm1152, %v2382, %v2384
    %v2392 = vsel %vm1152, %v2384, %v2386
    %v2393 = vsel %vm1152, %v2386, %v2388
    %v2394 = vsel %vm1152, %v2388, %v2390
    %2400 = vst [vmem:[#allocation3 + $0x140] sm:$0xff] %v2391
    %2401 = vst [vmem:[#allocation3 + $0x148] sm:$0xff] %v2392
    %2402 = vst [vmem:[#allocation3 + $0x150] sm:$0xff] %v2393
    %2403 = vst [vmem:[#allocation3 + $0x158] sm:$0xff] %v2394
    %2404 = vst.msk [vmem:[#allocation3 + $0x160] sm:$0xff] %vm761, %v2390
    %v2405 = vld [vmem:[%s14] sm:$0xf]
    %v2406 = vld [vmem:[#allocation3] sm:$0xff]
    %v2407 = vld [vmem:[#allocation3 + $0x8] sm:$0xff]
    %v2408 = vld [vmem:[#allocation3 + $0x10] sm:$0xff]
    %v2409 = vld [vmem:[#allocation3 + $0x18] sm:$0xff]
    %v2410 = vld [vmem:[#allocation3 + $0x20] sm:$0xff]
    %v2411 = vld [vmem:[#allocation3 + $0x28] sm:$0xff]
    %v2412 = vld [vmem:[#allocation3 + $0x30] sm:$0xff]
    %v2413 = vld [vmem:[#allocation3 + $0x38] sm:$0xff]
    %v2414 = vld [vmem:[#allocation3 + $0x40] sm:$0xff]
    %v2415 = vld [vmem:[#allocation3 + $0x48] sm:$0xff]
    %v2416 = vld [vmem:[#allocation3 + $0x50] sm:$0xff]
    %v2417 = vld [vmem:[#allocation3 + $0x58] sm:$0xff]
    %v2418 = vld [vmem:[#allocation3 + $0x60] sm:$0xff]
    %v2419 = vld [vmem:[#allocation3 + $0x68] sm:$0xff]
    %v2420 = vld [vmem:[#allocation3 + $0x70] sm:$0xff]
    %v2421 = vld [vmem:[#allocation3 + $0x78] sm:$0xff]
    %v2422 = vld [vmem:[#allocation3 + $0x80] sm:$0xff]
    %v2423 = vld [vmem:[#allocation3 + $0x88] sm:$0xff]
    %v2424 = vld [vmem:[#allocation3 + $0x90] sm:$0xff]
    %v2425 = vld [vmem:[#allocation3 + $0x98] sm:$0xff]
    %v2426 = vld [vmem:[#allocation3 + $0xa0] sm:$0xff]
    %v2427 = vld [vmem:[#allocation3 + $0xa8] sm:$0xff]
    %v2428 = vld [vmem:[#allocation3 + $0xb0] sm:$0xff]
    %v2429 = vld [vmem:[#allocation3 + $0xb8] sm:$0xff]
    %v2430 = vld [vmem:[#allocation3 + $0xc0] sm:$0xff]
    %v2431 = vld [vmem:[#allocation3 + $0xc8] sm:$0xff]
    %v2432 = vld [vmem:[#allocation3 + $0xd0] sm:$0xff]
    %v2433 = vld [vmem:[#allocation3 + $0xd8] sm:$0xff]
    %v2434 = vld [vmem:[#allocation3 + $0xe0] sm:$0xff]
    %v2435 = vld [vmem:[#allocation3 + $0xe8] sm:$0xff]
    %v2436 = vld [vmem:[#allocation3 + $0xf0] sm:$0xff]
    %v2437 = vld [vmem:[#allocation3 + $0xf8] sm:$0xff]
    %v2438 = vld [vmem:[#allocation3 + $0x100] sm:$0xff]
    %v2439 = vld [vmem:[#allocation3 + $0x108] sm:$0xff]
    %v2440 = vld [vmem:[#allocation3 + $0x110] sm:$0xff]
    %v2441 = vld [vmem:[#allocation3 + $0x118] sm:$0xff]
    %v2442 = vld [vmem:[#allocation3 + $0x120] sm:$0xff]
    %v2443 = vld [vmem:[#allocation3 + $0x128] sm:$0xff]
    %v2444 = vld [vmem:[#allocation3 + $0x130] sm:$0xff]
    %v2445 = vld [vmem:[#allocation3 + $0x138] sm:$0xff]
    %v2446 = vld [vmem:[#allocation3 + $0x140] sm:$0xff]
    %v2447 = vld [vmem:[#allocation3 + $0x148] sm:$0xff]
    %v2448 = vld [vmem:[#allocation3 + $0x150] sm:$0xff]
    %v2449 = vld [vmem:[#allocation3 + $0x158] sm:$0xff]
    %v2450 = vld [vmem:[#allocation3 + $0x160] sm:$0xff]
    %v2451 = vld [vmem:[%s15] sm:$0xf]
    %2453 = vset.pattern.permute.xlu0 0
    %2454 = vperm.xlu0 %2453, %v2451
    %v2455 = vpop.permute.xlu0 %2454
    %v2458 = vsel %vm1219, %v2405, 0
    %2460 = vmatprep.subr.mxu0 %v2407
    %2461 = vmatpush1.msra.mxu0 %v2406
    %2462 = vmatprep.subr.mxu0 %v2412
    %2463 = vmatpush1.msra.mxu0 %v2411
    %2464 = vmatprep.subr.mxu0 %v2417
    %2465 = vmatpush1.msra.mxu0 %v2416
    %2466 = vmatprep.subr.mxu0 %v2422
    %2467 = vmatpush1.msra.mxu0 %v2421
    %2468 = vmatprep.subr.mxu0 %v2427
    %2469 = vmatpush1.msra.mxu0 %v2426
    %2470 = vmatprep.subr.mxu0 %v2432
    %2471 = vmatpush1.msra.mxu0 %v2431
    %2472 = vmatprep.subr.mxu0 %v2437
    %2473 = vmatpush1.msra.mxu0 %v2436
    %2474 = vmatprep.subr.mxu0 %v2442
    %2475 = vmatpush1.msra.mxu0 %v2441
    %2476 = vmatprep.subr.mxu0 %v2447
    %2477 = vmatpush1.msra.mxu0 %v2446
    %2478 = vmatprep.subr.mxu0 0.0
    %2479 = vmatpush1.msra.mxu0 0.0
    %2480 = vmatprep.subr.mxu0 0.0
    %2481 = vmatpush1.msra.mxu0 0.0
    %2482 = vmatprep.subr.mxu0 0.0
    %2483 = vmatpush1.msra.mxu0 0.0
    %2484 = vmatprep.subr.mxu0 0.0
    %2485 = vmatpush1.msra.mxu0 0.0
    %2486 = vmatprep.subr.mxu0 0.0
    %2487 = vmatpush1.msra.mxu0 0.0
    %2488 = vmatprep.subr.mxu0 0.0
    %2489 = vmatpush1.msra.mxu0 0.0
    %2490 = vmatprep.subr.mxu0 0.0
    %2491 = vmatpush1.msra.mxu0 0.0
    %2492 = vmatprep.subr.mxu0 0.0
    %2493 = vmatpush1.msra.mxu0 0.0
    %2494 = vmatprep.subr.mxu0 0.0
    %2495 = vmatpush1.msra.mxu0 0.0
    %2496 = vmatprep.subr.mxu0 0.0
    %2497 = vmatpush1.msra.mxu0 0.0
    %2498 = vmatprep.subr.mxu0 0.0
    %2499 = vmatpush1.msra.mxu0 0.0
    %2500 = vmatprep.subr.mxu0 0.0
    %2501 = vmatpush1.msra.mxu0 0.0
    %2502 = vmatprep.subr.mxu0 0.0
    %2503 = vmatpush1.msra.mxu0 0.0
    %2504 = vmatprep.subr.mxu0 0.0
    %2505 = vmatpush1.msra.mxu0 0.0
    %2506 = vmatprep.subr.mxu0 0.0
    %2507 = vmatpush1.msra.mxu0 0.0
    %2508 = vmatprep.subr.mxu0 0.0
    %2509 = vmatpush1.msra.mxu0 0.0
    %2510 = vmatprep.subr.mxu0 0.0
    %2511 = vmatpush1.msra.mxu0 0.0
    %2512 = vmatprep.subr.mxu0 0.0
    %2513 = vmatpush1.msra.mxu0 0.0
    %2514 = vmatprep.subr.mxu0 0.0
    %2515 = vmatpush1.msra.mxu0 0.0
    %2516 = vmatprep.subr.mxu0 0.0
    %2517 = vmatpush1.msra.mxu0 0.0
    %2518 = vmatprep.subr.mxu0 0.0
    %2519 = vmatpush1.msra.mxu0 0.0
    %2520 = vmatprep.subr.mxu0 0.0
    %2521 = vmatpush1.msra.mxu0 0.0
    %2522 = vmatprep.subr.mxu0 0.0
    %2523 = vmatpush1.msra.mxu0 0.0
    %2524 = vmatprep.mubr.f32.mxu0 0.0
    %2525 = vmatmul.mubr.f32.gmra.mrb[0].mxu0 %v2458
    %v2526 = vpop.f32.mrb[0].mxu0
    %v2527 = vadd.f32 %v2455, %v2526
    %v2528 = vpop.f32.mrb[0].mxu0
    %v2529 = vadd.f32 %v2455, %v2528
    %2530 = vdwg.mxu0
    %2531 = vmatprep.subr.mxu0 %v2409
    %2532 = vmatpush1.msra.mxu0 %v2408
    %2533 = vmatprep.subr.mxu0 %v2414
    %2534 = vmatpush1.msra.mxu0 %v2413
    %2535 = vmatprep.subr.mxu0 %v2419
    %2536 = vmatpush1.msra.mxu0 %v2418
    %2537 = vmatprep.subr.mxu0 %v2424
    %2538 = vmatpush1.msra.mxu0 %v2423
    %2539 = vmatprep.subr.mxu0 %v2429
    %2540 = vmatpush1.msra.mxu0 %v2428
    %2541 = vmatprep.subr.mxu0 %v2434
    %2542 = vmatpush1.msra.mxu0 %v2433
    %2543 = vmatprep.subr.mxu0 %v2439
    %2544 = vmatpush1.msra.mxu0 %v2438
    %2545 = vmatprep.subr.mxu0 %v2444
    %2546 = vmatpush1.msra.mxu0 %v2443
    %2547 = vmatprep.subr.mxu0 %v2449
    %2548 = vmatpush1.msra.mxu0 %v2448
    %2549 = vmatprep.subr.mxu0 0.0
    %2550 = vmatpush1.msra.mxu0 0.0
    %2551 = vmatprep.subr.mxu0 0.0
    %2552 = vmatpush1.msra.mxu0 0.0
    %2553 = vmatprep.subr.mxu0 0.0
    %2554 = vmatpush1.msra.mxu0 0.0
    %2555 = vmatprep.subr.mxu0 0.0
    %2556 = vmatpush1.msra.mxu0 0.0
    %2557 = vmatprep.subr.mxu0 0.0
    %2558 = vmatpush1.msra.mxu0 0.0
    %2559 = vmatprep.subr.mxu0 0.0
    %2560 = vmatpush1.msra.mxu0 0.0
    %2561 = vmatprep.subr.mxu0 0.0
    %2562 = vmatpush1.msra.mxu0 0.0
    %2563 = vmatprep.subr.mxu0 0.0
    %2564 = vmatpush1.msra.mxu0 0.0
    %2565 = vmatprep.subr.mxu0 0.0
    %2566 = vmatpush1.msra.mxu0 0.0
    %2567 = vmatprep.subr.mxu0 0.0
    %2568 = vmatpush1.msra.mxu0 0.0
    %2569 = vmatprep.subr.mxu0 0.0
    %2570 = vmatpush1.msra.mxu0 0.0
    %2571 = vmatprep.subr.mxu0 0.0
    %2572 = vmatpush1.msra.mxu0 0.0
    %2573 = vmatprep.subr.mxu0 0.0
    %2574 = vmatpush1.msra.mxu0 0.0
    %2575 = vmatprep.subr.mxu0 0.0
    %2576 = vmatpush1.msra.mxu0 0.0
    %2577 = vmatprep.subr.mxu0 0.0
    %2578 = vmatpush1.msra.mxu0 0.0
    %2579 = vmatprep.subr.mxu0 0.0
    %2580 = vmatpush1.msra.mxu0 0.0
    %2581 = vmatprep.subr.mxu0 0.0
    %2582 = vmatpush1.msra.mxu0 0.0
    %2583 = vmatprep.subr.mxu0 0.0
    %2584 = vmatpush1.msra.mxu0 0.0
    %2585 = vmatprep.subr.mxu0 0.0
    %2586 = vmatpush1.msra.mxu0 0.0
    %2587 = vmatprep.subr.mxu0 0.0
    %2588 = vmatpush1.msra.mxu0 0.0
    %2589 = vmatprep.subr.mxu0 0.0
    %2590 = vmatpush1.msra.mxu0 0.0
    %2591 = vmatprep.subr.mxu0 0.0
    %2592 = vmatpush1.msra.mxu0 0.0
    %2593 = vmatprep.subr.mxu0 0.0
    %2594 = vmatpush1.msra.mxu0 0.0
    %2595 = vmatprep.mubr.f32.mxu0 0.0
    %2596 = vmatmul.mubr.f32.gmra.mrb[0].mxu0 %v2458
    %v2597 = vpop.f32.mrb[0].mxu0
    %v2598 = vadd.f32 %v2455, %v2597
    %v2599 = vpop.f32.mrb[0].mxu0
    %v2600 = vadd.f32 %v2455, %v2599
    %2601 = vdwg.mxu0
    %2602 = vmatprep.subr.mxu0 0.0
    %2603 = vmatpush1.msra.mxu0 %v2410
    %2604 = vmatprep.subr.mxu0 0.0
    %2605 = vmatpush1.msra.mxu0 %v2415
    %2606 = vmatprep.subr.mxu0 0.0
    %2607 = vmatpush1.msra.mxu0 %v2420
    %2608 = vmatprep.subr.mxu0 0.0
    %2609 = vmatpush1.msra.mxu0 %v2425
    %2610 = vmatprep.subr.mxu0 0.0
    %2611 = vmatpush1.msra.mxu0 %v2430
    %2612 = vmatprep.subr.mxu0 0.0
    %2613 = vmatpush1.msra.mxu0 %v2435
    %2614 = vmatprep.subr.mxu0 0.0
    %2615 = vmatpush1.msra.mxu0 %v2440
    %2616 = vmatprep.subr.mxu0 0.0
    %2617 = vmatpush1.msra.mxu0 %v2445
    %2618 = vmatprep.subr.mxu0 0.0
    %2619 = vmatpush1.msra.mxu0 %v2450
    %2620 = vmatprep.subr.mxu0 0.0
    %2621 = vmatpush1.msra.mxu0 0.0
    %2622 = vmatprep.subr.mxu0 0.0
    %2623 = vmatpush1.msra.mxu0 0.0
    %2624 = vmatprep.subr.mxu0 0.0
    %2625 = vmatpush1.msra.mxu0 0.0
    %2626 = vmatprep.subr.mxu0 0.0
    %2627 = vmatpush1.msra.mxu0 0.0
    %2628 = vmatprep.subr.mxu0 0.0
    %2629 = vmatpush1.msra.mxu0 0.0
    %2630 = vmatprep.subr.mxu0 0.0
    %2631 = vmatpush1.msra.mxu0 0.0
    %2632 = vmatprep.subr.mxu0 0.0
    %2633 = vmatpush1.msra.mxu0 0.0
    %2634 = vmatprep.subr.mxu0 0.0
    %2635 = vmatpush1.msra.mxu0 0.0
    %2636 = vmatprep.subr.mxu0 0.0
    %2637 = vmatpush1.msra.mxu0 0.0
    %2638 = vmatprep.subr.mxu0 0.0
    %2639 = vmatpush1.msra.mxu0 0.0
    %2640 = vmatprep.subr.mxu0 0.0
    %2641 = vmatpush1.msra.mxu0 0.0
    %2642 = vmatprep.subr.mxu0 0.0
    %2643 = vmatpush1.msra.mxu0 0.0
    %2644 = vmatprep.subr.mxu0 0.0
    %2645 = vmatpush1.msra.mxu0 0.0
    %2646 = vmatprep.subr.mxu0 0.0
    %2647 = vmatpush1.msra.mxu0 0.0
    %2648 = vmatprep.subr.mxu0 0.0
    %2649 = vmatpush1.msra.mxu0 0.0
    %2650 = vmatprep.subr.mxu0 0.0
    %2651 = vmatpush1.msra.mxu0 0.0
    %2652 = vmatprep.subr.mxu0 0.0
    %2653 = vmatpush1.msra.mxu0 0.0
    %2654 = vmatprep.subr.mxu0 0.0
    %2655 = vmatpush1.msra.mxu0 0.0
    %2656 = vmatprep.subr.mxu0 0.0
    %2657 = vmatpush1.msra.mxu0 0.0
    %2658 = vmatprep.subr.mxu0 0.0
    %2659 = vmatpush1.msra.mxu0 0.0
    %2660 = vmatprep.subr.mxu0 0.0
    %2661 = vmatpush1.msra.mxu0 0.0
    %2662 = vmatprep.subr.mxu0 0.0
    %2663 = vmatpush1.msra.mxu0 0.0
    %2664 = vmatprep.subr.mxu0 0.0
    %2665 = vmatpush1.msra.mxu0 0.0
    %2666 = vmatprep.mubr.f32.mxu0 0.0
    %2667 = vmatmul.mubr.f32.gmra.mrb[0].mxu0 %v2458
    %v2668 = vpop.f32.mrb[0].mxu0
    %v2669 = vadd.f32 %v2455, %v2668
    %v2670 = vpop.f32.mrb[0].mxu0
    %2671 = vdwg.mxu0
    %v2672 = vmax.f32 %v2527, 0.0
    %v2673 = vmax.f32 %v2529, 0.0
    %v2674 = vmax.f32 %v2598, 0.0
    %v2675 = vmax.f32 %v2600, 0.0
    %v2676 = vmax.f32 %v2669, 0.0
    %v2679 = vcombine.low %v2672, %v2673
    %2681 = vst [vmem:[#allocation9] sm:$0xff] %v2679
    %v2685 = vcombine.low %v2674, %v2675
    %2686 = vrot.lane.b32.xlu0 %v2685, 94
    %v2687 = vpop.permute.xlu0 %2686
    %2688 = vrot.lane.b32.xlu0 %v2676, 94
    %v2689 = vpop.permute.xlu0 %2688
    %v2690 = vrot.slane %v2687, 4
    %v2691 = vrot.slane %v2689, 4
    %v2692 = vsel %vm258, %v2690, %v2691
    %v2693 = vsel %vm1152, %v2687, %v2692
    %s2695 = scalar_lea.vmem [#allocation9], 8
    %2696 = vst [vmem:[%s2695] sm:$0xff] %v2693
    // Predicated region
    $region74: #{tpu_custom_call.1} parent=1 // pred_check
      _
    $region75: #{tpu_custom_call.1} parent=1 // pred_check_branch
      %2698 = sbr.rel (0) target = $region77
    $region76: #{tpu_custom_call.1} parent=1 // pred_region
      %s2700 = ssub.s32 256, 256
      %2701 = vsyncadd [#allocation6], %s2700
      %s2702 = sshll.u32 [#allocation9], 4
      %s2703 = int_to_ptr.vmem [resolvable:$true] %s2702
      %2708 = dma.vmem_to_hbm [thread:$0]  %s2703, 256, %s16, [#allocation6], 128, 128, 8
    $region77: #{tpu_custom_call.1} parent=1 // pred_fallthru
      _
    // Predicated region
    $region78: #{tpu_custom_call.1} parent=1 // pred_check
      _
    $region79: #{tpu_custom_call.1} parent=1 // pred_check_branch
      %2710 = sbr.rel (0) target = $region81
    $region80: #{tpu_custom_call.1} parent=1 // pred_region
      _
    $region81: #{tpu_custom_call.1} parent=1 // pred_fallthru
      _
    // Predicated region
    $region82: #{tpu_custom_call.1} parent=1 // pred_check
      _
    $region83: #{tpu_custom_call.1} parent=1 // pred_check_branch
      %2712 = sbr.rel (0) target = $region85
    $region84: #{tpu_custom_call.1} parent=1 // pred_region
      %2713 = dma.done [#allocation6], 256
    $region85: #{tpu_custom_call.1} parent=1 // pred_fallthru
      _
    // Predicated region
    $region86: #{tpu_custom_call.1} parent=1 // pred_check
      _
    $region87: #{tpu_custom_call.1} parent=1 // pred_check_branch
      %2715 = sbr.rel (0) target = $region89
    $region88: #{tpu_custom_call.1} parent=1 // pred_region
      _
    $region89: #{tpu_custom_call.1} parent=1 // pred_fallthru
      _
    %2716 = vsyncpa [#allocation5], 1
    %2717 = vsyncpa [#allocation8], 1
    %2718 = vsyncpa [#allocation6], 1

</llo_original>
